<compile_context>
chip_gen: v7x
topology: tpu7x:2x2x1
jax: 0.10.0
libtpu: 0.0.40
codegen_flags: <defaults>
</compile_context>

<pallas_src>
import math

import jax
import jax.numpy as jnp
from jax import lax
from jax.experimental import pallas as pl
from jax.experimental.pallas import tpu as pltpu

# Large finite negative sentinel for padded logits (NOT -inf: -inf arithmetic
# would produce NaNs in the sliced-off padded lanes).
_SENTINEL = -1e30


def _round_up(a, b):
    return ((a + b - 1) // b) * b


def _chip_budgets():
    """(temp_budget_bytes, vmem_limit_bytes) derived from this chip's VMEM."""
    cap = 0
    try:
        cap = int(getattr(pltpu.get_tpu_info(), "vmem_capacity_bytes", 0))
    except Exception:
        cap = 0
    if cap <= 0:
        cap = 64 * 1024 * 1024                          # conservative (v7x per-TC)
    if cap >= 96 * 1024 * 1024:                         # v5e / v6e: 128 MiB physical
        return 48 * 1024 * 1024, 96 * 1024 * 1024
    return 16 * 1024 * 1024, 44 * 1024 * 1024           # v7x: 64 MiB per TensorCore


# ----------------------------------------------------------------------------
# Small-N (N < 128, N % 8 == 0): row-major blocks, lane-dense compute layout.
# ----------------------------------------------------------------------------
def _lane_kernel(x_ref, o_ref):
    # Block (TR, N).  Relayout in-kernel to (N, TR) so rows sit on the 128-lane
    # axis: all O(N^2) VPU work runs full-width; the transposes ride the XLU.
    xt = x_ref[...].astype(jnp.float32).T                       # (N, TR)
    zt = xt - jnp.max(xt, axis=0, keepdims=True)
    rsum = jnp.sum(jnp.maximum(zt[None, :, :] - zt[:, None, :], 0.0), axis=1)
    supp = rsum < 1.0                                            # (N, TR)
    k = jnp.sum(supp.astype(jnp.float32), axis=0, keepdims=True)
    ssum = jnp.sum(jnp.where(supp, zt, 0.0), axis=0, keepdims=True)
    tau = (ssum - 1.0) / k                                       # k >= 1: row max always supported
    o_ref[...] = jnp.maximum(zt - tau, 0.0).T.astype(o_ref.dtype)


# ----------------------------------------------------------------------------
# Tiny / odd N (< 8 or not a multiple of 8): plain row-major broadcast kernel.
# ----------------------------------------------------------------------------
def _tiny_kernel(x_ref, o_ref):
    x = x_ref[...].astype(jnp.float32)                           # (TR, N)
    z = x - jnp.max(x, axis=-1, keepdims=True)
    rsum = jnp.sum(jnp.maximum(z[:, None, :] - z[:, :, None], 0.0), axis=-1)
    supp = rsum < 1.0
    k = jnp.sum(supp.astype(jnp.float32), axis=-1, keepdims=True)
    ssum = jnp.sum(jnp.where(supp, z, 0.0), axis=-1, keepdims=True)
    tau = (ssum - 1.0) / k
    o_ref[...] = jnp.maximum(z - tau, 0.0).astype(o_ref.dtype)


# ----------------------------------------------------------------------------
# Large-N (N >= 128): row-major, pairwise axis chunked + unrolled in-kernel.
# N is padded to a multiple of 128 with _SENTINEL -> all chunks and the
# epilogue stores are full 128-lane wide (no masked remainder).
# ----------------------------------------------------------------------------
def _make_row_kernel(n_chunks, jc, unroll):
    def kernel(x_ref, o_ref):
        x = x_ref[...].astype(jnp.float32)                       # (TR, NP)
        m = jnp.max(x, axis=-1, keepdims=True)
        z = x - m
        zi = z[:, :, None]                                       # (TR, NP, 1)

        def body(jb, acc):
            start = pl.multiple_of(jb * jc, jc)
            zj = x_ref[:, pl.ds(start, jc)].astype(jnp.float32) - m   # (TR, jc)
            return acc + jnp.sum(jnp.maximum(zj[:, None, :] - zi, 0.0), axis=-1)

        rsum = lax.fori_loop(0, n_chunks, body, jnp.zeros_like(z), unroll=unroll)
        supp = rsum < 1.0
        k = jnp.sum(supp.astype(jnp.float32), axis=-1, keepdims=True)
        ssum = jnp.sum(jnp.where(supp, z, 0.0), axis=-1, keepdims=True)
        tau = (ssum - 1.0) / k
        o_ref[...] = jnp.maximum(z - tau, 0.0).astype(o_ref.dtype)

    return kernel


# ----------------------------------------------------------------------------
# Tile selection.
# ----------------------------------------------------------------------------
def _pick_lane_tile(r, n, temp_budget):
    # TR lands on the lane axis in-kernel: prefer 128-multiples, minimal row
    # padding, and >= 2 grid steps (megacore) when rows permit.
    per_col = 12 * n * n                        # ~3 live f32 (N, N, TR) temps
    cap = max(128, min(4096, (temp_budget // per_col) // 128 * 128))
    r8 = _round_up(max(r, 1), 8)
    if r8 <= 128:
        return r8
    best_tc, best_key = 128, None
    tc = 128
    limit = min(cap, _round_up(r, 128))
    while tc <= limit:
        r_pad = _round_up(r, tc)
        key = (r_pad, 0 if r_pad // tc >= 2 else 1, -tc)
        if best_key is None or key < best_key:
            best_key, best_tc = key, tc
        tc += 128
    return best_tc


def _pick_row_tile(r, n_pad, jc, temp_budget):
    # ~3 live f32 (TR, NP, jc) temps per chunk iteration.
    tr = temp_budget // (12 * n_pad * jc)
    tr = max(8, min(512, (tr // 8) * 8))
    r8 = _round_up(max(r, 1), 8)
    tr = min(tr, r8)
    if r8 // tr < 2 and r8 >= 16:
        tr = _round_up((r8 + 1) // 2, 8)        # keep >= 2 grid steps (megacore)
    return tr


# ----------------------------------------------------------------------------
# pallas_call wrappers.
# ----------------------------------------------------------------------------
def _call(kernel, xp, r_pad, n_cols, tr, dtype, vmem_limit):
    return pl.pallas_call(
        kernel,
        out_shape=jax.ShapeDtypeStruct((r_pad, n_cols), dtype),
        grid=(r_pad // tr,),
        in_specs=[pl.BlockSpec((tr, n_cols), lambda i: (i, 0))],
        out_specs=pl.BlockSpec((tr, n_cols), lambda i: (i, 0)),
        compiler_params=pltpu.CompilerParams(
            dimension_semantics=("parallel",),
            vmem_limit_bytes=vmem_limit),
    )(xp)


def _sparsemax_small(x2, r, n, temp_budget, vmem_limit):
    if n >= 8 and n % 8 == 0:
        tr = _pick_lane_tile(r, n, temp_budget)
        r_pad = _round_up(r, tr)
        xp = jnp.pad(x2, ((0, r_pad - r), (0, 0))) if r_pad != r else x2
        try:
            out = _call(_lane_kernel, xp, r_pad, n, tr, x2.dtype, vmem_limit)
            return out[:r] if r_pad != r else out
        except Exception:
            # TODO(synk): in-kernel (TR,N)<->(N,TR) relayout unsupported for this
            # shape on this backend; fall back to the row-major small kernel.
            pass
    tr = _pick_row_tile(r, n, max(n, 1), temp_budget)
    r_pad = _round_up(r, tr)
    xp = jnp.pad(x2, ((0, r_pad - r), (0, 0))) if r_pad != r else x2
    out = _call(_tiny_kernel, xp, r_pad, n, tr, x2.dtype, vmem_limit)
    return out[:r] if r_pad != r else out


def _sparsemax_large(x2, r, n, temp_budget, vmem_limit):
    n_pad = _round_up(n, 128)
    jc = 256 if (n_pad % 256 == 0 and n_pad <= 1024) else 128
    tr = _pick_row_tile(r, n_pad, jc, temp_budget)
    r_pad = _round_up(r, tr)
    xp = x2
    if n_pad != n or r_pad != r:
        xp = jnp.pad(x2, ((0, r_pad - r), (0, n_pad - n)),
                     constant_values=_SENTINEL)
    n_chunks = n_pad // jc
    unroll = True if n_chunks <= 8 else 4
    # TODO(synk): for very large N (>~1.5k on v7x, ~3k on 128-MiB parts) the
    # (TR, NP, jc) temp would also want chunking over i (or an O(N*iters)
    # bisection solve for tau); not needed at these sizes.
    kernel = _make_row_kernel(n_chunks, jc, unroll)
    out = _call(kernel, xp, r_pad, n_pad, tr, x2.dtype, vmem_limit)
    return out[:r, :n] if (n_pad != n or r_pad != r) else out


# ----------------------------------------------------------------------------
# Public wrapper (mirrors the transpose/reshape dance of the torch module).
# ----------------------------------------------------------------------------
def sparsemax(x, dim=-1):
    """Sparsemax along `dim` (default -1), matching the PyTorch module's forward."""
    dim = dim % x.ndim
    x_moved = jnp.moveaxis(x, dim, -1)
    shp = x_moved.shape
    n = shp[-1]
    r = int(math.prod(shp[:-1])) if len(shp) > 1 else 1
    x2 = x_moved.reshape(r, n)

    temp_budget, vmem_limit = _chip_budgets()
    if n < 128:
        out2 = _sparsemax_small(x2, r, n, temp_budget, vmem_limit)
    else:
        out2 = _sparsemax_large(x2, r, n, temp_budget, vmem_limit)

    return jnp.moveaxis(out2.reshape(shp), -1, dim)


def _sparsemax_ref(x, dim=-1):
    """Pure-JAX reference (sort-based, literal port of the torch forward)."""
    dim = dim % x.ndim
    xm = jnp.moveaxis(x, dim, -1)
    z = xm - jnp.max(xm, axis=-1, keepdims=True)
    zs = -jnp.sort(-z, axis=-1)
    n = xm.shape[-1]
    rng = jnp.arange(1, n + 1, dtype=x.dtype)
    bound = 1.0 + rng * zs
    cum = jnp.cumsum(zs, axis=-1)
    is_gt = (bound > cum).astype(x.dtype)
    k = jnp.max(is_gt * rng, axis=-1, keepdims=True)
    tau = (jnp.sum(is_gt * zs, axis=-1, keepdims=True) - 1.0) / k
    out = jnp.maximum(z - tau, 0.0)
    return jnp.moveaxis(out, -1, dim)


if __name__ == "__main__":
    key = jax.random.PRNGKey(0)
    k1, k2 = jax.random.split(key)

    # Small-N, lane-dense path (NCHW-style input, sparsemax over dim=-1).
    x = jax.random.normal(k1, (2, 4, 16, 16), dtype=jnp.float32)
    out = jax.block_until_ready(sparsemax(x, dim=-1))
    ref = _sparsemax_ref(x, dim=-1)
    assert out.shape == x.shape and out.dtype == x.dtype
    assert jnp.allclose(jnp.sum(out, axis=-1), 1.0, atol=1e-5)
    assert jnp.allclose(out, ref, atol=1e-5, rtol=1e-5)

    # Non-last dim exercises the wrapper's axis plumbing and the tiny-N kernel.
    out_d1 = jax.block_until_ready(sparsemax(x, dim=1))
    ref_d1 = _sparsemax_ref(x, dim=1)
    assert jnp.allclose(out_d1, ref_d1, atol=1e-5, rtol=1e-5)

    # Larger N exercises the chunked row-major path (sentinel N-padding,
    # unrolled chunk loop, row padding).
    x_big = jax.random.normal(k2, (3, 41, 200), dtype=jnp.float32)
    out_big = jax.block_until_ready(sparsemax(x_big, dim=-1))
    ref_big = _sparsemax_ref(x_big, dim=-1)
    assert out_big.shape == x_big.shape
    assert jnp.allclose(jnp.sum(out_big, axis=-1), 1.0, atol=1e-4)
    assert jnp.allclose(out_big, ref_big, atol=1e-4, rtol=1e-4)

    print("KERNEL_OK")
</pallas_src>

<mosaic_0001>
module attributes {stable_mosaic.version = 11 : i64} {
  func.func @_lane_kernel(%arg0: i32, %arg1: memref<128x16xf32, #tpu.memory_space<vmem>>, %arg2: memref<128x16xf32, #tpu.memory_space<vmem>>) attributes {dimension_semantics = [#tpu.dimension_semantics<parallel>], iteration_bounds = array<i64: 1>, scalar_prefetch = 0 : i64, scratch_operands = 0 : i64, tpu.core_type = #tpu.core_type<tc>, window_params = [{transform_indices = @transform_0, window_bounds = array<i64: 128, 16>}, {transform_indices = @transform_1, window_bounds = array<i64: 128, 16>}]} {
    %c0 = arith.constant 0 : index
    %c0_0 = arith.constant 0 : index
    %0 = vector.load %arg1[%c0, %c0_0] : memref<128x16xf32, #tpu.memory_space<vmem>>, vector<128x16xf32>
    %1 = tpu.transpose %0, [1, 0] : vector<128x16xf32> -> vector<16x128xf32>
    %cst = arith.constant dense<0xFF800000> : vector<128xf32>
    %2 = vector.multi_reduction <maximumf>, %1, %cst [0] : vector<16x128xf32> to vector<128xf32>
    %3 = vector.shape_cast %2 : vector<128xf32> to vector<1x128xf32>
    %4 = vector.broadcast %3 : vector<1x128xf32> to vector<16x128xf32>
    %5 = arith.subf %1, %4 : vector<16x128xf32>
    %6 = vector.shape_cast %5 : vector<16x128xf32> to vector<1x16x128xf32>
    %7 = vector.shape_cast %5 : vector<16x128xf32> to vector<16x1x128xf32>
    %8 = vector.broadcast %6 : vector<1x16x128xf32> to vector<16x16x128xf32>
    %9 = vector.broadcast %7 : vector<16x1x128xf32> to vector<16x16x128xf32>
    %10 = arith.subf %8, %9 : vector<16x16x128xf32>
    %cst_1 = arith.constant 0.000000e+00 : f32
    %11 = vector.broadcast %cst_1 : f32 to vector<16x16x128xf32>
    %12 = arith.maximumf %10, %11 : vector<16x16x128xf32>
    %cst_2 = arith.constant dense<0.000000e+00> : vector<16x128xf32>
    %13 = vector.multi_reduction <add>, %12, %cst_2 [1] : vector<16x16x128xf32> to vector<16x128xf32>
    %cst_3 = arith.constant 1.000000e+00 : f32
    %14 = vector.broadcast %cst_3 : f32 to vector<16x128xf32>
    %15 = arith.cmpf olt, %13, %14 : vector<16x128xf32>
    %16 = arith.extui %15 : vector<16x128xi1> to vector<16x128xi32>
    %17 = arith.sitofp %16 : vector<16x128xi32> to vector<16x128xf32>
    %cst_4 = arith.constant dense<0.000000e+00> : vector<128xf32>
    %18 = vector.multi_reduction <add>, %17, %cst_4 [0] : vector<16x128xf32> to vector<128xf32>
    %19 = vector.shape_cast %18 : vector<128xf32> to vector<1x128xf32>
    %cst_5 = arith.constant 0.000000e+00 : f32
    %20 = vector.broadcast %cst_5 : f32 to vector<16x128xf32>
    %21 = arith.select %15, %5, %20 : vector<16x128xi1>, vector<16x128xf32>
    %cst_6 = arith.constant dense<0.000000e+00> : vector<128xf32>
    %22 = vector.multi_reduction <add>, %21, %cst_6 [0] : vector<16x128xf32> to vector<128xf32>
    %23 = vector.shape_cast %22 : vector<128xf32> to vector<1x128xf32>
    %cst_7 = arith.constant 1.000000e+00 : f32
    %24 = vector.broadcast %cst_7 : f32 to vector<1x128xf32>
    %25 = arith.subf %23, %24 : vector<1x128xf32>
    %26 = arith.divf %25, %19 : vector<1x128xf32>
    %27 = vector.broadcast %26 : vector<1x128xf32> to vector<16x128xf32>
    %28 = arith.subf %5, %27 : vector<16x128xf32>
    %cst_8 = arith.constant 0.000000e+00 : f32
    %29 = vector.broadcast %cst_8 : f32 to vector<16x128xf32>
    %30 = arith.maximumf %28, %29 : vector<16x128xf32>
    %31 = tpu.transpose %30, [1, 0] : vector<16x128xf32> -> vector<128x16xf32>
    %c0_9 = arith.constant 0 : index
    %c0_10 = arith.constant 0 : index
    %32 = vector.load %arg2[%c0_9, %c0_10] : memref<128x16xf32, #tpu.memory_space<vmem>>, vector<128x16xf32>
    tpu.vector_store %arg2[%c0_9, %c0_10], %31 {strides = array<i32>} : memref<128x16xf32, #tpu.memory_space<vmem>>, vector<128x16xf32>,
    return
  }
  func.func @transform_0(%arg0: i32) -> (i32, i32) {
    %c0_i32 = arith.constant 0 : i32
    %c0_i32_0 = arith.constant 0 : i32
    return %arg0, %c0_i32 : i32, i32
  }
  func.func @transform_1(%arg0: i32) -> (i32, i32) {
    %c0_i32 = arith.constant 0 : i32
    %c0_i32_0 = arith.constant 0 : i32
    return %arg0, %c0_i32 : i32, i32
  }
}

module attributes {stable_mosaic.version = 11 : i64} {
  func.func @_tiny_kernel(%arg0: i32, %arg1: memref<64x16xf32, #tpu.memory_space<vmem>>, %arg2: memref<64x16xf32, #tpu.memory_space<vmem>>) attributes {dimension_semantics = [#tpu.dimension_semantics<parallel>], iteration_bounds = array<i64: 2>, scalar_prefetch = 0 : i64, scratch_operands = 0 : i64, tpu.core_type = #tpu.core_type<tc>, window_params = [{transform_indices = @transform_0, window_bounds = array<i64: 64, 16>}, {transform_indices = @transform_1, window_bounds = array<i64: 64, 16>}]} {
    %c0 = arith.constant 0 : index
    %c0_0 = arith.constant 0 : index
    %0 = vector.load %arg1[%c0, %c0_0] : memref<64x16xf32, #tpu.memory_space<vmem>>, vector<64x16xf32>
    %cst = arith.constant dense<0xFF800000> : vector<64xf32>
    %1 = vector.multi_reduction <maximumf>, %0, %cst [1] : vector<64x16xf32> to vector<64xf32>
    %2 = vector.shape_cast %1 : vector<64xf32> to vector<64x1xf32>
    %3 = vector.broadcast %2 : vector<64x1xf32> to vector<64x16xf32>
    %4 = arith.subf %0, %3 : vector<64x16xf32>
    %5 = vector.shape_cast %4 : vector<64x16xf32> to vector<64x1x16xf32>
    %6 = vector.shape_cast %4 : vector<64x16xf32> to vector<64x16x1xf32>
    %7 = vector.broadcast %5 : vector<64x1x16xf32> to vector<64x16x16xf32>
    %8 = vector.broadcast %6 : vector<64x16x1xf32> to vector<64x16x16xf32>
    %9 = arith.subf %7, %8 : vector<64x16x16xf32>
    %cst_1 = arith.constant 0.000000e+00 : f32
    %10 = vector.broadcast %cst_1 : f32 to vector<64x16x16xf32>
    %11 = arith.maximumf %9, %10 : vector<64x16x16xf32>
    %cst_2 = arith.constant dense<0.000000e+00> : vector<64x16xf32>
    %12 = vector.multi_reduction <add>, %11, %cst_2 [2] : vector<64x16x16xf32> to vector<64x16xf32>
    %cst_3 = arith.constant 1.000000e+00 : f32
    %13 = vector.broadcast %cst_3 : f32 to vector<64x16xf32>
    %14 = arith.cmpf olt, %12, %13 : vector<64x16xf32>
    %15 = arith.extui %14 : vector<64x16xi1> to vector<64x16xi32>
    %16 = arith.sitofp %15 : vector<64x16xi32> to vector<64x16xf32>
    %cst_4 = arith.constant dense<0.000000e+00> : vector<64xf32>
    %17 = vector.multi_reduction <add>, %16, %cst_4 [1] : vector<64x16xf32> to vector<64xf32>
    %18 = vector.shape_cast %17 : vector<64xf32> to vector<64x1xf32>
    %cst_5 = arith.constant 0.000000e+00 : f32
    %19 = vector.broadcast %cst_5 : f32 to vector<64x16xf32>
    %20 = arith.select %14, %4, %19 : vector<64x16xi1>, vector<64x16xf32>
    %cst_6 = arith.constant dense<0.000000e+00> : vector<64xf32>
    %21 = vector.multi_reduction <add>, %20, %cst_6 [1] : vector<64x16xf32> to vector<64xf32>
    %22 = vector.shape_cast %21 : vector<64xf32> to vector<64x1xf32>
    %cst_7 = arith.constant 1.000000e+00 : f32
    %23 = vector.broadcast %cst_7 : f32 to vector<64x1xf32>
    %24 = arith.subf %22, %23 : vector<64x1xf32>
    %25 = arith.divf %24, %18 : vector<64x1xf32>
    %26 = vector.broadcast %25 : vector<64x1xf32> to vector<64x16xf32>
    %27 = arith.subf %4, %26 : vector<64x16xf32>
    %cst_8 = arith.constant 0.000000e+00 : f32
    %28 = vector.broadcast %cst_8 : f32 to vector<64x16xf32>
    %29 = arith.maximumf %27, %28 : vector<64x16xf32>
    %c0_9 = arith.constant 0 : index
    %c0_10 = arith.constant 0 : index
    %30 = vector.load %arg2[%c0_9, %c0_10] : memref<64x16xf32, #tpu.memory_space<vmem>>, vector<64x16xf32>
    tpu.vector_store %arg2[%c0_9, %c0_10], %29 {strides = array<i32>} : memref<64x16xf32, #tpu.memory_space<vmem>>, vector<64x16xf32>,
    return
  }
  func.func @transform_0(%arg0: i32) -> (i32, i32) {
    %c0_i32 = arith.constant 0 : i32
    %c0_i32_0 = arith.constant 0 : i32
    return %arg0, %c0_i32 : i32, i32
  }
  func.func @transform_1(%arg0: i32) -> (i32, i32) {
    %c0_i32 = arith.constant 0 : i32
    %c0_i32_0 = arith.constant 0 : i32
    return %arg0, %c0_i32 : i32, i32
  }
}

</mosaic_0001>

<llo_original>
// kernel: tpu_custom_call.1
$region0: #{tpu_custom_call.1}
  #allocation0 [shape = 'u32[]', space=smem, size = 0x4, offset = 0x4, fixed_abs, tag = 'smem constant byte address 0x4 - core index']
  #allocation1 [shape = 'u32[144,128]{1,0:T(1,128)}', space=vmem, size = 0x12000, scoped, tag = 'internal scratch']
  %s0 = inlined_call_operand.vmem [shape: f32[128,16], index: 0, kind: input, shape index: {}]
  %s1 = inlined_call_operand.vmem [shape: f32[128,16], index: 1, kind: output, shape index: {}]
  %s2 = sld [smem:[#allocation0]]
  $region37: #{tpu_custom_call.1} parent=0
    _
  %s4 = ssub.s32 1, %s2
  %s5 = scalar_select 0, %s4, %s2
  loop: start=0, step=1, limit=4
  $region2: #{tpu_custom_call.1} parent=0 // loop_pre_header
    _
  $region3: #{tpu_custom_call.1} parent=0 // loop_header
    %s7 = sphi 0, %s11
    %p8 = scmp.ge.s32.totalorder %s7, 4
    %s17 = sphi 0, %s19
    %s20 = sphi 0, %s17
    %s21 = sphi 0, %s20
    %s37 = sphi 0, %s21
    %s43 = sphi 0, %s45
    %s46 = sphi 0, %s43
    %s47 = sphi 0, %s46
    %s63 = sphi 0, %s47
  $region4: #{tpu_custom_call.1} parent=0 // loop_header_branch
    %10 = sbr.rel (%p8) target = $region8
  $region5: #{tpu_custom_call.1} parent=0 // loop_body
    %s12 = ssub.s32 %s7, 1
    %s13 = ssub.s32 %s7, 2
    %s14 = sadd.s32 %s7, 1
    %s15 = ssub.s32 %s7, %s14
    %p16 = scmp.eq.s32.totalorder %s15, 0
    %s18 = sadd.s32 %s17, 1
    %s19 = scalar_select %p16, %s17, %s18
    %p22 = pneg %p16
    %p23 = scmp.eq.s32.totalorder %s7, 1
    %p24 = por %p22, %p23
    %p25 = scmp.ne.s32.totalorder %s17, %s20
    %p26 = scmp.eq.s32.totalorder %s7, 0
    %p27 = por %p25, %p26
    %p28 = scmp.ne.s32.totalorder %s17, %s20
    %p29 = scmp.eq.s32.totalorder %s12, 1
    %p30 = por %p28, %p29
    %p31 = scmp.ne.s32.totalorder %s20, %s21
    %p32 = scmp.eq.s32.totalorder %s12, 0
    %p33 = por %p31, %p32
    %p34 = scmp.ne.s32.totalorder %s20, %s21
    %p35 = scmp.eq.s32.totalorder %s13, 1
    %p36 = por %p34, %p35
    %p38 = scmp.ne.s32.totalorder %s21, %s37
    %p39 = scmp.eq.s32.totalorder %s13, 0
    %p40 = por %p38, %p39
    %s41 = ssub.s32 %s7, %s14
    %p42 = scmp.eq.s32.totalorder %s41, 0
    %s44 = sadd.s32 %s43, 1
    %s45 = scalar_select %p42, %s43, %s44
    %p48 = pneg %p42
    %p49 = scmp.eq.s32.totalorder %s7, 1
    %p50 = por %p48, %p49
    %p51 = scmp.ne.s32.totalorder %s43, %s46
    %p52 = scmp.eq.s32.totalorder %s7, 0
    %p53 = por %p51, %p52
    %p54 = scmp.ne.s32.totalorder %s43, %s46
    %p55 = scmp.eq.s32.totalorder %s12, 1
    %p56 = por %p54, %p55
    %p57 = scmp.ne.s32.totalorder %s46, %s47
    %p58 = scmp.eq.s32.totalorder %s12, 0
    %p59 = por %p57, %p58
    %p60 = scmp.ne.s32.totalorder %s46, %s47
    %p61 = scmp.eq.s32.totalorder %s13, 1
    %p62 = por %p60, %p61
    %p64 = scmp.ne.s32.totalorder %s47, %s63
    %p65 = scmp.eq.s32.totalorder %s13, 0
    %p66 = por %p64, %p65
    %p67 = scmp.le.s32.totalorder 1, %s7
    %p68 = scmp.lt.s32.totalorder %s7, 3
    %p69 = pnand %p67, %p68
    %p70 = pneg %p69
    // Predicated region
    $region9: #{tpu_custom_call.1} parent=5 // pred_check
      _
    $region10: #{tpu_custom_call.1} parent=5 // pred_check_branch
      %72 = sbr.rel (%p69) target = $region12
    $region11: #{tpu_custom_call.1} parent=5 // pred_region
      %s73 = ssub.s32 %s7, 1
    $region12: #{tpu_custom_call.1} parent=5 // pred_fallthru
      _
    %p74 = scmp.lt.s32.totalorder %s7, 2
    // Predicated region
    $region13: #{tpu_custom_call.1} parent=5 // pred_check
      %p75 = pneg %p74
    $region14: #{tpu_custom_call.1} parent=5 // pred_check_branch
      %77 = sbr.rel (%p75) target = $region16
    $region15: #{tpu_custom_call.1} parent=5 // pred_region
      // Predicated region
      $region17: #{tpu_custom_call.1} parent=15 // pred_check
        %p78 = pneg %p27
      $region18: #{tpu_custom_call.1} parent=15 // pred_check_branch
        %80 = sbr.rel (%p78) target = $region20
      $region19: #{tpu_custom_call.1} parent=15 // pred_region
        %s81 = smul.u32 8, %s7
        %p82 = scmp.lt.s32.totalorder %s81, 15
        %s83 = scalar_select %p82, %s81, 15
        %s84 = smul.addr %s83, 8
        %s85 = scalar_lea.vmem %s0, %s84
        %s86 = smul.u32 8, %s7
      $region20: #{tpu_custom_call.1} parent=15 // pred_fallthru
        _
    $region16: #{tpu_custom_call.1} parent=5 // pred_fallthru
      _
    %p87 = scmp.le.s32.totalorder 1, %s7
    %p88 = scmp.lt.s32.totalorder %s7, 3
    %p89 = pnand %p87, %p88
    %p90 = pneg %p89
    // Predicated region
    $region21: #{tpu_custom_call.1} parent=5 // pred_check
      _
    $region22: #{tpu_custom_call.1} parent=5 // pred_check_branch
      %92 = sbr.rel (%p89) target = $region24
    $region23: #{tpu_custom_call.1} parent=5 // pred_region
      %s93 = ssub.s32 %s7, 1
      %s94 = smul.u32 8, %s12
      %p95 = scmp.lt.s32.totalorder %s94, 15
      %s96 = scalar_select %p95, %s94, 15
      %s97 = smul.addr %s96, 8
      %s98 = scalar_lea.vmem %s0, %s97
      %p99 = pneg %p33
      %p100 = pneg %p30
      %p101 = pneg %p59
      %p102 = pneg %p56
      %s103 = smul.u32 8, %s12
      %p104 = scmp.lt.s32.totalorder %s103, 15
      %s105 = scalar_select %p104, %s103, 15
      %s106 = smul.addr %s105, 8
      %s107 = scalar_lea.vmem %s1, %s106
      %s108 = smul.u32 8, %s12
      %p109 = scmp.lt.s32.totalorder %s108, 15
      %s110 = scalar_select %p109, %s108, 15
      %s111 = smul.addr %s110, 8
      %s112 = scalar_lea.vmem %s0, %s111
      %s113 = smul.u32 8, %s12
      %s114 = smul.u32 8, %s12
      %p115 = scmp.lt.s32.totalorder %s114, 15
      %s116 = scalar_select %p115, %s114, 15
      %s117 = smul.addr %s116, 8
      %s118 = scalar_lea.vmem %s1, %s117
      %s119 = smul.u32 8, %s12
      %v120 = vld [vmem:[%s112] sm:$0xff]
      %v121 = vld [vmem:[%s112 + $0x8] sm:$0xff]
      %v122 = vld [vmem:[%s112 + $0x10] sm:$0xff]
      %v123 = vld [vmem:[%s112 + $0x18] sm:$0xff]
      %v124 = vld [vmem:[%s112 + $0x20] sm:$0xff]
      %v125 = vld [vmem:[%s112 + $0x28] sm:$0xff]
      %v126 = vld [vmem:[%s112 + $0x30] sm:$0xff]
      %v127 = vld [vmem:[%s112 + $0x38] sm:$0xff]
      %vm128 = vcmask 130048
      %v129 = vsel %vm128, %v120, -inf
      %130 = vmax.xlane.f32.xlu0 %v129
      %v131 = vpop.xlane.xlu0 %130
      %v132 = vsel %vm128, %v121, -inf
      %133 = vmax.xlane.f32.xlu0 %v132
      %v134 = vpop.xlane.xlu0 %133
      %v135 = vsel %vm128, %v122, -inf
      %136 = vmax.xlane.f32.xlu0 %v135
      %v137 = vpop.xlane.xlu0 %136
      %v138 = vsel %vm128, %v123, -inf
      %139 = vmax.xlane.f32.xlu0 %v138
      %v140 = vpop.xlane.xlu0 %139
      %v141 = vsel %vm128, %v124, -inf
      %142 = vmax.xlane.f32.xlu0 %v141
      %v143 = vpop.xlane.xlu0 %142
      %v144 = vsel %vm128, %v125, -inf
      %145 = vmax.xlane.f32.xlu0 %v144
      %v146 = vpop.xlane.xlu0 %145
      %v147 = vsel %vm128, %v126, -inf
      %148 = vmax.xlane.f32.xlu0 %v147
      %v149 = vpop.xlane.xlu0 %148
      %v150 = vsel %vm128, %v127, -inf
      %151 = vmax.xlane.f32.xlu0 %v150
      %v152 = vpop.xlane.xlu0 %151
      %v153 = vsub.f32 %v120, %v131
      %v154 = vsub.f32 %v121, %v134
      %v155 = vsub.f32 %v122, %v137
      %v156 = vsub.f32 %v123, %v140
      %v157 = vsub.f32 %v124, %v143
      %v158 = vsub.f32 %v125, %v146
      %v159 = vsub.f32 %v126, %v149
      %v160 = vsub.f32 %v127, %v152
      %v169 = vcombine.high %v153, %v153
      %v171 = vunpack.c.l.s4 1966171168
      %v172 = vunpack.c.0.s8 %v171
      %v173 = vlaneseq
      %v174 = vshrl.u32 %v173, 7
      %v175 = vsub.s32 %v172, %v174
      %v176 = vrot.slane %v153, %v175
      %v178 = vunpack.c.l.s4 1966171168
      %v179 = vunpack.c.0.s8 %v178
      %v180 = vlaneseq
      %v181 = vshrl.u32 %v180, 7
      %v182 = vsub.s32 %v179, %v181
      %v183 = vrot.slane %v169, %v182
      %v184 = vcombine.high %v176, %v176
      %v185 = vcombine.high %v183, %v183
      %v187 = vunpack.c.l.s4 1966171168
      %v188 = vunpack.c.0.s8 %v187
      %v189 = vlaneseq
      %v190 = vshrl.u32 %v189, 7
      %v191 = vsub.s32 %v188, %v190
      %v192 = vrot.slane %v176, %v191
      %v194 = vunpack.c.l.s4 1966171168
      %v195 = vunpack.c.0.s8 %v194
      %v196 = vlaneseq
      %v197 = vshrl.u32 %v196, 7
      %v198 = vsub.s32 %v195, %v197
      %v199 = vrot.slane %v183, %v198
      %v201 = vunpack.c.l.s4 1966171168
      %v202 = vunpack.c.0.s8 %v201
      %v203 = vlaneseq
      %v204 = vshrl.u32 %v203, 7
      %v205 = vsub.s32 %v202, %v204
      %v206 = vrot.slane %v184, %v205
      %v208 = vunpack.c.l.s4 1966171168
      %v209 = vunpack.c.0.s8 %v208
      %v210 = vlaneseq
      %v211 = vshrl.u32 %v210, 7
      %v212 = vsub.s32 %v209, %v211
      %v213 = vrot.slane %v185, %v212
      %v214 = vcombine.high %v192, %v192
      %v215 = vcombine.high %v199, %v199
      %v216 = vcombine.high %v206, %v206
      %v217 = vcombine.high %v213, %v213
      %v218 = vcombine.high %v154, %v154
      %v220 = vunpack.c.l.s4 1966171168
      %v221 = vunpack.c.0.s8 %v220
      %v222 = vlaneseq
      %v223 = vshrl.u32 %v222, 7
      %v224 = vsub.s32 %v221, %v223
      %v225 = vrot.slane %v154, %v224
      %v227 = vunpack.c.l.s4 1966171168
      %v228 = vunpack.c.0.s8 %v227
      %v229 = vlaneseq
      %v230 = vshrl.u32 %v229, 7
      %v231 = vsub.s32 %v228, %v230
      %v232 = vrot.slane %v218, %v231
      %v233 = vcombine.high %v225, %v225
      %v234 = vcombine.high %v232, %v232
      %v236 = vunpack.c.l.s4 1966171168
      %v237 = vunpack.c.0.s8 %v236
      %v238 = vlaneseq
      %v239 = vshrl.u32 %v238, 7
      %v240 = vsub.s32 %v237, %v239
      %v241 = vrot.slane %v225, %v240
      %v243 = vunpack.c.l.s4 1966171168
      %v244 = vunpack.c.0.s8 %v243
      %v245 = vlaneseq
      %v246 = vshrl.u32 %v245, 7
      %v247 = vsub.s32 %v244, %v246
      %v248 = vrot.slane %v232, %v247
      %v250 = vunpack.c.l.s4 1966171168
      %v251 = vunpack.c.0.s8 %v250
      %v252 = vlaneseq
      %v253 = vshrl.u32 %v252, 7
      %v254 = vsub.s32 %v251, %v253
      %v255 = vrot.slane %v233, %v254
      %v257 = vunpack.c.l.s4 1966171168
      %v258 = vunpack.c.0.s8 %v257
      %v259 = vlaneseq
      %v260 = vshrl.u32 %v259, 7
      %v261 = vsub.s32 %v258, %v260
      %v262 = vrot.slane %v234, %v261
      %v263 = vcombine.high %v241, %v241
      %v264 = vcombine.high %v248, %v248
      %v265 = vcombine.high %v255, %v255
      %v266 = vcombine.high %v262, %v262
      %v267 = vcombine.high %v155, %v155
      %v269 = vunpack.c.l.s4 1966171168
      %v270 = vunpack.c.0.s8 %v269
      %v271 = vlaneseq
      %v272 = vshrl.u32 %v271, 7
      %v273 = vsub.s32 %v270, %v272
      %v274 = vrot.slane %v155, %v273
      %v276 = vunpack.c.l.s4 1966171168
      %v277 = vunpack.c.0.s8 %v276
      %v278 = vlaneseq
      %v279 = vshrl.u32 %v278, 7
      %v280 = vsub.s32 %v277, %v279
      %v281 = vrot.slane %v267, %v280
      %v282 = vcombine.high %v274, %v274
      %v283 = vcombine.high %v281, %v281
      %v285 = vunpack.c.l.s4 1966171168
      %v286 = vunpack.c.0.s8 %v285
      %v287 = vlaneseq
      %v288 = vshrl.u32 %v287, 7
      %v289 = vsub.s32 %v286, %v288
      %v290 = vrot.slane %v274, %v289
      %v292 = vunpack.c.l.s4 1966171168
      %v293 = vunpack.c.0.s8 %v292
      %v294 = vlaneseq
      %v295 = vshrl.u32 %v294, 7
      %v296 = vsub.s32 %v293, %v295
      %v297 = vrot.slane %v281, %v296
      %v299 = vunpack.c.l.s4 1966171168
      %v300 = vunpack.c.0.s8 %v299
      %v301 = vlaneseq
      %v302 = vshrl.u32 %v301, 7
      %v303 = vsub.s32 %v300, %v302
      %v304 = vrot.slane %v282, %v303
      %v306 = vunpack.c.l.s4 1966171168
      %v307 = vunpack.c.0.s8 %v306
      %v308 = vlaneseq
      %v309 = vshrl.u32 %v308, 7
      %v310 = vsub.s32 %v307, %v309
      %v311 = vrot.slane %v283, %v310
      %v312 = vcombine.high %v290, %v290
      %v313 = vcombine.high %v297, %v297
      %v314 = vcombine.high %v304, %v304
      %v315 = vcombine.high %v311, %v311
      %v316 = vcombine.high %v156, %v156
      %v318 = vunpack.c.l.s4 1966171168
      %v319 = vunpack.c.0.s8 %v318
      %v320 = vlaneseq
      %v321 = vshrl.u32 %v320, 7
      %v322 = vsub.s32 %v319, %v321
      %v323 = vrot.slane %v156, %v322
      %v325 = vunpack.c.l.s4 1966171168
      %v326 = vunpack.c.0.s8 %v325
      %v327 = vlaneseq
      %v328 = vshrl.u32 %v327, 7
      %v329 = vsub.s32 %v326, %v328
      %v330 = vrot.slane %v316, %v329
      %v331 = vcombine.high %v323, %v323
      %v332 = vcombine.high %v330, %v330
      %v334 = vunpack.c.l.s4 1966171168
      %v335 = vunpack.c.0.s8 %v334
      %v336 = vlaneseq
      %v337 = vshrl.u32 %v336, 7
      %v338 = vsub.s32 %v335, %v337
      %v339 = vrot.slane %v323, %v338
      %v341 = vunpack.c.l.s4 1966171168
      %v342 = vunpack.c.0.s8 %v341
      %v343 = vlaneseq
      %v344 = vshrl.u32 %v343, 7
      %v345 = vsub.s32 %v342, %v344
      %v346 = vrot.slane %v330, %v345
      %v348 = vunpack.c.l.s4 1966171168
      %v349 = vunpack.c.0.s8 %v348
      %v350 = vlaneseq
      %v351 = vshrl.u32 %v350, 7
      %v352 = vsub.s32 %v349, %v351
      %v353 = vrot.slane %v331, %v352
      %v355 = vunpack.c.l.s4 1966171168
      %v356 = vunpack.c.0.s8 %v355
      %v357 = vlaneseq
      %v358 = vshrl.u32 %v357, 7
      %v359 = vsub.s32 %v356, %v358
      %v360 = vrot.slane %v332, %v359
      %v361 = vcombine.high %v339, %v339
      %v362 = vcombine.high %v346, %v346
      %v363 = vcombine.high %v353, %v353
      %v364 = vcombine.high %v360, %v360
      %v365 = vcombine.high %v157, %v157
      %v367 = vunpack.c.l.s4 1966171168
      %v368 = vunpack.c.0.s8 %v367
      %v369 = vlaneseq
      %v370 = vshrl.u32 %v369, 7
      %v371 = vsub.s32 %v368, %v370
      %v372 = vrot.slane %v157, %v371
      %v374 = vunpack.c.l.s4 1966171168
      %v375 = vunpack.c.0.s8 %v374
      %v376 = vlaneseq
      %v377 = vshrl.u32 %v376, 7
      %v378 = vsub.s32 %v375, %v377
      %v379 = vrot.slane %v365, %v378
      %v380 = vcombine.high %v372, %v372
      %v381 = vcombine.high %v379, %v379
      %v383 = vunpack.c.l.s4 1966171168
      %v384 = vunpack.c.0.s8 %v383
      %v385 = vlaneseq
      %v386 = vshrl.u32 %v385, 7
      %v387 = vsub.s32 %v384, %v386
      %v388 = vrot.slane %v372, %v387
      %v390 = vunpack.c.l.s4 1966171168
      %v391 = vunpack.c.0.s8 %v390
      %v392 = vlaneseq
      %v393 = vshrl.u32 %v392, 7
      %v394 = vsub.s32 %v391, %v393
      %v395 = vrot.slane %v379, %v394
      %v397 = vunpack.c.l.s4 1966171168
      %v398 = vunpack.c.0.s8 %v397
      %v399 = vlaneseq
      %v400 = vshrl.u32 %v399, 7
      %v401 = vsub.s32 %v398, %v400
      %v402 = vrot.slane %v380, %v401
      %v404 = vunpack.c.l.s4 1966171168
      %v405 = vunpack.c.0.s8 %v404
      %v406 = vlaneseq
      %v407 = vshrl.u32 %v406, 7
      %v408 = vsub.s32 %v405, %v407
      %v409 = vrot.slane %v381, %v408
      %v410 = vcombine.high %v388, %v388
      %v411 = vcombine.high %v395, %v395
      %v412 = vcombine.high %v402, %v402
      %v413 = vcombine.high %v409, %v409
      %v414 = vcombine.high %v158, %v158
      %v416 = vunpack.c.l.s4 1966171168
      %v417 = vunpack.c.0.s8 %v416
      %v418 = vlaneseq
      %v419 = vshrl.u32 %v418, 7
      %v420 = vsub.s32 %v417, %v419
      %v421 = vrot.slane %v158, %v420
      %v423 = vunpack.c.l.s4 1966171168
      %v424 = vunpack.c.0.s8 %v423
      %v425 = vlaneseq
      %v426 = vshrl.u32 %v425, 7
      %v427 = vsub.s32 %v424, %v426
      %v428 = vrot.slane %v414, %v427
      %v429 = vcombine.high %v421, %v421
      %v430 = vcombine.high %v428, %v428
      %v432 = vunpack.c.l.s4 1966171168
      %v433 = vunpack.c.0.s8 %v432
      %v434 = vlaneseq
      %v435 = vshrl.u32 %v434, 7
      %v436 = vsub.s32 %v433, %v435
      %v437 = vrot.slane %v421, %v436
      %v439 = vunpack.c.l.s4 1966171168
      %v440 = vunpack.c.0.s8 %v439
      %v441 = vlaneseq
      %v442 = vshrl.u32 %v441, 7
      %v443 = vsub.s32 %v440, %v442
      %v444 = vrot.slane %v428, %v443
      %v446 = vunpack.c.l.s4 1966171168
      %v447 = vunpack.c.0.s8 %v446
      %v448 = vlaneseq
      %v449 = vshrl.u32 %v448, 7
      %v450 = vsub.s32 %v447, %v449
      %v451 = vrot.slane %v429, %v450
      %v453 = vunpack.c.l.s4 1966171168
      %v454 = vunpack.c.0.s8 %v453
      %v455 = vlaneseq
      %v456 = vshrl.u32 %v455, 7
      %v457 = vsub.s32 %v454, %v456
      %v458 = vrot.slane %v430, %v457
      %v459 = vcombine.high %v437, %v437
      %v460 = vcombine.high %v444, %v444
      %v461 = vcombine.high %v451, %v451
      %v462 = vcombine.high %v458, %v458
      %v463 = vcombine.high %v159, %v159
      %v465 = vunpack.c.l.s4 1966171168
      %v466 = vunpack.c.0.s8 %v465
      %v467 = vlaneseq
      %v468 = vshrl.u32 %v467, 7
      %v469 = vsub.s32 %v466, %v468
      %v470 = vrot.slane %v159, %v469
      %v472 = vunpack.c.l.s4 1966171168
      %v473 = vunpack.c.0.s8 %v472
      %v474 = vlaneseq
      %v475 = vshrl.u32 %v474, 7
      %v476 = vsub.s32 %v473, %v475
      %v477 = vrot.slane %v463, %v476
      %v478 = vcombine.high %v470, %v470
      %v479 = vcombine.high %v477, %v477
      %v481 = vunpack.c.l.s4 1966171168
      %v482 = vunpack.c.0.s8 %v481
      %v483 = vlaneseq
      %v484 = vshrl.u32 %v483, 7
      %v485 = vsub.s32 %v482, %v484
      %v486 = vrot.slane %v470, %v485
      %v488 = vunpack.c.l.s4 1966171168
      %v489 = vunpack.c.0.s8 %v488
      %v490 = vlaneseq
      %v491 = vshrl.u32 %v490, 7
      %v492 = vsub.s32 %v489, %v491
      %v493 = vrot.slane %v477, %v492
      %v495 = vunpack.c.l.s4 1966171168
      %v496 = vunpack.c.0.s8 %v495
      %v497 = vlaneseq
      %v498 = vshrl.u32 %v497, 7
      %v499 = vsub.s32 %v496, %v498
      %v500 = vrot.slane %v478, %v499
      %v502 = vunpack.c.l.s4 1966171168
      %v503 = vunpack.c.0.s8 %v502
      %v504 = vlaneseq
      %v505 = vshrl.u32 %v504, 7
      %v506 = vsub.s32 %v503, %v505
      %v507 = vrot.slane %v479, %v506
      %v508 = vcombine.high %v486, %v486
      %v509 = vcombine.high %v493, %v493
      %v510 = vcombine.high %v500, %v500
      %v511 = vcombine.high %v507, %v507
      %v512 = vcombine.high %v160, %v160
      %v514 = vunpack.c.l.s4 1966171168
      %v515 = vunpack.c.0.s8 %v514
      %v516 = vlaneseq
      %v517 = vshrl.u32 %v516, 7
      %v518 = vsub.s32 %v515, %v517
      %v519 = vrot.slane %v160, %v518
      %v521 = vunpack.c.l.s4 1966171168
      %v522 = vunpack.c.0.s8 %v521
      %v523 = vlaneseq
      %v524 = vshrl.u32 %v523, 7
      %v525 = vsub.s32 %v522, %v524
      %v526 = vrot.slane %v512, %v525
      %v527 = vcombine.high %v519, %v519
      %v528 = vcombine.high %v526, %v526
      %v530 = vunpack.c.l.s4 1966171168
      %v531 = vunpack.c.0.s8 %v530
      %v532 = vlaneseq
      %v533 = vshrl.u32 %v532, 7
      %v534 = vsub.s32 %v531, %v533
      %v535 = vrot.slane %v519, %v534
      %v537 = vunpack.c.l.s4 1966171168
      %v538 = vunpack.c.0.s8 %v537
      %v539 = vlaneseq
      %v540 = vshrl.u32 %v539, 7
      %v541 = vsub.s32 %v538, %v540
      %v542 = vrot.slane %v526, %v541
      %v544 = vunpack.c.l.s4 1966171168
      %v545 = vunpack.c.0.s8 %v544
      %v546 = vlaneseq
      %v547 = vshrl.u32 %v546, 7
      %v548 = vsub.s32 %v545, %v547
      %v549 = vrot.slane %v527, %v548
      %v551 = vunpack.c.l.s4 1966171168
      %v552 = vunpack.c.0.s8 %v551
      %v553 = vlaneseq
      %v554 = vshrl.u32 %v553, 7
      %v555 = vsub.s32 %v552, %v554
      %v556 = vrot.slane %v528, %v555
      %v557 = vcombine.high %v535, %v535
      %v558 = vcombine.high %v542, %v542
      %v559 = vcombine.high %v549, %v549
      %v560 = vcombine.high %v556, %v556
      %v561 = vlaneseq
      %v562 = vshrl.u32 %v561, 7
      %v563 = vsub.s32 0, %v562
      %v564 = vrot.slane %v153, %v563
      %566 = vbcast.lane.b32.xlu0 %v564, 256
      %v567 = vpop.permute.xlu0 %566
      %s569 = sor.u32 256, 8
      %570 = vbcast.lane.b32.xlu0 %v564, %s569
      %v571 = vpop.permute.xlu0 %570
      %v572 = vlaneseq
      %v573 = vshrl.u32 %v572, 7
      %v574 = vsub.s32 1, %v573
      %v575 = vrot.slane %v153, %v574
      %577 = vbcast.lane.b32.xlu0 %v575, 256
      %v578 = vpop.permute.xlu0 %577
      %s580 = sor.u32 256, 8
      %581 = vbcast.lane.b32.xlu0 %v575, %s580
      %v582 = vpop.permute.xlu0 %581
      %v583 = vlaneseq
      %v584 = vshrl.u32 %v583, 7
      %v585 = vsub.s32 2, %v584
      %v586 = vrot.slane %v153, %v585
      %588 = vbcast.lane.b32.xlu0 %v586, 256
      %v589 = vpop.permute.xlu0 %588
      %s591 = sor.u32 256, 8
      %592 = vbcast.lane.b32.xlu0 %v586, %s591
      %v593 = vpop.permute.xlu0 %592
      %v594 = vlaneseq
      %v595 = vshrl.u32 %v594, 7
      %v596 = vsub.s32 3, %v595
      %v597 = vrot.slane %v153, %v596
      %599 = vbcast.lane.b32.xlu0 %v597, 256
      %v600 = vpop.permute.xlu0 %599
      %s602 = sor.u32 256, 8
      %603 = vbcast.lane.b32.xlu0 %v597, %s602
      %v604 = vpop.permute.xlu0 %603
      %v605 = vlaneseq
      %v606 = vshrl.u32 %v605, 7
      %v607 = vsub.s32 4, %v606
      %v608 = vrot.slane %v153, %v607
      %610 = vbcast.lane.b32.xlu0 %v608, 256
      %v611 = vpop.permute.xlu0 %610
      %s613 = sor.u32 256, 8
      %614 = vbcast.lane.b32.xlu0 %v608, %s613
      %v615 = vpop.permute.xlu0 %614
      %v616 = vlaneseq
      %v617 = vshrl.u32 %v616, 7
      %v618 = vsub.s32 5, %v617
      %v619 = vrot.slane %v153, %v618
      %621 = vbcast.lane.b32.xlu0 %v619, 256
      %v622 = vpop.permute.xlu0 %621
      %s624 = sor.u32 256, 8
      %625 = vbcast.lane.b32.xlu0 %v619, %s624
      %v626 = vpop.permute.xlu0 %625
      %v627 = vlaneseq
      %v628 = vshrl.u32 %v627, 7
      %v629 = vsub.s32 6, %v628
      %v630 = vrot.slane %v153, %v629
      %632 = vbcast.lane.b32.xlu0 %v630, 256
      %v633 = vpop.permute.xlu0 %632
      %s635 = sor.u32 256, 8
      %636 = vbcast.lane.b32.xlu0 %v630, %s635
      %v637 = vpop.permute.xlu0 %636
      %v638 = vlaneseq
      %v639 = vshrl.u32 %v638, 7
      %v640 = vsub.s32 7, %v639
      %v641 = vrot.slane %v153, %v640
      %643 = vbcast.lane.b32.xlu0 %v641, 256
      %v644 = vpop.permute.xlu0 %643
      %s646 = sor.u32 256, 8
      %647 = vbcast.lane.b32.xlu0 %v641, %s646
      %v648 = vpop.permute.xlu0 %647
      %v649 = vlaneseq
      %v650 = vshrl.u32 %v649, 7
      %v651 = vsub.s32 0, %v650
      %v652 = vrot.slane %v154, %v651
      %654 = vbcast.lane.b32.xlu0 %v652, 256
      %v655 = vpop.permute.xlu0 %654
      %s657 = sor.u32 256, 8
      %658 = vbcast.lane.b32.xlu0 %v652, %s657
      %v659 = vpop.permute.xlu0 %658
      %v660 = vlaneseq
      %v661 = vshrl.u32 %v660, 7
      %v662 = vsub.s32 1, %v661
      %v663 = vrot.slane %v154, %v662
      %665 = vbcast.lane.b32.xlu0 %v663, 256
      %v666 = vpop.permute.xlu0 %665
      %s668 = sor.u32 256, 8
      %669 = vbcast.lane.b32.xlu0 %v663, %s668
      %v670 = vpop.permute.xlu0 %669
      %v671 = vlaneseq
      %v672 = vshrl.u32 %v671, 7
      %v673 = vsub.s32 2, %v672
      %v674 = vrot.slane %v154, %v673
      %676 = vbcast.lane.b32.xlu0 %v674, 256
      %v677 = vpop.permute.xlu0 %676
      %s679 = sor.u32 256, 8
      %680 = vbcast.lane.b32.xlu0 %v674, %s679
      %v681 = vpop.permute.xlu0 %680
      %v682 = vlaneseq
      %v683 = vshrl.u32 %v682, 7
      %v684 = vsub.s32 3, %v683
      %v685 = vrot.slane %v154, %v684
      %687 = vbcast.lane.b32.xlu0 %v685, 256
      %v688 = vpop.permute.xlu0 %687
      %s690 = sor.u32 256, 8
      %691 = vbcast.lane.b32.xlu0 %v685, %s690
      %v692 = vpop.permute.xlu0 %691
      %v693 = vlaneseq
      %v694 = vshrl.u32 %v693, 7
      %v695 = vsub.s32 4, %v694
      %v696 = vrot.slane %v154, %v695
      %698 = vbcast.lane.b32.xlu0 %v696, 256
      %v699 = vpop.permute.xlu0 %698
      %s701 = sor.u32 256, 8
      %702 = vbcast.lane.b32.xlu0 %v696, %s701
      %v703 = vpop.permute.xlu0 %702
      %v704 = vlaneseq
      %v705 = vshrl.u32 %v704, 7
      %v706 = vsub.s32 5, %v705
      %v707 = vrot.slane %v154, %v706
      %709 = vbcast.lane.b32.xlu0 %v707, 256
      %v710 = vpop.permute.xlu0 %709
      %s712 = sor.u32 256, 8
      %713 = vbcast.lane.b32.xlu0 %v707, %s712
      %v714 = vpop.permute.xlu0 %713
      %v715 = vlaneseq
      %v716 = vshrl.u32 %v715, 7
      %v717 = vsub.s32 6, %v716
      %v718 = vrot.slane %v154, %v717
      %720 = vbcast.lane.b32.xlu0 %v718, 256
      %v721 = vpop.permute.xlu0 %720
      %s723 = sor.u32 256, 8
      %724 = vbcast.lane.b32.xlu0 %v718, %s723
      %v725 = vpop.permute.xlu0 %724
      %v726 = vlaneseq
      %v727 = vshrl.u32 %v726, 7
      %v728 = vsub.s32 7, %v727
      %v729 = vrot.slane %v154, %v728
      %731 = vbcast.lane.b32.xlu0 %v729, 256
      %v732 = vpop.permute.xlu0 %731
      %s734 = sor.u32 256, 8
      %735 = vbcast.lane.b32.xlu0 %v729, %s734
      %v736 = vpop.permute.xlu0 %735
      %v737 = vlaneseq
      %v738 = vshrl.u32 %v737, 7
      %v739 = vsub.s32 0, %v738
      %v740 = vrot.slane %v155, %v739
      %742 = vbcast.lane.b32.xlu0 %v740, 256
      %v743 = vpop.permute.xlu0 %742
      %s745 = sor.u32 256, 8
      %746 = vbcast.lane.b32.xlu0 %v740, %s745
      %v747 = vpop.permute.xlu0 %746
      %v748 = vlaneseq
      %v749 = vshrl.u32 %v748, 7
      %v750 = vsub.s32 1, %v749
      %v751 = vrot.slane %v155, %v750
      %753 = vbcast.lane.b32.xlu0 %v751, 256
      %v754 = vpop.permute.xlu0 %753
      %s756 = sor.u32 256, 8
      %757 = vbcast.lane.b32.xlu0 %v751, %s756
      %v758 = vpop.permute.xlu0 %757
      %v759 = vlaneseq
      %v760 = vshrl.u32 %v759, 7
      %v761 = vsub.s32 2, %v760
      %v762 = vrot.slane %v155, %v761
      %764 = vbcast.lane.b32.xlu0 %v762, 256
      %v765 = vpop.permute.xlu0 %764
      %s767 = sor.u32 256, 8
      %768 = vbcast.lane.b32.xlu0 %v762, %s767
      %v769 = vpop.permute.xlu0 %768
      %v770 = vlaneseq
      %v771 = vshrl.u32 %v770, 7
      %v772 = vsub.s32 3, %v771
      %v773 = vrot.slane %v155, %v772
      %775 = vbcast.lane.b32.xlu0 %v773, 256
      %v776 = vpop.permute.xlu0 %775
      %s778 = sor.u32 256, 8
      %779 = vbcast.lane.b32.xlu0 %v773, %s778
      %v780 = vpop.permute.xlu0 %779
      %v781 = vlaneseq
      %v782 = vshrl.u32 %v781, 7
      %v783 = vsub.s32 4, %v782
      %v784 = vrot.slane %v155, %v783
      %786 = vbcast.lane.b32.xlu0 %v784, 256
      %v787 = vpop.permute.xlu0 %786
      %s789 = sor.u32 256, 8
      %790 = vbcast.lane.b32.xlu0 %v784, %s789
      %v791 = vpop.permute.xlu0 %790
      %v792 = vlaneseq
      %v793 = vshrl.u32 %v792, 7
      %v794 = vsub.s32 5, %v793
      %v795 = vrot.slane %v155, %v794
      %797 = vbcast.lane.b32.xlu0 %v795, 256
      %v798 = vpop.permute.xlu0 %797
      %s800 = sor.u32 256, 8
      %801 = vbcast.lane.b32.xlu0 %v795, %s800
      %v802 = vpop.permute.xlu0 %801
      %v803 = vlaneseq
      %v804 = vshrl.u32 %v803, 7
      %v805 = vsub.s32 6, %v804
      %v806 = vrot.slane %v155, %v805
      %808 = vbcast.lane.b32.xlu0 %v806, 256
      %v809 = vpop.permute.xlu0 %808
      %s811 = sor.u32 256, 8
      %812 = vbcast.lane.b32.xlu0 %v806, %s811
      %v813 = vpop.permute.xlu0 %812
      %v814 = vlaneseq
      %v815 = vshrl.u32 %v814, 7
      %v816 = vsub.s32 7, %v815
      %v817 = vrot.slane %v155, %v816
      %819 = vbcast.lane.b32.xlu0 %v817, 256
      %v820 = vpop.permute.xlu0 %819
      %s822 = sor.u32 256, 8
      %823 = vbcast.lane.b32.xlu0 %v817, %s822
      %v824 = vpop.permute.xlu0 %823
      %v825 = vlaneseq
      %v826 = vshrl.u32 %v825, 7
      %v827 = vsub.s32 0, %v826
      %v828 = vrot.slane %v156, %v827
      %830 = vbcast.lane.b32.xlu0 %v828, 256
      %v831 = vpop.permute.xlu0 %830
      %s833 = sor.u32 256, 8
      %834 = vbcast.lane.b32.xlu0 %v828, %s833
      %v835 = vpop.permute.xlu0 %834
      %v836 = vlaneseq
      %v837 = vshrl.u32 %v836, 7
      %v838 = vsub.s32 1, %v837
      %v839 = vrot.slane %v156, %v838
      %841 = vbcast.lane.b32.xlu0 %v839, 256
      %v842 = vpop.permute.xlu0 %841
      %s844 = sor.u32 256, 8
      %845 = vbcast.lane.b32.xlu0 %v839, %s844
      %v846 = vpop.permute.xlu0 %845
      %v847 = vlaneseq
      %v848 = vshrl.u32 %v847, 7
      %v849 = vsub.s32 2, %v848
      %v850 = vrot.slane %v156, %v849
      %852 = vbcast.lane.b32.xlu0 %v850, 256
      %v853 = vpop.permute.xlu0 %852
      %s855 = sor.u32 256, 8
      %856 = vbcast.lane.b32.xlu0 %v850, %s855
      %v857 = vpop.permute.xlu0 %856
      %v858 = vlaneseq
      %v859 = vshrl.u32 %v858, 7
      %v860 = vsub.s32 3, %v859
      %v861 = vrot.slane %v156, %v860
      %863 = vbcast.lane.b32.xlu0 %v861, 256
      %v864 = vpop.permute.xlu0 %863
      %s866 = sor.u32 256, 8
      %867 = vbcast.lane.b32.xlu0 %v861, %s866
      %v868 = vpop.permute.xlu0 %867
      %v869 = vlaneseq
      %v870 = vshrl.u32 %v869, 7
      %v871 = vsub.s32 4, %v870
      %v872 = vrot.slane %v156, %v871
      %874 = vbcast.lane.b32.xlu0 %v872, 256
      %v875 = vpop.permute.xlu0 %874
      %s877 = sor.u32 256, 8
      %878 = vbcast.lane.b32.xlu0 %v872, %s877
      %v879 = vpop.permute.xlu0 %878
      %v880 = vlaneseq
      %v881 = vshrl.u32 %v880, 7
      %v882 = vsub.s32 5, %v881
      %v883 = vrot.slane %v156, %v882
      %885 = vbcast.lane.b32.xlu0 %v883, 256
      %v886 = vpop.permute.xlu0 %885
      %s888 = sor.u32 256, 8
      %889 = vbcast.lane.b32.xlu0 %v883, %s888
      %v890 = vpop.permute.xlu0 %889
      %v891 = vlaneseq
      %v892 = vshrl.u32 %v891, 7
      %v893 = vsub.s32 6, %v892
      %v894 = vrot.slane %v156, %v893
      %896 = vbcast.lane.b32.xlu0 %v894, 256
      %v897 = vpop.permute.xlu0 %896
      %s899 = sor.u32 256, 8
      %900 = vbcast.lane.b32.xlu0 %v894, %s899
      %v901 = vpop.permute.xlu0 %900
      %v902 = vlaneseq
      %v903 = vshrl.u32 %v902, 7
      %v904 = vsub.s32 7, %v903
      %v905 = vrot.slane %v156, %v904
      %907 = vbcast.lane.b32.xlu0 %v905, 256
      %v908 = vpop.permute.xlu0 %907
      %s910 = sor.u32 256, 8
      %911 = vbcast.lane.b32.xlu0 %v905, %s910
      %v912 = vpop.permute.xlu0 %911
      %v913 = vlaneseq
      %v914 = vshrl.u32 %v913, 7
      %v915 = vsub.s32 0, %v914
      %v916 = vrot.slane %v157, %v915
      %918 = vbcast.lane.b32.xlu0 %v916, 256
      %v919 = vpop.permute.xlu0 %918
      %s921 = sor.u32 256, 8
      %922 = vbcast.lane.b32.xlu0 %v916, %s921
      %v923 = vpop.permute.xlu0 %922
      %v924 = vlaneseq
      %v925 = vshrl.u32 %v924, 7
      %v926 = vsub.s32 1, %v925
      %v927 = vrot.slane %v157, %v926
      %929 = vbcast.lane.b32.xlu0 %v927, 256
      %v930 = vpop.permute.xlu0 %929
      %s932 = sor.u32 256, 8
      %933 = vbcast.lane.b32.xlu0 %v927, %s932
      %v934 = vpop.permute.xlu0 %933
      %v935 = vlaneseq
      %v936 = vshrl.u32 %v935, 7
      %v937 = vsub.s32 2, %v936
      %v938 = vrot.slane %v157, %v937
      %940 = vbcast.lane.b32.xlu0 %v938, 256
      %v941 = vpop.permute.xlu0 %940
      %s943 = sor.u32 256, 8
      %944 = vbcast.lane.b32.xlu0 %v938, %s943
      %v945 = vpop.permute.xlu0 %944
      %v946 = vlaneseq
      %v947 = vshrl.u32 %v946, 7
      %v948 = vsub.s32 3, %v947
      %v949 = vrot.slane %v157, %v948
      %951 = vbcast.lane.b32.xlu0 %v949, 256
      %v952 = vpop.permute.xlu0 %951
      %s954 = sor.u32 256, 8
      %955 = vbcast.lane.b32.xlu0 %v949, %s954
      %v956 = vpop.permute.xlu0 %955
      %v957 = vlaneseq
      %v958 = vshrl.u32 %v957, 7
      %v959 = vsub.s32 4, %v958
      %v960 = vrot.slane %v157, %v959
      %962 = vbcast.lane.b32.xlu0 %v960, 256
      %v963 = vpop.permute.xlu0 %962
      %s965 = sor.u32 256, 8
      %966 = vbcast.lane.b32.xlu0 %v960, %s965
      %v967 = vpop.permute.xlu0 %966
      %v968 = vlaneseq
      %v969 = vshrl.u32 %v968, 7
      %v970 = vsub.s32 5, %v969
      %v971 = vrot.slane %v157, %v970
      %973 = vbcast.lane.b32.xlu0 %v971, 256
      %v974 = vpop.permute.xlu0 %973
      %s976 = sor.u32 256, 8
      %977 = vbcast.lane.b32.xlu0 %v971, %s976
      %v978 = vpop.permute.xlu0 %977
      %v979 = vlaneseq
      %v980 = vshrl.u32 %v979, 7
      %v981 = vsub.s32 6, %v980
      %v982 = vrot.slane %v157, %v981
      %984 = vbcast.lane.b32.xlu0 %v982, 256
      %v985 = vpop.permute.xlu0 %984
      %s987 = sor.u32 256, 8
      %988 = vbcast.lane.b32.xlu0 %v982, %s987
      %v989 = vpop.permute.xlu0 %988
      %v990 = vlaneseq
      %v991 = vshrl.u32 %v990, 7
      %v992 = vsub.s32 7, %v991
      %v993 = vrot.slane %v157, %v992
      %995 = vbcast.lane.b32.xlu0 %v993, 256
      %v996 = vpop.permute.xlu0 %995
      %s998 = sor.u32 256, 8
      %999 = vbcast.lane.b32.xlu0 %v993, %s998
      %v1000 = vpop.permute.xlu0 %999
      %v1001 = vlaneseq
      %v1002 = vshrl.u32 %v1001, 7
      %v1003 = vsub.s32 0, %v1002
      %v1004 = vrot.slane %v158, %v1003
      %1006 = vbcast.lane.b32.xlu0 %v1004, 256
      %v1007 = vpop.permute.xlu0 %1006
      %s1009 = sor.u32 256, 8
      %1010 = vbcast.lane.b32.xlu0 %v1004, %s1009
      %v1011 = vpop.permute.xlu0 %1010
      %v1012 = vlaneseq
      %v1013 = vshrl.u32 %v1012, 7
      %v1014 = vsub.s32 1, %v1013
      %v1015 = vrot.slane %v158, %v1014
      %1017 = vbcast.lane.b32.xlu0 %v1015, 256
      %v1018 = vpop.permute.xlu0 %1017
      %s1020 = sor.u32 256, 8
      %1021 = vbcast.lane.b32.xlu0 %v1015, %s1020
      %v1022 = vpop.permute.xlu0 %1021
      %v1023 = vlaneseq
      %v1024 = vshrl.u32 %v1023, 7
      %v1025 = vsub.s32 2, %v1024
      %v1026 = vrot.slane %v158, %v1025
      %1028 = vbcast.lane.b32.xlu0 %v1026, 256
      %v1029 = vpop.permute.xlu0 %1028
      %s1031 = sor.u32 256, 8
      %1032 = vbcast.lane.b32.xlu0 %v1026, %s1031
      %v1033 = vpop.permute.xlu0 %1032
      %v1034 = vlaneseq
      %v1035 = vshrl.u32 %v1034, 7
      %v1036 = vsub.s32 3, %v1035
      %v1037 = vrot.slane %v158, %v1036
      %1039 = vbcast.lane.b32.xlu0 %v1037, 256
      %v1040 = vpop.permute.xlu0 %1039
      %s1042 = sor.u32 256, 8
      %1043 = vbcast.lane.b32.xlu0 %v1037, %s1042
      %v1044 = vpop.permute.xlu0 %1043
      %v1045 = vlaneseq
      %v1046 = vshrl.u32 %v1045, 7
      %v1047 = vsub.s32 4, %v1046
      %v1048 = vrot.slane %v158, %v1047
      %1050 = vbcast.lane.b32.xlu0 %v1048, 256
      %v1051 = vpop.permute.xlu0 %1050
      %s1053 = sor.u32 256, 8
      %1054 = vbcast.lane.b32.xlu0 %v1048, %s1053
      %v1055 = vpop.permute.xlu0 %1054
      %v1056 = vlaneseq
      %v1057 = vshrl.u32 %v1056, 7
      %v1058 = vsub.s32 5, %v1057
      %v1059 = vrot.slane %v158, %v1058
      %1061 = vbcast.lane.b32.xlu0 %v1059, 256
      %v1062 = vpop.permute.xlu0 %1061
      %s1064 = sor.u32 256, 8
      %1065 = vbcast.lane.b32.xlu0 %v1059, %s1064
      %v1066 = vpop.permute.xlu0 %1065
      %v1067 = vlaneseq
      %v1068 = vshrl.u32 %v1067, 7
      %v1069 = vsub.s32 6, %v1068
      %v1070 = vrot.slane %v158, %v1069
      %1072 = vbcast.lane.b32.xlu0 %v1070, 256
      %v1073 = vpop.permute.xlu0 %1072
      %s1075 = sor.u32 256, 8
      %1076 = vbcast.lane.b32.xlu0 %v1070, %s1075
      %v1077 = vpop.permute.xlu0 %1076
      %v1078 = vlaneseq
      %v1079 = vshrl.u32 %v1078, 7
      %v1080 = vsub.s32 7, %v1079
      %v1081 = vrot.slane %v158, %v1080
      %1083 = vbcast.lane.b32.xlu0 %v1081, 256
      %v1084 = vpop.permute.xlu0 %1083
      %s1086 = sor.u32 256, 8
      %1087 = vbcast.lane.b32.xlu0 %v1081, %s1086
      %v1088 = vpop.permute.xlu0 %1087
      %v1089 = vlaneseq
      %v1090 = vshrl.u32 %v1089, 7
      %v1091 = vsub.s32 0, %v1090
      %v1092 = vrot.slane %v159, %v1091
      %1094 = vbcast.lane.b32.xlu0 %v1092, 256
      %v1095 = vpop.permute.xlu0 %1094
      %s1097 = sor.u32 256, 8
      %1098 = vbcast.lane.b32.xlu0 %v1092, %s1097
      %v1099 = vpop.permute.xlu0 %1098
      %v1100 = vlaneseq
      %v1101 = vshrl.u32 %v1100, 7
      %v1102 = vsub.s32 1, %v1101
      %v1103 = vrot.slane %v159, %v1102
      %1105 = vbcast.lane.b32.xlu0 %v1103, 256
      %v1106 = vpop.permute.xlu0 %1105
      %s1108 = sor.u32 256, 8
      %1109 = vbcast.lane.b32.xlu0 %v1103, %s1108
      %v1110 = vpop.permute.xlu0 %1109
      %v1111 = vlaneseq
      %v1112 = vshrl.u32 %v1111, 7
      %v1113 = vsub.s32 2, %v1112
      %v1114 = vrot.slane %v159, %v1113
      %1116 = vbcast.lane.b32.xlu0 %v1114, 256
      %v1117 = vpop.permute.xlu0 %1116
      %s1119 = sor.u32 256, 8
      %1120 = vbcast.lane.b32.xlu0 %v1114, %s1119
      %v1121 = vpop.permute.xlu0 %1120
      %v1122 = vlaneseq
      %v1123 = vshrl.u32 %v1122, 7
      %v1124 = vsub.s32 3, %v1123
      %v1125 = vrot.slane %v159, %v1124
      %1127 = vbcast.lane.b32.xlu0 %v1125, 256
      %v1128 = vpop.permute.xlu0 %1127
      %s1130 = sor.u32 256, 8
      %1131 = vbcast.lane.b32.xlu0 %v1125, %s1130
      %v1132 = vpop.permute.xlu0 %1131
      %v1133 = vlaneseq
      %v1134 = vshrl.u32 %v1133, 7
      %v1135 = vsub.s32 4, %v1134
      %v1136 = vrot.slane %v159, %v1135
      %1138 = vbcast.lane.b32.xlu0 %v1136, 256
      %v1139 = vpop.permute.xlu0 %1138
      %s1141 = sor.u32 256, 8
      %1142 = vbcast.lane.b32.xlu0 %v1136, %s1141
      %v1143 = vpop.permute.xlu0 %1142
      %v1144 = vlaneseq
      %v1145 = vshrl.u32 %v1144, 7
      %v1146 = vsub.s32 5, %v1145
      %v1147 = vrot.slane %v159, %v1146
      %1149 = vbcast.lane.b32.xlu0 %v1147, 256
      %v1150 = vpop.permute.xlu0 %1149
      %s1152 = sor.u32 256, 8
      %1153 = vbcast.lane.b32.xlu0 %v1147, %s1152
      %v1154 = vpop.permute.xlu0 %1153
      %v1155 = vlaneseq
      %v1156 = vshrl.u32 %v1155, 7
      %v1157 = vsub.s32 6, %v1156
      %v1158 = vrot.slane %v159, %v1157
      %1160 = vbcast.lane.b32.xlu0 %v1158, 256
      %v1161 = vpop.permute.xlu0 %1160
      %s1163 = sor.u32 256, 8
      %1164 = vbcast.lane.b32.xlu0 %v1158, %s1163
      %v1165 = vpop.permute.xlu0 %1164
      %v1166 = vlaneseq
      %v1167 = vshrl.u32 %v1166, 7
      %v1168 = vsub.s32 7, %v1167
      %v1169 = vrot.slane %v159, %v1168
      %1171 = vbcast.lane.b32.xlu0 %v1169, 256
      %v1172 = vpop.permute.xlu0 %1171
      %s1174 = sor.u32 256, 8
      %1175 = vbcast.lane.b32.xlu0 %v1169, %s1174
      %v1176 = vpop.permute.xlu0 %1175
      %v1177 = vlaneseq
      %v1178 = vshrl.u32 %v1177, 7
      %v1179 = vsub.s32 0, %v1178
      %v1180 = vrot.slane %v160, %v1179
      %1182 = vbcast.lane.b32.xlu0 %v1180, 256
      %v1183 = vpop.permute.xlu0 %1182
      %s1185 = sor.u32 256, 8
      %1186 = vbcast.lane.b32.xlu0 %v1180, %s1185
      %v1187 = vpop.permute.xlu0 %1186
      %v1188 = vlaneseq
      %v1189 = vshrl.u32 %v1188, 7
      %v1190 = vsub.s32 1, %v1189
      %v1191 = vrot.slane %v160, %v1190
      %1193 = vbcast.lane.b32.xlu0 %v1191, 256
      %v1194 = vpop.permute.xlu0 %1193
      %s1196 = sor.u32 256, 8
      %1197 = vbcast.lane.b32.xlu0 %v1191, %s1196
      %v1198 = vpop.permute.xlu0 %1197
      %v1199 = vlaneseq
      %v1200 = vshrl.u32 %v1199, 7
      %v1201 = vsub.s32 2, %v1200
      %v1202 = vrot.slane %v160, %v1201
      %1204 = vbcast.lane.b32.xlu0 %v1202, 256
      %v1205 = vpop.permute.xlu0 %1204
      %s1207 = sor.u32 256, 8
      %1208 = vbcast.lane.b32.xlu0 %v1202, %s1207
      %v1209 = vpop.permute.xlu0 %1208
      %v1210 = vlaneseq
      %v1211 = vshrl.u32 %v1210, 7
      %v1212 = vsub.s32 3, %v1211
      %v1213 = vrot.slane %v160, %v1212
      %1215 = vbcast.lane.b32.xlu0 %v1213, 256
      %v1216 = vpop.permute.xlu0 %1215
      %s1218 = sor.u32 256, 8
      %1219 = vbcast.lane.b32.xlu0 %v1213, %s1218
      %v1220 = vpop.permute.xlu0 %1219
      %v1221 = vlaneseq
      %v1222 = vshrl.u32 %v1221, 7
      %v1223 = vsub.s32 4, %v1222
      %v1224 = vrot.slane %v160, %v1223
      %1226 = vbcast.lane.b32.xlu0 %v1224, 256
      %v1227 = vpop.permute.xlu0 %1226
      %s1229 = sor.u32 256, 8
      %1230 = vbcast.lane.b32.xlu0 %v1224, %s1229
      %v1231 = vpop.permute.xlu0 %1230
      %v1232 = vlaneseq
      %v1233 = vshrl.u32 %v1232, 7
      %v1234 = vsub.s32 5, %v1233
      %v1235 = vrot.slane %v160, %v1234
      %1237 = vbcast.lane.b32.xlu0 %v1235, 256
      %v1238 = vpop.permute.xlu0 %1237
      %s1240 = sor.u32 256, 8
      %1241 = vbcast.lane.b32.xlu0 %v1235, %s1240
      %v1242 = vpop.permute.xlu0 %1241
      %v1243 = vlaneseq
      %v1244 = vshrl.u32 %v1243, 7
      %v1245 = vsub.s32 6, %v1244
      %v1246 = vrot.slane %v160, %v1245
      %1248 = vbcast.lane.b32.xlu0 %v1246, 256
      %v1249 = vpop.permute.xlu0 %1248
      %s1251 = sor.u32 256, 8
      %1252 = vbcast.lane.b32.xlu0 %v1246, %s1251
      %v1253 = vpop.permute.xlu0 %1252
      %v1254 = vlaneseq
      %v1255 = vshrl.u32 %v1254, 7
      %v1256 = vsub.s32 7, %v1255
      %v1257 = vrot.slane %v160, %v1256
      %1259 = vbcast.lane.b32.xlu0 %v1257, 256
      %v1260 = vpop.permute.xlu0 %1259
      %s1262 = sor.u32 256, 8
      %1263 = vbcast.lane.b32.xlu0 %v1257, %s1262
      %v1264 = vpop.permute.xlu0 %1263
      %v1265 = vlaneseq
      %v1266 = vshrl.u32 %v1265, 7
      %v1267 = vsub.s32 0, %v1266
      %v1268 = vrot.slane %v192, %v1267
      %v1269 = vlaneseq
      %v1270 = vshrl.u32 %v1269, 7
      %v1271 = vsub.s32 0, %v1270
      %v1272 = vrot.slane %v206, %v1271
      %v1273 = vlaneseq
      %v1274 = vshrl.u32 %v1273, 7
      %v1275 = vsub.s32 0, %v1274
      %v1276 = vrot.slane %v214, %v1275
      %v1277 = vlaneseq
      %v1278 = vshrl.u32 %v1277, 7
      %v1279 = vsub.s32 0, %v1278
      %v1280 = vrot.slane %v216, %v1279
      %v1281 = vlaneseq
      %v1282 = vshrl.u32 %v1281, 7
      %v1283 = vsub.s32 0, %v1282
      %v1284 = vrot.slane %v199, %v1283
      %v1285 = vlaneseq
      %v1286 = vshrl.u32 %v1285, 7
      %v1287 = vsub.s32 0, %v1286
      %v1288 = vrot.slane %v213, %v1287
      %v1289 = vlaneseq
      %v1290 = vshrl.u32 %v1289, 7
      %v1291 = vsub.s32 0, %v1290
      %v1292 = vrot.slane %v215, %v1291
      %v1293 = vlaneseq
      %v1294 = vshrl.u32 %v1293, 7
      %v1295 = vsub.s32 0, %v1294
      %v1296 = vrot.slane %v217, %v1295
      %v1297 = vlaneseq
      %v1298 = vshrl.u32 %v1297, 7
      %v1299 = vsub.s32 0, %v1298
      %v1300 = vrot.slane %v241, %v1299
      %v1301 = vlaneseq
      %v1302 = vshrl.u32 %v1301, 7
      %v1303 = vsub.s32 0, %v1302
      %v1304 = vrot.slane %v255, %v1303
      %v1305 = vlaneseq
      %v1306 = vshrl.u32 %v1305, 7
      %v1307 = vsub.s32 0, %v1306
      %v1308 = vrot.slane %v263, %v1307
      %v1309 = vlaneseq
      %v1310 = vshrl.u32 %v1309, 7
      %v1311 = vsub.s32 0, %v1310
      %v1312 = vrot.slane %v265, %v1311
      %v1313 = vlaneseq
      %v1314 = vshrl.u32 %v1313, 7
      %v1315 = vsub.s32 0, %v1314
      %v1316 = vrot.slane %v248, %v1315
      %v1317 = vlaneseq
      %v1318 = vshrl.u32 %v1317, 7
      %v1319 = vsub.s32 0, %v1318
      %v1320 = vrot.slane %v262, %v1319
      %v1321 = vlaneseq
      %v1322 = vshrl.u32 %v1321, 7
      %v1323 = vsub.s32 0, %v1322
      %v1324 = vrot.slane %v264, %v1323
      %v1325 = vlaneseq
      %v1326 = vshrl.u32 %v1325, 7
      %v1327 = vsub.s32 0, %v1326
      %v1328 = vrot.slane %v266, %v1327
      %v1329 = vlaneseq
      %v1330 = vshrl.u32 %v1329, 7
      %v1331 = vsub.s32 0, %v1330
      %v1332 = vrot.slane %v290, %v1331
      %v1333 = vlaneseq
      %v1334 = vshrl.u32 %v1333, 7
      %v1335 = vsub.s32 0, %v1334
      %v1336 = vrot.slane %v304, %v1335
      %v1337 = vlaneseq
      %v1338 = vshrl.u32 %v1337, 7
      %v1339 = vsub.s32 0, %v1338
      %v1340 = vrot.slane %v312, %v1339
      %v1341 = vlaneseq
      %v1342 = vshrl.u32 %v1341, 7
      %v1343 = vsub.s32 0, %v1342
      %v1344 = vrot.slane %v314, %v1343
      %v1345 = vlaneseq
      %v1346 = vshrl.u32 %v1345, 7
      %v1347 = vsub.s32 0, %v1346
      %v1348 = vrot.slane %v297, %v1347
      %v1349 = vlaneseq
      %v1350 = vshrl.u32 %v1349, 7
      %v1351 = vsub.s32 0, %v1350
      %v1352 = vrot.slane %v311, %v1351
      %v1353 = vlaneseq
      %v1354 = vshrl.u32 %v1353, 7
      %v1355 = vsub.s32 0, %v1354
      %v1356 = vrot.slane %v313, %v1355
      %v1357 = vlaneseq
      %v1358 = vshrl.u32 %v1357, 7
      %v1359 = vsub.s32 0, %v1358
      %v1360 = vrot.slane %v315, %v1359
      %v1361 = vlaneseq
      %v1362 = vshrl.u32 %v1361, 7
      %v1363 = vsub.s32 0, %v1362
      %v1364 = vrot.slane %v339, %v1363
      %v1365 = vlaneseq
      %v1366 = vshrl.u32 %v1365, 7
      %v1367 = vsub.s32 0, %v1366
      %v1368 = vrot.slane %v353, %v1367
      %v1369 = vlaneseq
      %v1370 = vshrl.u32 %v1369, 7
      %v1371 = vsub.s32 0, %v1370
      %v1372 = vrot.slane %v361, %v1371
      %v1373 = vlaneseq
      %v1374 = vshrl.u32 %v1373, 7
      %v1375 = vsub.s32 0, %v1374
      %v1376 = vrot.slane %v363, %v1375
      %v1377 = vlaneseq
      %v1378 = vshrl.u32 %v1377, 7
      %v1379 = vsub.s32 0, %v1378
      %v1380 = vrot.slane %v346, %v1379
      %v1381 = vlaneseq
      %v1382 = vshrl.u32 %v1381, 7
      %v1383 = vsub.s32 0, %v1382
      %v1384 = vrot.slane %v360, %v1383
      %v1385 = vlaneseq
      %v1386 = vshrl.u32 %v1385, 7
      %v1387 = vsub.s32 0, %v1386
      %v1388 = vrot.slane %v362, %v1387
      %v1389 = vlaneseq
      %v1390 = vshrl.u32 %v1389, 7
      %v1391 = vsub.s32 0, %v1390
      %v1392 = vrot.slane %v364, %v1391
      %v1393 = vlaneseq
      %v1394 = vshrl.u32 %v1393, 7
      %v1395 = vsub.s32 0, %v1394
      %v1396 = vrot.slane %v388, %v1395
      %v1397 = vlaneseq
      %v1398 = vshrl.u32 %v1397, 7
      %v1399 = vsub.s32 0, %v1398
      %v1400 = vrot.slane %v402, %v1399
      %v1401 = vlaneseq
      %v1402 = vshrl.u32 %v1401, 7
      %v1403 = vsub.s32 0, %v1402
      %v1404 = vrot.slane %v410, %v1403
      %v1405 = vlaneseq
      %v1406 = vshrl.u32 %v1405, 7
      %v1407 = vsub.s32 0, %v1406
      %v1408 = vrot.slane %v412, %v1407
      %v1409 = vlaneseq
      %v1410 = vshrl.u32 %v1409, 7
      %v1411 = vsub.s32 0, %v1410
      %v1412 = vrot.slane %v395, %v1411
      %v1413 = vlaneseq
      %v1414 = vshrl.u32 %v1413, 7
      %v1415 = vsub.s32 0, %v1414
      %v1416 = vrot.slane %v409, %v1415
      %v1417 = vlaneseq
      %v1418 = vshrl.u32 %v1417, 7
      %v1419 = vsub.s32 0, %v1418
      %v1420 = vrot.slane %v411, %v1419
      %v1421 = vlaneseq
      %v1422 = vshrl.u32 %v1421, 7
      %v1423 = vsub.s32 0, %v1422
      %v1424 = vrot.slane %v413, %v1423
      %v1425 = vlaneseq
      %v1426 = vshrl.u32 %v1425, 7
      %v1427 = vsub.s32 0, %v1426
      %v1428 = vrot.slane %v437, %v1427
      %v1429 = vlaneseq
      %v1430 = vshrl.u32 %v1429, 7
      %v1431 = vsub.s32 0, %v1430
      %v1432 = vrot.slane %v451, %v1431
      %v1433 = vlaneseq
      %v1434 = vshrl.u32 %v1433, 7
      %v1435 = vsub.s32 0, %v1434
      %v1436 = vrot.slane %v459, %v1435
      %v1437 = vlaneseq
      %v1438 = vshrl.u32 %v1437, 7
      %v1439 = vsub.s32 0, %v1438
      %v1440 = vrot.slane %v461, %v1439
      %v1441 = vlaneseq
      %v1442 = vshrl.u32 %v1441, 7
      %v1443 = vsub.s32 0, %v1442
      %v1444 = vrot.slane %v444, %v1443
      %v1445 = vlaneseq
      %v1446 = vshrl.u32 %v1445, 7
      %v1447 = vsub.s32 0, %v1446
      %v1448 = vrot.slane %v458, %v1447
      %v1449 = vlaneseq
      %v1450 = vshrl.u32 %v1449, 7
      %v1451 = vsub.s32 0, %v1450
      %v1452 = vrot.slane %v460, %v1451
      %v1453 = vlaneseq
      %v1454 = vshrl.u32 %v1453, 7
      %v1455 = vsub.s32 0, %v1454
      %v1456 = vrot.slane %v462, %v1455
      %v1457 = vlaneseq
      %v1458 = vshrl.u32 %v1457, 7
      %v1459 = vsub.s32 0, %v1458
      %v1460 = vrot.slane %v486, %v1459
      %v1461 = vlaneseq
      %v1462 = vshrl.u32 %v1461, 7
      %v1463 = vsub.s32 0, %v1462
      %v1464 = vrot.slane %v500, %v1463
      %v1465 = vlaneseq
      %v1466 = vshrl.u32 %v1465, 7
      %v1467 = vsub.s32 0, %v1466
      %v1468 = vrot.slane %v508, %v1467
      %v1469 = vlaneseq
      %v1470 = vshrl.u32 %v1469, 7
      %v1471 = vsub.s32 0, %v1470
      %v1472 = vrot.slane %v510, %v1471
      %v1473 = vlaneseq
      %v1474 = vshrl.u32 %v1473, 7
      %v1475 = vsub.s32 0, %v1474
      %v1476 = vrot.slane %v493, %v1475
      %v1477 = vlaneseq
      %v1478 = vshrl.u32 %v1477, 7
      %v1479 = vsub.s32 0, %v1478
      %v1480 = vrot.slane %v507, %v1479
      %v1481 = vlaneseq
      %v1482 = vshrl.u32 %v1481, 7
      %v1483 = vsub.s32 0, %v1482
      %v1484 = vrot.slane %v509, %v1483
      %v1485 = vlaneseq
      %v1486 = vshrl.u32 %v1485, 7
      %v1487 = vsub.s32 0, %v1486
      %v1488 = vrot.slane %v511, %v1487
      %v1489 = vlaneseq
      %v1490 = vshrl.u32 %v1489, 7
      %v1491 = vsub.s32 0, %v1490
      %v1492 = vrot.slane %v535, %v1491
      %v1493 = vlaneseq
      %v1494 = vshrl.u32 %v1493, 7
      %v1495 = vsub.s32 0, %v1494
      %v1496 = vrot.slane %v549, %v1495
      %v1497 = vlaneseq
      %v1498 = vshrl.u32 %v1497, 7
      %v1499 = vsub.s32 0, %v1498
      %v1500 = vrot.slane %v557, %v1499
      %v1501 = vlaneseq
      %v1502 = vshrl.u32 %v1501, 7
      %v1503 = vsub.s32 0, %v1502
      %v1504 = vrot.slane %v559, %v1503
      %v1505 = vlaneseq
      %v1506 = vshrl.u32 %v1505, 7
      %v1507 = vsub.s32 0, %v1506
      %v1508 = vrot.slane %v542, %v1507
      %v1509 = vlaneseq
      %v1510 = vshrl.u32 %v1509, 7
      %v1511 = vsub.s32 0, %v1510
      %v1512 = vrot.slane %v556, %v1511
      %v1513 = vlaneseq
      %v1514 = vshrl.u32 %v1513, 7
      %v1515 = vsub.s32 0, %v1514
      %v1516 = vrot.slane %v558, %v1515
      %v1517 = vlaneseq
      %v1518 = vshrl.u32 %v1517, 7
      %v1519 = vsub.s32 0, %v1518
      %v1520 = vrot.slane %v560, %v1519
      %v1585 = vsub.f32 %v1268, %v567
      %v1586 = vsub.f32 %v1268, %v571
      %v1587 = vsub.f32 %v1272, %v578
      %v1588 = vsub.f32 %v1272, %v582
      %v1589 = vsub.f32 %v1276, %v589
      %v1590 = vsub.f32 %v1276, %v593
      %v1591 = vsub.f32 %v1280, %v600
      %v1592 = vsub.f32 %v1280, %v604
      %v1593 = vsub.f32 %v1284, %v611
      %v1594 = vsub.f32 %v1284, %v615
      %v1595 = vsub.f32 %v1288, %v622
      %v1596 = vsub.f32 %v1288, %v626
      %v1597 = vsub.f32 %v1292, %v633
      %v1598 = vsub.f32 %v1292, %v637
      %v1599 = vsub.f32 %v1296, %v644
      %v1600 = vsub.f32 %v1296, %v648
      %v1601 = vsub.f32 %v1300, %v655
      %v1602 = vsub.f32 %v1300, %v659
      %v1603 = vsub.f32 %v1304, %v666
      %v1604 = vsub.f32 %v1304, %v670
      %v1605 = vsub.f32 %v1308, %v677
      %v1606 = vsub.f32 %v1308, %v681
      %v1607 = vsub.f32 %v1312, %v688
      %v1608 = vsub.f32 %v1312, %v692
      %v1609 = vsub.f32 %v1316, %v699
      %v1610 = vsub.f32 %v1316, %v703
      %v1611 = vsub.f32 %v1320, %v710
      %v1612 = vsub.f32 %v1320, %v714
      %v1613 = vsub.f32 %v1324, %v721
      %v1614 = vsub.f32 %v1324, %v725
      %v1615 = vsub.f32 %v1328, %v732
      %v1616 = vsub.f32 %v1328, %v736
      %v1617 = vsub.f32 %v1332, %v743
      %v1618 = vsub.f32 %v1332, %v747
      %v1619 = vsub.f32 %v1336, %v754
      %v1620 = vsub.f32 %v1336, %v758
      %v1621 = vsub.f32 %v1340, %v765
      %v1622 = vsub.f32 %v1340, %v769
      %v1623 = vsub.f32 %v1344, %v776
      %v1624 = vsub.f32 %v1344, %v780
      %v1625 = vsub.f32 %v1348, %v787
      %v1626 = vsub.f32 %v1348, %v791
      %v1627 = vsub.f32 %v1352, %v798
      %v1628 = vsub.f32 %v1352, %v802
      %v1629 = vsub.f32 %v1356, %v809
      %v1630 = vsub.f32 %v1356, %v813
      %v1631 = vsub.f32 %v1360, %v820
      %v1632 = vsub.f32 %v1360, %v824
      %v1633 = vsub.f32 %v1364, %v831
      %v1634 = vsub.f32 %v1364, %v835
      %v1635 = vsub.f32 %v1368, %v842
      %v1636 = vsub.f32 %v1368, %v846
      %v1637 = vsub.f32 %v1372, %v853
      %v1638 = vsub.f32 %v1372, %v857
      %v1639 = vsub.f32 %v1376, %v864
      %v1640 = vsub.f32 %v1376, %v868
      %v1641 = vsub.f32 %v1380, %v875
      %v1642 = vsub.f32 %v1380, %v879
      %v1643 = vsub.f32 %v1384, %v886
      %v1644 = vsub.f32 %v1384, %v890
      %v1645 = vsub.f32 %v1388, %v897
      %v1646 = vsub.f32 %v1388, %v901
      %v1647 = vsub.f32 %v1392, %v908
      %v1648 = vsub.f32 %v1392, %v912
      %v1649 = vsub.f32 %v1396, %v919
      %v1650 = vsub.f32 %v1396, %v923
      %v1651 = vsub.f32 %v1400, %v930
      %v1652 = vsub.f32 %v1400, %v934
      %v1653 = vsub.f32 %v1404, %v941
      %v1654 = vsub.f32 %v1404, %v945
      %v1655 = vsub.f32 %v1408, %v952
      %v1656 = vsub.f32 %v1408, %v956
      %v1657 = vsub.f32 %v1412, %v963
      %v1658 = vsub.f32 %v1412, %v967
      %v1659 = vsub.f32 %v1416, %v974
      %v1660 = vsub.f32 %v1416, %v978
      %v1661 = vsub.f32 %v1420, %v985
      %v1662 = vsub.f32 %v1420, %v989
      %v1663 = vsub.f32 %v1424, %v996
      %v1664 = vsub.f32 %v1424, %v1000
      %v1665 = vsub.f32 %v1428, %v1007
      %v1666 = vsub.f32 %v1428, %v1011
      %v1667 = vsub.f32 %v1432, %v1018
      %v1668 = vsub.f32 %v1432, %v1022
      %v1669 = vsub.f32 %v1436, %v1029
      %v1670 = vsub.f32 %v1436, %v1033
      %v1671 = vsub.f32 %v1440, %v1040
      %v1672 = vsub.f32 %v1440, %v1044
      %v1673 = vsub.f32 %v1444, %v1051
      %v1674 = vsub.f32 %v1444, %v1055
      %v1675 = vsub.f32 %v1448, %v1062
      %v1676 = vsub.f32 %v1448, %v1066
      %v1677 = vsub.f32 %v1452, %v1073
      %v1678 = vsub.f32 %v1452, %v1077
      %v1679 = vsub.f32 %v1456, %v1084
      %v1680 = vsub.f32 %v1456, %v1088
      %v1681 = vsub.f32 %v1460, %v1095
      %v1682 = vsub.f32 %v1460, %v1099
      %v1683 = vsub.f32 %v1464, %v1106
      %v1684 = vsub.f32 %v1464, %v1110
      %v1685 = vsub.f32 %v1468, %v1117
      %v1686 = vsub.f32 %v1468, %v1121
      %v1687 = vsub.f32 %v1472, %v1128
      %v1688 = vsub.f32 %v1472, %v1132
      %v1689 = vsub.f32 %v1476, %v1139
      %v1690 = vsub.f32 %v1476, %v1143
      %v1691 = vsub.f32 %v1480, %v1150
      %v1692 = vsub.f32 %v1480, %v1154
      %v1693 = vsub.f32 %v1484, %v1161
      %v1694 = vsub.f32 %v1484, %v1165
      %v1695 = vsub.f32 %v1488, %v1172
      %v1696 = vsub.f32 %v1488, %v1176
      %v1697 = vsub.f32 %v1492, %v1183
      %v1698 = vsub.f32 %v1492, %v1187
      %v1699 = vsub.f32 %v1496, %v1194
      %v1700 = vsub.f32 %v1496, %v1198
      %v1701 = vsub.f32 %v1500, %v1205
      %v1702 = vsub.f32 %v1500, %v1209
      %v1703 = vsub.f32 %v1504, %v1216
      %v1704 = vsub.f32 %v1504, %v1220
      %v1705 = vsub.f32 %v1508, %v1227
      %v1706 = vsub.f32 %v1508, %v1231
      %v1707 = vsub.f32 %v1512, %v1238
      %v1708 = vsub.f32 %v1512, %v1242
      %v1709 = vsub.f32 %v1516, %v1249
      %v1710 = vsub.f32 %v1516, %v1253
      %v1711 = vsub.f32 %v1520, %v1260
      %v1712 = vsub.f32 %v1520, %v1264
      %v1713 = vmax.f32 %v1585, 0.0
      %v1714 = vmax.f32 %v1586, 0.0
      %v1715 = vmax.f32 %v1587, 0.0
      %v1716 = vmax.f32 %v1588, 0.0
      %v1717 = vmax.f32 %v1589, 0.0
      %v1718 = vmax.f32 %v1590, 0.0
      %v1719 = vmax.f32 %v1591, 0.0
      %v1720 = vmax.f32 %v1592, 0.0
      %v1721 = vmax.f32 %v1593, 0.0
      %v1722 = vmax.f32 %v1594, 0.0
      %v1723 = vmax.f32 %v1595, 0.0
      %v1724 = vmax.f32 %v1596, 0.0
      %v1725 = vmax.f32 %v1597, 0.0
      %v1726 = vmax.f32 %v1598, 0.0
      %v1727 = vmax.f32 %v1599, 0.0
      %v1728 = vmax.f32 %v1600, 0.0
      %v1729 = vmax.f32 %v1601, 0.0
      %v1730 = vmax.f32 %v1602, 0.0
      %v1731 = vmax.f32 %v1603, 0.0
      %v1732 = vmax.f32 %v1604, 0.0
      %v1733 = vmax.f32 %v1605, 0.0
      %v1734 = vmax.f32 %v1606, 0.0
      %v1735 = vmax.f32 %v1607, 0.0
      %v1736 = vmax.f32 %v1608, 0.0
      %v1737 = vmax.f32 %v1609, 0.0
      %v1738 = vmax.f32 %v1610, 0.0
      %v1739 = vmax.f32 %v1611, 0.0
      %v1740 = vmax.f32 %v1612, 0.0
      %v1741 = vmax.f32 %v1613, 0.0
      %v1742 = vmax.f32 %v1614, 0.0
      %v1743 = vmax.f32 %v1615, 0.0
      %v1744 = vmax.f32 %v1616, 0.0
      %v1745 = vmax.f32 %v1617, 0.0
      %v1746 = vmax.f32 %v1618, 0.0
      %v1747 = vmax.f32 %v1619, 0.0
      %v1748 = vmax.f32 %v1620, 0.0
      %v1749 = vmax.f32 %v1621, 0.0
      %v1750 = vmax.f32 %v1622, 0.0
      %v1751 = vmax.f32 %v1623, 0.0
      %v1752 = vmax.f32 %v1624, 0.0
      %v1753 = vmax.f32 %v1625, 0.0
      %v1754 = vmax.f32 %v1626, 0.0
      %v1755 = vmax.f32 %v1627, 0.0
      %v1756 = vmax.f32 %v1628, 0.0
      %v1757 = vmax.f32 %v1629, 0.0
      %v1758 = vmax.f32 %v1630, 0.0
      %v1759 = vmax.f32 %v1631, 0.0
      %v1760 = vmax.f32 %v1632, 0.0
      %v1761 = vmax.f32 %v1633, 0.0
      %v1762 = vmax.f32 %v1634, 0.0
      %v1763 = vmax.f32 %v1635, 0.0
      %v1764 = vmax.f32 %v1636, 0.0
      %v1765 = vmax.f32 %v1637, 0.0
      %v1766 = vmax.f32 %v1638, 0.0
      %v1767 = vmax.f32 %v1639, 0.0
      %v1768 = vmax.f32 %v1640, 0.0
      %v1769 = vmax.f32 %v1641, 0.0
      %v1770 = vmax.f32 %v1642, 0.0
      %v1771 = vmax.f32 %v1643, 0.0
      %v1772 = vmax.f32 %v1644, 0.0
      %v1773 = vmax.f32 %v1645, 0.0
      %v1774 = vmax.f32 %v1646, 0.0
      %v1775 = vmax.f32 %v1647, 0.0
      %v1776 = vmax.f32 %v1648, 0.0
      %v1777 = vmax.f32 %v1649, 0.0
      %v1778 = vmax.f32 %v1650, 0.0
      %v1779 = vmax.f32 %v1651, 0.0
      %v1780 = vmax.f32 %v1652, 0.0
      %v1781 = vmax.f32 %v1653, 0.0
      %v1782 = vmax.f32 %v1654, 0.0
      %v1783 = vmax.f32 %v1655, 0.0
      %v1784 = vmax.f32 %v1656, 0.0
      %v1785 = vmax.f32 %v1657, 0.0
      %v1786 = vmax.f32 %v1658, 0.0
      %v1787 = vmax.f32 %v1659, 0.0
      %v1788 = vmax.f32 %v1660, 0.0
      %v1789 = vmax.f32 %v1661, 0.0
      %v1790 = vmax.f32 %v1662, 0.0
      %v1791 = vmax.f32 %v1663, 0.0
      %v1792 = vmax.f32 %v1664, 0.0
      %v1793 = vmax.f32 %v1665, 0.0
      %v1794 = vmax.f32 %v1666, 0.0
      %v1795 = vmax.f32 %v1667, 0.0
      %v1796 = vmax.f32 %v1668, 0.0
      %v1797 = vmax.f32 %v1669, 0.0
      %v1798 = vmax.f32 %v1670, 0.0
      %v1799 = vmax.f32 %v1671, 0.0
      %v1800 = vmax.f32 %v1672, 0.0
      %v1801 = vmax.f32 %v1673, 0.0
      %v1802 = vmax.f32 %v1674, 0.0
      %v1803 = vmax.f32 %v1675, 0.0
      %v1804 = vmax.f32 %v1676, 0.0
      %v1805 = vmax.f32 %v1677, 0.0
      %v1806 = vmax.f32 %v1678, 0.0
      %v1807 = vmax.f32 %v1679, 0.0
      %v1808 = vmax.f32 %v1680, 0.0
      %v1809 = vmax.f32 %v1681, 0.0
      %v1810 = vmax.f32 %v1682, 0.0
      %v1811 = vmax.f32 %v1683, 0.0
      %v1812 = vmax.f32 %v1684, 0.0
      %v1813 = vmax.f32 %v1685, 0.0
      %v1814 = vmax.f32 %v1686, 0.0
      %v1815 = vmax.f32 %v1687, 0.0
      %v1816 = vmax.f32 %v1688, 0.0
      %v1817 = vmax.f32 %v1689, 0.0
      %v1818 = vmax.f32 %v1690, 0.0
      %v1819 = vmax.f32 %v1691, 0.0
      %v1820 = vmax.f32 %v1692, 0.0
      %v1821 = vmax.f32 %v1693, 0.0
      %v1822 = vmax.f32 %v1694, 0.0
      %v1823 = vmax.f32 %v1695, 0.0
      %v1824 = vmax.f32 %v1696, 0.0
      %v1825 = vmax.f32 %v1697, 0.0
      %v1826 = vmax.f32 %v1698, 0.0
      %v1827 = vmax.f32 %v1699, 0.0
      %v1828 = vmax.f32 %v1700, 0.0
      %v1829 = vmax.f32 %v1701, 0.0
      %v1830 = vmax.f32 %v1702, 0.0
      %v1831 = vmax.f32 %v1703, 0.0
      %v1832 = vmax.f32 %v1704, 0.0
      %v1833 = vmax.f32 %v1705, 0.0
      %v1834 = vmax.f32 %v1706, 0.0
      %v1835 = vmax.f32 %v1707, 0.0
      %v1836 = vmax.f32 %v1708, 0.0
      %v1837 = vmax.f32 %v1709, 0.0
      %v1838 = vmax.f32 %v1710, 0.0
      %v1839 = vmax.f32 %v1711, 0.0
      %v1840 = vmax.f32 %v1712, 0.0
      %v1841 = vsel %vm128, %v1713, 0.0
      %1842 = vadd.xlane.f32.xlu0 %v1841
      %v1843 = vpop.xlane.xlu0 %1842
      %v1844 = vsel %vm128, %v1714, 0.0
      %1845 = vadd.xlane.f32.xlu0 %v1844
      %v1846 = vpop.xlane.xlu0 %1845
      %v1847 = vsel %vm128, %v1715, 0.0
      %1848 = vadd.xlane.f32.xlu0 %v1847
      %v1849 = vpop.xlane.xlu0 %1848
      %v1850 = vsel %vm128, %v1716, 0.0
      %1851 = vadd.xlane.f32.xlu0 %v1850
      %v1852 = vpop.xlane.xlu0 %1851
      %v1853 = vsel %vm128, %v1717, 0.0
      %1854 = vadd.xlane.f32.xlu0 %v1853
      %v1855 = vpop.xlane.xlu0 %1854
      %v1856 = vsel %vm128, %v1718, 0.0
      %1857 = vadd.xlane.f32.xlu0 %v1856
      %v1858 = vpop.xlane.xlu0 %1857
      %v1859 = vsel %vm128, %v1719, 0.0
      %1860 = vadd.xlane.f32.xlu0 %v1859
      %v1861 = vpop.xlane.xlu0 %1860
      %v1862 = vsel %vm128, %v1720, 0.0
      %1863 = vadd.xlane.f32.xlu0 %v1862
      %v1864 = vpop.xlane.xlu0 %1863
      %v1865 = vsel %vm128, %v1721, 0.0
      %1866 = vadd.xlane.f32.xlu0 %v1865
      %v1867 = vpop.xlane.xlu0 %1866
      %v1868 = vsel %vm128, %v1722, 0.0
      %1869 = vadd.xlane.f32.xlu0 %v1868
      %v1870 = vpop.xlane.xlu0 %1869
      %v1871 = vsel %vm128, %v1723, 0.0
      %1872 = vadd.xlane.f32.xlu0 %v1871
      %v1873 = vpop.xlane.xlu0 %1872
      %v1874 = vsel %vm128, %v1724, 0.0
      %1875 = vadd.xlane.f32.xlu0 %v1874
      %v1876 = vpop.xlane.xlu0 %1875
      %v1877 = vsel %vm128, %v1725, 0.0
      %1878 = vadd.xlane.f32.xlu0 %v1877
      %v1879 = vpop.xlane.xlu0 %1878
      %v1880 = vsel %vm128, %v1726, 0.0
      %1881 = vadd.xlane.f32.xlu0 %v1880
      %v1882 = vpop.xlane.xlu0 %1881
      %v1883 = vsel %vm128, %v1727, 0.0
      %1884 = vadd.xlane.f32.xlu0 %v1883
      %v1885 = vpop.xlane.xlu0 %1884
      %v1886 = vsel %vm128, %v1728, 0.0
      %1887 = vadd.xlane.f32.xlu0 %v1886
      %v1888 = vpop.xlane.xlu0 %1887
      %v1889 = vsel %vm128, %v1729, 0.0
      %1890 = vadd.xlane.f32.xlu0 %v1889
      %v1891 = vpop.xlane.xlu0 %1890
      %v1892 = vsel %vm128, %v1730, 0.0
      %1893 = vadd.xlane.f32.xlu0 %v1892
      %v1894 = vpop.xlane.xlu0 %1893
      %v1895 = vsel %vm128, %v1731, 0.0
      %1896 = vadd.xlane.f32.xlu0 %v1895
      %v1897 = vpop.xlane.xlu0 %1896
      %v1898 = vsel %vm128, %v1732, 0.0
      %1899 = vadd.xlane.f32.xlu0 %v1898
      %v1900 = vpop.xlane.xlu0 %1899
      %v1901 = vsel %vm128, %v1733, 0.0
      %1902 = vadd.xlane.f32.xlu0 %v1901
      %v1903 = vpop.xlane.xlu0 %1902
      %v1904 = vsel %vm128, %v1734, 0.0
      %1905 = vadd.xlane.f32.xlu0 %v1904
      %v1906 = vpop.xlane.xlu0 %1905
      %v1907 = vsel %vm128, %v1735, 0.0
      %1908 = vadd.xlane.f32.xlu0 %v1907
      %v1909 = vpop.xlane.xlu0 %1908
      %v1910 = vsel %vm128, %v1736, 0.0
      %1911 = vadd.xlane.f32.xlu0 %v1910
      %v1912 = vpop.xlane.xlu0 %1911
      %v1913 = vsel %vm128, %v1737, 0.0
      %1914 = vadd.xlane.f32.xlu0 %v1913
      %v1915 = vpop.xlane.xlu0 %1914
      %v1916 = vsel %vm128, %v1738, 0.0
      %1917 = vadd.xlane.f32.xlu0 %v1916
      %v1918 = vpop.xlane.xlu0 %1917
      %v1919 = vsel %vm128, %v1739, 0.0
      %1920 = vadd.xlane.f32.xlu0 %v1919
      %v1921 = vpop.xlane.xlu0 %1920
      %v1922 = vsel %vm128, %v1740, 0.0
      %1923 = vadd.xlane.f32.xlu0 %v1922
      %v1924 = vpop.xlane.xlu0 %1923
      %v1925 = vsel %vm128, %v1741, 0.0
      %1926 = vadd.xlane.f32.xlu0 %v1925
      %v1927 = vpop.xlane.xlu0 %1926
      %v1928 = vsel %vm128, %v1742, 0.0
      %1929 = vadd.xlane.f32.xlu0 %v1928
      %v1930 = vpop.xlane.xlu0 %1929
      %v1931 = vsel %vm128, %v1743, 0.0
      %1932 = vadd.xlane.f32.xlu0 %v1931
      %v1933 = vpop.xlane.xlu0 %1932
      %v1934 = vsel %vm128, %v1744, 0.0
      %1935 = vadd.xlane.f32.xlu0 %v1934
      %v1936 = vpop.xlane.xlu0 %1935
      %v1937 = vsel %vm128, %v1745, 0.0
      %1938 = vadd.xlane.f32.xlu0 %v1937
      %v1939 = vpop.xlane.xlu0 %1938
      %v1940 = vsel %vm128, %v1746, 0.0
      %1941 = vadd.xlane.f32.xlu0 %v1940
      %v1942 = vpop.xlane.xlu0 %1941
      %v1943 = vsel %vm128, %v1747, 0.0
      %1944 = vadd.xlane.f32.xlu0 %v1943
      %v1945 = vpop.xlane.xlu0 %1944
      %v1946 = vsel %vm128, %v1748, 0.0
      %1947 = vadd.xlane.f32.xlu0 %v1946
      %v1948 = vpop.xlane.xlu0 %1947
      %v1949 = vsel %vm128, %v1749, 0.0
      %1950 = vadd.xlane.f32.xlu0 %v1949
      %v1951 = vpop.xlane.xlu0 %1950
      %v1952 = vsel %vm128, %v1750, 0.0
      %1953 = vadd.xlane.f32.xlu0 %v1952
      %v1954 = vpop.xlane.xlu0 %1953
      %v1955 = vsel %vm128, %v1751, 0.0
      %1956 = vadd.xlane.f32.xlu0 %v1955
      %v1957 = vpop.xlane.xlu0 %1956
      %v1958 = vsel %vm128, %v1752, 0.0
      %1959 = vadd.xlane.f32.xlu0 %v1958
      %v1960 = vpop.xlane.xlu0 %1959
      %v1961 = vsel %vm128, %v1753, 0.0
      %1962 = vadd.xlane.f32.xlu0 %v1961
      %v1963 = vpop.xlane.xlu0 %1962
      %v1964 = vsel %vm128, %v1754, 0.0
      %1965 = vadd.xlane.f32.xlu0 %v1964
      %v1966 = vpop.xlane.xlu0 %1965
      %v1967 = vsel %vm128, %v1755, 0.0
      %1968 = vadd.xlane.f32.xlu0 %v1967
      %v1969 = vpop.xlane.xlu0 %1968
      %v1970 = vsel %vm128, %v1756, 0.0
      %1971 = vadd.xlane.f32.xlu0 %v1970
      %v1972 = vpop.xlane.xlu0 %1971
      %v1973 = vsel %vm128, %v1757, 0.0
      %1974 = vadd.xlane.f32.xlu0 %v1973
      %v1975 = vpop.xlane.xlu0 %1974
      %v1976 = vsel %vm128, %v1758, 0.0
      %1977 = vadd.xlane.f32.xlu0 %v1976
      %v1978 = vpop.xlane.xlu0 %1977
      %v1979 = vsel %vm128, %v1759, 0.0
      %1980 = vadd.xlane.f32.xlu0 %v1979
      %v1981 = vpop.xlane.xlu0 %1980
      %v1982 = vsel %vm128, %v1760, 0.0
      %1983 = vadd.xlane.f32.xlu0 %v1982
      %v1984 = vpop.xlane.xlu0 %1983
      %v1985 = vsel %vm128, %v1761, 0.0
      %1986 = vadd.xlane.f32.xlu0 %v1985
      %v1987 = vpop.xlane.xlu0 %1986
      %v1988 = vsel %vm128, %v1762, 0.0
      %1989 = vadd.xlane.f32.xlu0 %v1988
      %v1990 = vpop.xlane.xlu0 %1989
      %v1991 = vsel %vm128, %v1763, 0.0
      %1992 = vadd.xlane.f32.xlu0 %v1991
      %v1993 = vpop.xlane.xlu0 %1992
      %v1994 = vsel %vm128, %v1764, 0.0
      %1995 = vadd.xlane.f32.xlu0 %v1994
      %v1996 = vpop.xlane.xlu0 %1995
      %v1997 = vsel %vm128, %v1765, 0.0
      %1998 = vadd.xlane.f32.xlu0 %v1997
      %v1999 = vpop.xlane.xlu0 %1998
      %v2000 = vsel %vm128, %v1766, 0.0
      %2001 = vadd.xlane.f32.xlu0 %v2000
      %v2002 = vpop.xlane.xlu0 %2001
      %v2003 = vsel %vm128, %v1767, 0.0
      %2004 = vadd.xlane.f32.xlu0 %v2003
      %v2005 = vpop.xlane.xlu0 %2004
      %v2006 = vsel %vm128, %v1768, 0.0
      %2007 = vadd.xlane.f32.xlu0 %v2006
      %v2008 = vpop.xlane.xlu0 %2007
      %v2009 = vsel %vm128, %v1769, 0.0
      %2010 = vadd.xlane.f32.xlu0 %v2009
      %v2011 = vpop.xlane.xlu0 %2010
      %v2012 = vsel %vm128, %v1770, 0.0
      %2013 = vadd.xlane.f32.xlu0 %v2012
      %v2014 = vpop.xlane.xlu0 %2013
      %v2015 = vsel %vm128, %v1771, 0.0
      %2016 = vadd.xlane.f32.xlu0 %v2015
      %v2017 = vpop.xlane.xlu0 %2016
      %v2018 = vsel %vm128, %v1772, 0.0
      %2019 = vadd.xlane.f32.xlu0 %v2018
      %v2020 = vpop.xlane.xlu0 %2019
      %v2021 = vsel %vm128, %v1773, 0.0
      %2022 = vadd.xlane.f32.xlu0 %v2021
      %v2023 = vpop.xlane.xlu0 %2022
      %v2024 = vsel %vm128, %v1774, 0.0
      %2025 = vadd.xlane.f32.xlu0 %v2024
      %v2026 = vpop.xlane.xlu0 %2025
      %v2027 = vsel %vm128, %v1775, 0.0
      %2028 = vadd.xlane.f32.xlu0 %v2027
      %v2029 = vpop.xlane.xlu0 %2028
      %v2030 = vsel %vm128, %v1776, 0.0
      %2031 = vadd.xlane.f32.xlu0 %v2030
      %v2032 = vpop.xlane.xlu0 %2031
      %v2033 = vsel %vm128, %v1777, 0.0
      %2034 = vadd.xlane.f32.xlu0 %v2033
      %v2035 = vpop.xlane.xlu0 %2034
      %v2036 = vsel %vm128, %v1778, 0.0
      %2037 = vadd.xlane.f32.xlu0 %v2036
      %v2038 = vpop.xlane.xlu0 %2037
      %v2039 = vsel %vm128, %v1779, 0.0
      %2040 = vadd.xlane.f32.xlu0 %v2039
      %v2041 = vpop.xlane.xlu0 %2040
      %v2042 = vsel %vm128, %v1780, 0.0
      %2043 = vadd.xlane.f32.xlu0 %v2042
      %v2044 = vpop.xlane.xlu0 %2043
      %v2045 = vsel %vm128, %v1781, 0.0
      %2046 = vadd.xlane.f32.xlu0 %v2045
      %v2047 = vpop.xlane.xlu0 %2046
      %v2048 = vsel %vm128, %v1782, 0.0
      %2049 = vadd.xlane.f32.xlu0 %v2048
      %v2050 = vpop.xlane.xlu0 %2049
      %v2051 = vsel %vm128, %v1783, 0.0
      %2052 = vadd.xlane.f32.xlu0 %v2051
      %v2053 = vpop.xlane.xlu0 %2052
      %v2054 = vsel %vm128, %v1784, 0.0
      %2055 = vadd.xlane.f32.xlu0 %v2054
      %v2056 = vpop.xlane.xlu0 %2055
      %v2057 = vsel %vm128, %v1785, 0.0
      %2058 = vadd.xlane.f32.xlu0 %v2057
      %v2059 = vpop.xlane.xlu0 %2058
      %v2060 = vsel %vm128, %v1786, 0.0
      %2061 = vadd.xlane.f32.xlu0 %v2060
      %v2062 = vpop.xlane.xlu0 %2061
      %v2063 = vsel %vm128, %v1787, 0.0
      %2064 = vadd.xlane.f32.xlu0 %v2063
      %v2065 = vpop.xlane.xlu0 %2064
      %v2066 = vsel %vm128, %v1788, 0.0
      %2067 = vadd.xlane.f32.xlu0 %v2066
      %v2068 = vpop.xlane.xlu0 %2067
      %v2069 = vsel %vm128, %v1789, 0.0
      %2070 = vadd.xlane.f32.xlu0 %v2069
      %v2071 = vpop.xlane.xlu0 %2070
      %v2072 = vsel %vm128, %v1790, 0.0
      %2073 = vadd.xlane.f32.xlu0 %v2072
      %v2074 = vpop.xlane.xlu0 %2073
      %v2075 = vsel %vm128, %v1791, 0.0
      %2076 = vadd.xlane.f32.xlu0 %v2075
      %v2077 = vpop.xlane.xlu0 %2076
      %v2078 = vsel %vm128, %v1792, 0.0
      %2079 = vadd.xlane.f32.xlu0 %v2078
      %v2080 = vpop.xlane.xlu0 %2079
      %v2081 = vsel %vm128, %v1793, 0.0
      %2082 = vadd.xlane.f32.xlu0 %v2081
      %v2083 = vpop.xlane.xlu0 %2082
      %v2084 = vsel %vm128, %v1794, 0.0
      %2085 = vadd.xlane.f32.xlu0 %v2084
      %v2086 = vpop.xlane.xlu0 %2085
      %v2087 = vsel %vm128, %v1795, 0.0
      %2088 = vadd.xlane.f32.xlu0 %v2087
      %v2089 = vpop.xlane.xlu0 %2088
      %v2090 = vsel %vm128, %v1796, 0.0
      %2091 = vadd.xlane.f32.xlu0 %v2090
      %v2092 = vpop.xlane.xlu0 %2091
      %v2093 = vsel %vm128, %v1797, 0.0
      %2094 = vadd.xlane.f32.xlu0 %v2093
      %v2095 = vpop.xlane.xlu0 %2094
      %v2096 = vsel %vm128, %v1798, 0.0
      %2097 = vadd.xlane.f32.xlu0 %v2096
      %v2098 = vpop.xlane.xlu0 %2097
      %v2099 = vsel %vm128, %v1799, 0.0
      %2100 = vadd.xlane.f32.xlu0 %v2099
      %v2101 = vpop.xlane.xlu0 %2100
      %v2102 = vsel %vm128, %v1800, 0.0
      %2103 = vadd.xlane.f32.xlu0 %v2102
      %v2104 = vpop.xlane.xlu0 %2103
      %v2105 = vsel %vm128, %v1801, 0.0
      %2106 = vadd.xlane.f32.xlu0 %v2105
      %v2107 = vpop.xlane.xlu0 %2106
      %v2108 = vsel %vm128, %v1802, 0.0
      %2109 = vadd.xlane.f32.xlu0 %v2108
      %v2110 = vpop.xlane.xlu0 %2109
      %v2111 = vsel %vm128, %v1803, 0.0
      %2112 = vadd.xlane.f32.xlu0 %v2111
      %v2113 = vpop.xlane.xlu0 %2112
      %v2114 = vsel %vm128, %v1804, 0.0
      %2115 = vadd.xlane.f32.xlu0 %v2114
      %v2116 = vpop.xlane.xlu0 %2115
      %v2117 = vsel %vm128, %v1805, 0.0
      %2118 = vadd.xlane.f32.xlu0 %v2117
      %v2119 = vpop.xlane.xlu0 %2118
      %v2120 = vsel %vm128, %v1806, 0.0
      %2121 = vadd.xlane.f32.xlu0 %v2120
      %v2122 = vpop.xlane.xlu0 %2121
      %v2123 = vsel %vm128, %v1807, 0.0
      %2124 = vadd.xlane.f32.xlu0 %v2123
      %v2125 = vpop.xlane.xlu0 %2124
      %v2126 = vsel %vm128, %v1808, 0.0
      %2127 = vadd.xlane.f32.xlu0 %v2126
      %v2128 = vpop.xlane.xlu0 %2127
      %v2129 = vsel %vm128, %v1809, 0.0
      %2130 = vadd.xlane.f32.xlu0 %v2129
      %v2131 = vpop.xlane.xlu0 %2130
      %v2132 = vsel %vm128, %v1810, 0.0
      %2133 = vadd.xlane.f32.xlu0 %v2132
      %v2134 = vpop.xlane.xlu0 %2133
      %v2135 = vsel %vm128, %v1811, 0.0
      %2136 = vadd.xlane.f32.xlu0 %v2135
      %v2137 = vpop.xlane.xlu0 %2136
      %v2138 = vsel %vm128, %v1812, 0.0
      %2139 = vadd.xlane.f32.xlu0 %v2138
      %v2140 = vpop.xlane.xlu0 %2139
      %v2141 = vsel %vm128, %v1813, 0.0
      %2142 = vadd.xlane.f32.xlu0 %v2141
      %v2143 = vpop.xlane.xlu0 %2142
      %v2144 = vsel %vm128, %v1814, 0.0
      %2145 = vadd.xlane.f32.xlu0 %v2144
      %v2146 = vpop.xlane.xlu0 %2145
      %v2147 = vsel %vm128, %v1815, 0.0
      %2148 = vadd.xlane.f32.xlu0 %v2147
      %v2149 = vpop.xlane.xlu0 %2148
      %v2150 = vsel %vm128, %v1816, 0.0
      %2151 = vadd.xlane.f32.xlu0 %v2150
      %v2152 = vpop.xlane.xlu0 %2151
      %v2153 = vsel %vm128, %v1817, 0.0
      %2154 = vadd.xlane.f32.xlu0 %v2153
      %v2155 = vpop.xlane.xlu0 %2154
      %v2156 = vsel %vm128, %v1818, 0.0
      %2157 = vadd.xlane.f32.xlu0 %v2156
      %v2158 = vpop.xlane.xlu0 %2157
      %v2159 = vsel %vm128, %v1819, 0.0
      %2160 = vadd.xlane.f32.xlu0 %v2159
      %v2161 = vpop.xlane.xlu0 %2160
      %v2162 = vsel %vm128, %v1820, 0.0
      %2163 = vadd.xlane.f32.xlu0 %v2162
      %v2164 = vpop.xlane.xlu0 %2163
      %v2165 = vsel %vm128, %v1821, 0.0
      %2166 = vadd.xlane.f32.xlu0 %v2165
      %v2167 = vpop.xlane.xlu0 %2166
      %v2168 = vsel %vm128, %v1822, 0.0
      %2169 = vadd.xlane.f32.xlu0 %v2168
      %v2170 = vpop.xlane.xlu0 %2169
      %v2171 = vsel %vm128, %v1823, 0.0
      %2172 = vadd.xlane.f32.xlu0 %v2171
      %v2173 = vpop.xlane.xlu0 %2172
      %v2174 = vsel %vm128, %v1824, 0.0
      %2175 = vadd.xlane.f32.xlu0 %v2174
      %v2176 = vpop.xlane.xlu0 %2175
      %v2177 = vsel %vm128, %v1825, 0.0
      %2178 = vadd.xlane.f32.xlu0 %v2177
      %v2179 = vpop.xlane.xlu0 %2178
      %v2180 = vsel %vm128, %v1826, 0.0
      %2181 = vadd.xlane.f32.xlu0 %v2180
      %v2182 = vpop.xlane.xlu0 %2181
      %v2183 = vsel %vm128, %v1827, 0.0
      %2184 = vadd.xlane.f32.xlu0 %v2183
      %v2185 = vpop.xlane.xlu0 %2184
      %v2186 = vsel %vm128, %v1828, 0.0
      %2187 = vadd.xlane.f32.xlu0 %v2186
      %v2188 = vpop.xlane.xlu0 %2187
      %v2189 = vsel %vm128, %v1829, 0.0
      %2190 = vadd.xlane.f32.xlu0 %v2189
      %v2191 = vpop.xlane.xlu0 %2190
      %v2192 = vsel %vm128, %v1830, 0.0
      %2193 = vadd.xlane.f32.xlu0 %v2192
      %v2194 = vpop.xlane.xlu0 %2193
      %v2195 = vsel %vm128, %v1831, 0.0
      %2196 = vadd.xlane.f32.xlu0 %v2195
      %v2197 = vpop.xlane.xlu0 %2196
      %v2198 = vsel %vm128, %v1832, 0.0
      %2199 = vadd.xlane.f32.xlu0 %v2198
      %v2200 = vpop.xlane.xlu0 %2199
      %v2201 = vsel %vm128, %v1833, 0.0
      %2202 = vadd.xlane.f32.xlu0 %v2201
      %v2203 = vpop.xlane.xlu0 %2202
      %v2204 = vsel %vm128, %v1834, 0.0
      %2205 = vadd.xlane.f32.xlu0 %v2204
      %v2206 = vpop.xlane.xlu0 %2205
      %v2207 = vsel %vm128, %v1835, 0.0
      %2208 = vadd.xlane.f32.xlu0 %v2207
      %v2209 = vpop.xlane.xlu0 %2208
      %v2210 = vsel %vm128, %v1836, 0.0
      %2211 = vadd.xlane.f32.xlu0 %v2210
      %v2212 = vpop.xlane.xlu0 %2211
      %v2213 = vsel %vm128, %v1837, 0.0
      %2214 = vadd.xlane.f32.xlu0 %v2213
      %v2215 = vpop.xlane.xlu0 %2214
      %v2216 = vsel %vm128, %v1838, 0.0
      %2217 = vadd.xlane.f32.xlu0 %v2216
      %v2218 = vpop.xlane.xlu0 %2217
      %v2219 = vsel %vm128, %v1839, 0.0
      %2220 = vadd.xlane.f32.xlu0 %v2219
      %v2221 = vpop.xlane.xlu0 %2220
      %v2222 = vsel %vm128, %v1840, 0.0
      %2223 = vadd.xlane.f32.xlu0 %v2222
      %v2224 = vpop.xlane.xlu0 %2223
      %vm2225 = vcmp.lt.f32.partialorder %v1843, 1.0
      %vm2226 = vcmp.lt.f32.partialorder %v1846, 1.0
      %vm2227 = vcmp.lt.f32.partialorder %v1849, 1.0
      %vm2228 = vcmp.lt.f32.partialorder %v1852, 1.0
      %vm2229 = vcmp.lt.f32.partialorder %v1855, 1.0
      %vm2230 = vcmp.lt.f32.partialorder %v1858, 1.0
      %vm2231 = vcmp.lt.f32.partialorder %v1861, 1.0
      %vm2232 = vcmp.lt.f32.partialorder %v1864, 1.0
      %vm2233 = vcmp.lt.f32.partialorder %v1867, 1.0
      %vm2234 = vcmp.lt.f32.partialorder %v1870, 1.0
      %vm2235 = vcmp.lt.f32.partialorder %v1873, 1.0
      %vm2236 = vcmp.lt.f32.partialorder %v1876, 1.0
      %vm2237 = vcmp.lt.f32.partialorder %v1879, 1.0
      %vm2238 = vcmp.lt.f32.partialorder %v1882, 1.0
      %vm2239 = vcmp.lt.f32.partialorder %v1885, 1.0
      %vm2240 = vcmp.lt.f32.partialorder %v1888, 1.0
      %vm2241 = vcmp.lt.f32.partialorder %v1891, 1.0
      %vm2242 = vcmp.lt.f32.partialorder %v1894, 1.0
      %vm2243 = vcmp.lt.f32.partialorder %v1897, 1.0
      %vm2244 = vcmp.lt.f32.partialorder %v1900, 1.0
      %vm2245 = vcmp.lt.f32.partialorder %v1903, 1.0
      %vm2246 = vcmp.lt.f32.partialorder %v1906, 1.0
      %vm2247 = vcmp.lt.f32.partialorder %v1909, 1.0
      %vm2248 = vcmp.lt.f32.partialorder %v1912, 1.0
      %vm2249 = vcmp.lt.f32.partialorder %v1915, 1.0
      %vm2250 = vcmp.lt.f32.partialorder %v1918, 1.0
      %vm2251 = vcmp.lt.f32.partialorder %v1921, 1.0
      %vm2252 = vcmp.lt.f32.partialorder %v1924, 1.0
      %vm2253 = vcmp.lt.f32.partialorder %v1927, 1.0
      %vm2254 = vcmp.lt.f32.partialorder %v1930, 1.0
      %vm2255 = vcmp.lt.f32.partialorder %v1933, 1.0
      %vm2256 = vcmp.lt.f32.partialorder %v1936, 1.0
      %vm2257 = vcmp.lt.f32.partialorder %v1939, 1.0
      %vm2258 = vcmp.lt.f32.partialorder %v1942, 1.0
      %vm2259 = vcmp.lt.f32.partialorder %v1945, 1.0
      %vm2260 = vcmp.lt.f32.partialorder %v1948, 1.0
      %vm2261 = vcmp.lt.f32.partialorder %v1951, 1.0
      %vm2262 = vcmp.lt.f32.partialorder %v1954, 1.0
      %vm2263 = vcmp.lt.f32.partialorder %v1957, 1.0
      %vm2264 = vcmp.lt.f32.partialorder %v1960, 1.0
      %vm2265 = vcmp.lt.f32.partialorder %v1963, 1.0
      %vm2266 = vcmp.lt.f32.partialorder %v1966, 1.0
      %vm2267 = vcmp.lt.f32.partialorder %v1969, 1.0
      %vm2268 = vcmp.lt.f32.partialorder %v1972, 1.0
      %vm2269 = vcmp.lt.f32.partialorder %v1975, 1.0
      %vm2270 = vcmp.lt.f32.partialorder %v1978, 1.0
      %vm2271 = vcmp.lt.f32.partialorder %v1981, 1.0
      %vm2272 = vcmp.lt.f32.partialorder %v1984, 1.0
      %vm2273 = vcmp.lt.f32.partialorder %v1987, 1.0
      %vm2274 = vcmp.lt.f32.partialorder %v1990, 1.0
      %vm2275 = vcmp.lt.f32.partialorder %v1993, 1.0
      %vm2276 = vcmp.lt.f32.partialorder %v1996, 1.0
      %vm2277 = vcmp.lt.f32.partialorder %v1999, 1.0
      %vm2278 = vcmp.lt.f32.partialorder %v2002, 1.0
      %vm2279 = vcmp.lt.f32.partialorder %v2005, 1.0
      %vm2280 = vcmp.lt.f32.partialorder %v2008, 1.0
      %vm2281 = vcmp.lt.f32.partialorder %v2011, 1.0
      %vm2282 = vcmp.lt.f32.partialorder %v2014, 1.0
      %vm2283 = vcmp.lt.f32.partialorder %v2017, 1.0
      %vm2284 = vcmp.lt.f32.partialorder %v2020, 1.0
      %vm2285 = vcmp.lt.f32.partialorder %v2023, 1.0
      %vm2286 = vcmp.lt.f32.partialorder %v2026, 1.0
      %vm2287 = vcmp.lt.f32.partialorder %v2029, 1.0
      %vm2288 = vcmp.lt.f32.partialorder %v2032, 1.0
      %vm2289 = vcmp.lt.f32.partialorder %v2035, 1.0
      %vm2290 = vcmp.lt.f32.partialorder %v2038, 1.0
      %vm2291 = vcmp.lt.f32.partialorder %v2041, 1.0
      %vm2292 = vcmp.lt.f32.partialorder %v2044, 1.0
      %vm2293 = vcmp.lt.f32.partialorder %v2047, 1.0
      %vm2294 = vcmp.lt.f32.partialorder %v2050, 1.0
      %vm2295 = vcmp.lt.f32.partialorder %v2053, 1.0
      %vm2296 = vcmp.lt.f32.partialorder %v2056, 1.0
      %vm2297 = vcmp.lt.f32.partialorder %v2059, 1.0
      %vm2298 = vcmp.lt.f32.partialorder %v2062, 1.0
      %vm2299 = vcmp.lt.f32.partialorder %v2065, 1.0
      %vm2300 = vcmp.lt.f32.partialorder %v2068, 1.0
      %vm2301 = vcmp.lt.f32.partialorder %v2071, 1.0
      %vm2302 = vcmp.lt.f32.partialorder %v2074, 1.0
      %vm2303 = vcmp.lt.f32.partialorder %v2077, 1.0
      %vm2304 = vcmp.lt.f32.partialorder %v2080, 1.0
      %vm2305 = vcmp.lt.f32.partialorder %v2083, 1.0
      %vm2306 = vcmp.lt.f32.partialorder %v2086, 1.0
      %vm2307 = vcmp.lt.f32.partialorder %v2089, 1.0
      %vm2308 = vcmp.lt.f32.partialorder %v2092, 1.0
      %vm2309 = vcmp.lt.f32.partialorder %v2095, 1.0
      %vm2310 = vcmp.lt.f32.partialorder %v2098, 1.0
      %vm2311 = vcmp.lt.f32.partialorder %v2101, 1.0
      %vm2312 = vcmp.lt.f32.partialorder %v2104, 1.0
      %vm2313 = vcmp.lt.f32.partialorder %v2107, 1.0
      %vm2314 = vcmp.lt.f32.partialorder %v2110, 1.0
      %vm2315 = vcmp.lt.f32.partialorder %v2113, 1.0
      %vm2316 = vcmp.lt.f32.partialorder %v2116, 1.0
      %vm2317 = vcmp.lt.f32.partialorder %v2119, 1.0
      %vm2318 = vcmp.lt.f32.partialorder %v2122, 1.0
      %vm2319 = vcmp.lt.f32.partialorder %v2125, 1.0
      %vm2320 = vcmp.lt.f32.partialorder %v2128, 1.0
      %vm2321 = vcmp.lt.f32.partialorder %v2131, 1.0
      %vm2322 = vcmp.lt.f32.partialorder %v2134, 1.0
      %vm2323 = vcmp.lt.f32.partialorder %v2137, 1.0
      %vm2324 = vcmp.lt.f32.partialorder %v2140, 1.0
      %vm2325 = vcmp.lt.f32.partialorder %v2143, 1.0
      %vm2326 = vcmp.lt.f32.partialorder %v2146, 1.0
      %vm2327 = vcmp.lt.f32.partialorder %v2149, 1.0
      %vm2328 = vcmp.lt.f32.partialorder %v2152, 1.0
      %vm2329 = vcmp.lt.f32.partialorder %v2155, 1.0
      %vm2330 = vcmp.lt.f32.partialorder %v2158, 1.0
      %vm2331 = vcmp.lt.f32.partialorder %v2161, 1.0
      %vm2332 = vcmp.lt.f32.partialorder %v2164, 1.0
      %vm2333 = vcmp.lt.f32.partialorder %v2167, 1.0
      %vm2334 = vcmp.lt.f32.partialorder %v2170, 1.0
      %vm2335 = vcmp.lt.f32.partialorder %v2173, 1.0
      %vm2336 = vcmp.lt.f32.partialorder %v2176, 1.0
      %vm2337 = vcmp.lt.f32.partialorder %v2179, 1.0
      %vm2338 = vcmp.lt.f32.partialorder %v2182, 1.0
      %vm2339 = vcmp.lt.f32.partialorder %v2185, 1.0
      %vm2340 = vcmp.lt.f32.partialorder %v2188, 1.0
      %vm2341 = vcmp.lt.f32.partialorder %v2191, 1.0
      %vm2342 = vcmp.lt.f32.partialorder %v2194, 1.0
      %vm2343 = vcmp.lt.f32.partialorder %v2197, 1.0
      %vm2344 = vcmp.lt.f32.partialorder %v2200, 1.0
      %vm2345 = vcmp.lt.f32.partialorder %v2203, 1.0
      %vm2346 = vcmp.lt.f32.partialorder %v2206, 1.0
      %vm2347 = vcmp.lt.f32.partialorder %v2209, 1.0
      %vm2348 = vcmp.lt.f32.partialorder %v2212, 1.0
      %vm2349 = vcmp.lt.f32.partialorder %v2215, 1.0
      %vm2350 = vcmp.lt.f32.partialorder %v2218, 1.0
      %vm2351 = vcmp.lt.f32.partialorder %v2221, 1.0
      %vm2352 = vcmp.lt.f32.partialorder %v2224, 1.0
      %v2353 = vsel %vm2225, 1, 0
      %v2354 = vsel %vm2226, 1, 0
      %v2355 = vsel %vm2227, 1, 0
      %v2356 = vsel %vm2228, 1, 0
      %v2357 = vsel %vm2229, 1, 0
      %v2358 = vsel %vm2230, 1, 0
      %v2359 = vsel %vm2231, 1, 0
      %v2360 = vsel %vm2232, 1, 0
      %v2361 = vsel %vm2233, 1, 0
      %v2362 = vsel %vm2234, 1, 0
      %v2363 = vsel %vm2235, 1, 0
      %v2364 = vsel %vm2236, 1, 0
      %v2365 = vsel %vm2237, 1, 0
      %v2366 = vsel %vm2238, 1, 0
      %v2367 = vsel %vm2239, 1, 0
      %v2368 = vsel %vm2240, 1, 0
      %v2369 = vsel %vm2241, 1, 0
      %v2370 = vsel %vm2242, 1, 0
      %v2371 = vsel %vm2243, 1, 0
      %v2372 = vsel %vm2244, 1, 0
      %v2373 = vsel %vm2245, 1, 0
      %v2374 = vsel %vm2246, 1, 0
      %v2375 = vsel %vm2247, 1, 0
      %v2376 = vsel %vm2248, 1, 0
      %v2377 = vsel %vm2249, 1, 0
      %v2378 = vsel %vm2250, 1, 0
      %v2379 = vsel %vm2251, 1, 0
      %v2380 = vsel %vm2252, 1, 0
      %v2381 = vsel %vm2253, 1, 0
      %v2382 = vsel %vm2254, 1, 0
      %v2383 = vsel %vm2255, 1, 0
      %v2384 = vsel %vm2256, 1, 0
      %v2385 = vsel %vm2257, 1, 0
      %v2386 = vsel %vm2258, 1, 0
      %v2387 = vsel %vm2259, 1, 0
      %v2388 = vsel %vm2260, 1, 0
      %v2389 = vsel %vm2261, 1, 0
      %v2390 = vsel %vm2262, 1, 0
      %v2391 = vsel %vm2263, 1, 0
      %v2392 = vsel %vm2264, 1, 0
      %v2393 = vsel %vm2265, 1, 0
      %v2394 = vsel %vm2266, 1, 0
      %v2395 = vsel %vm2267, 1, 0
      %v2396 = vsel %vm2268, 1, 0
      %v2397 = vsel %vm2269, 1, 0
      %v2398 = vsel %vm2270, 1, 0
      %v2399 = vsel %vm2271, 1, 0
      %v2400 = vsel %vm2272, 1, 0
      %v2401 = vsel %vm2273, 1, 0
      %v2402 = vsel %vm2274, 1, 0
      %v2403 = vsel %vm2275, 1, 0
      %v2404 = vsel %vm2276, 1, 0
      %v2405 = vsel %vm2277, 1, 0
      %v2406 = vsel %vm2278, 1, 0
      %v2407 = vsel %vm2279, 1, 0
      %v2408 = vsel %vm2280, 1, 0
      %v2409 = vsel %vm2281, 1, 0
      %v2410 = vsel %vm2282, 1, 0
      %v2411 = vsel %vm2283, 1, 0
      %v2412 = vsel %vm2284, 1, 0
      %v2413 = vsel %vm2285, 1, 0
      %v2414 = vsel %vm2286, 1, 0
      %v2415 = vsel %vm2287, 1, 0
      %v2416 = vsel %vm2288, 1, 0
      %v2417 = vsel %vm2289, 1, 0
      %v2418 = vsel %vm2290, 1, 0
      %v2419 = vsel %vm2291, 1, 0
      %v2420 = vsel %vm2292, 1, 0
      %v2421 = vsel %vm2293, 1, 0
      %v2422 = vsel %vm2294, 1, 0
      %v2423 = vsel %vm2295, 1, 0
      %v2424 = vsel %vm2296, 1, 0
      %v2425 = vsel %vm2297, 1, 0
      %v2426 = vsel %vm2298, 1, 0
      %v2427 = vsel %vm2299, 1, 0
      %v2428 = vsel %vm2300, 1, 0
      %v2429 = vsel %vm2301, 1, 0
      %v2430 = vsel %vm2302, 1, 0
      %v2431 = vsel %vm2303, 1, 0
      %v2432 = vsel %vm2304, 1, 0
      %v2433 = vsel %vm2305, 1, 0
      %v2434 = vsel %vm2306, 1, 0
      %v2435 = vsel %vm2307, 1, 0
      %v2436 = vsel %vm2308, 1, 0
      %v2437 = vsel %vm2309, 1, 0
      %v2438 = vsel %vm2310, 1, 0
      %v2439 = vsel %vm2311, 1, 0
      %v2440 = vsel %vm2312, 1, 0
      %v2441 = vsel %vm2313, 1, 0
      %v2442 = vsel %vm2314, 1, 0
      %v2443 = vsel %vm2315, 1, 0
      %v2444 = vsel %vm2316, 1, 0
      %v2445 = vsel %vm2317, 1, 0
      %v2446 = vsel %vm2318, 1, 0
      %v2447 = vsel %vm2319, 1, 0
      %v2448 = vsel %vm2320, 1, 0
      %v2449 = vsel %vm2321, 1, 0
      %v2450 = vsel %vm2322, 1, 0
      %v2451 = vsel %vm2323, 1, 0
      %v2452 = vsel %vm2324, 1, 0
      %v2453 = vsel %vm2325, 1, 0
      %v2454 = vsel %vm2326, 1, 0
      %v2455 = vsel %vm2327, 1, 0
      %v2456 = vsel %vm2328, 1, 0
      %v2457 = vsel %vm2329, 1, 0
      %v2458 = vsel %vm2330, 1, 0
      %v2459 = vsel %vm2331, 1, 0
      %v2460 = vsel %vm2332, 1, 0
      %v2461 = vsel %vm2333, 1, 0
      %v2462 = vsel %vm2334, 1, 0
      %v2463 = vsel %vm2335, 1, 0
      %v2464 = vsel %vm2336, 1, 0
      %v2465 = vsel %vm2337, 1, 0
      %v2466 = vsel %vm2338, 1, 0
      %v2467 = vsel %vm2339, 1, 0
      %v2468 = vsel %vm2340, 1, 0
      %v2469 = vsel %vm2341, 1, 0
      %v2470 = vsel %vm2342, 1, 0
      %v2471 = vsel %vm2343, 1, 0
      %v2472 = vsel %vm2344, 1, 0
      %v2473 = vsel %vm2345, 1, 0
      %v2474 = vsel %vm2346, 1, 0
      %v2475 = vsel %vm2347, 1, 0
      %v2476 = vsel %vm2348, 1, 0
      %v2477 = vsel %vm2349, 1, 0
      %v2478 = vsel %vm2350, 1, 0
      %v2479 = vsel %vm2351, 1, 0
      %v2480 = vsel %vm2352, 1, 0
      %v2481 = vcvt.s32.f32 %v2353
      %v2482 = vcvt.s32.f32 %v2354
      %v2483 = vcvt.s32.f32 %v2355
      %v2484 = vcvt.s32.f32 %v2356
      %v2485 = vcvt.s32.f32 %v2357
      %v2486 = vcvt.s32.f32 %v2358
      %v2487 = vcvt.s32.f32 %v2359
      %v2488 = vcvt.s32.f32 %v2360
      %v2489 = vcvt.s32.f32 %v2361
      %v2490 = vcvt.s32.f32 %v2362
      %v2491 = vcvt.s32.f32 %v2363
      %v2492 = vcvt.s32.f32 %v2364
      %v2493 = vcvt.s32.f32 %v2365
      %v2494 = vcvt.s32.f32 %v2366
      %v2495 = vcvt.s32.f32 %v2367
      %v2496 = vcvt.s32.f32 %v2368
      %v2497 = vcvt.s32.f32 %v2369
      %v2498 = vcvt.s32.f32 %v2370
      %v2499 = vcvt.s32.f32 %v2371
      %v2500 = vcvt.s32.f32 %v2372
      %v2501 = vcvt.s32.f32 %v2373
      %v2502 = vcvt.s32.f32 %v2374
      %v2503 = vcvt.s32.f32 %v2375
      %v2504 = vcvt.s32.f32 %v2376
      %v2505 = vcvt.s32.f32 %v2377
      %v2506 = vcvt.s32.f32 %v2378
      %v2507 = vcvt.s32.f32 %v2379
      %v2508 = vcvt.s32.f32 %v2380
      %v2509 = vcvt.s32.f32 %v2381
      %v2510 = vcvt.s32.f32 %v2382
      %v2511 = vcvt.s32.f32 %v2383
      %v2512 = vcvt.s32.f32 %v2384
      %v2513 = vcvt.s32.f32 %v2385
      %v2514 = vcvt.s32.f32 %v2386
      %v2515 = vcvt.s32.f32 %v2387
      %v2516 = vcvt.s32.f32 %v2388
      %v2517 = vcvt.s32.f32 %v2389
      %v2518 = vcvt.s32.f32 %v2390
      %v2519 = vcvt.s32.f32 %v2391
      %v2520 = vcvt.s32.f32 %v2392
      %v2521 = vcvt.s32.f32 %v2393
      %v2522 = vcvt.s32.f32 %v2394
      %v2523 = vcvt.s32.f32 %v2395
      %v2524 = vcvt.s32.f32 %v2396
      %v2525 = vcvt.s32.f32 %v2397
      %v2526 = vcvt.s32.f32 %v2398
      %v2527 = vcvt.s32.f32 %v2399
      %v2528 = vcvt.s32.f32 %v2400
      %v2529 = vcvt.s32.f32 %v2401
      %v2530 = vcvt.s32.f32 %v2402
      %v2531 = vcvt.s32.f32 %v2403
      %v2532 = vcvt.s32.f32 %v2404
      %v2533 = vcvt.s32.f32 %v2405
      %v2534 = vcvt.s32.f32 %v2406
      %v2535 = vcvt.s32.f32 %v2407
      %v2536 = vcvt.s32.f32 %v2408
      %v2537 = vcvt.s32.f32 %v2409
      %v2538 = vcvt.s32.f32 %v2410
      %v2539 = vcvt.s32.f32 %v2411
      %v2540 = vcvt.s32.f32 %v2412
      %v2541 = vcvt.s32.f32 %v2413
      %v2542 = vcvt.s32.f32 %v2414
      %v2543 = vcvt.s32.f32 %v2415
      %v2544 = vcvt.s32.f32 %v2416
      %v2545 = vcvt.s32.f32 %v2417
      %v2546 = vcvt.s32.f32 %v2418
      %v2547 = vcvt.s32.f32 %v2419
      %v2548 = vcvt.s32.f32 %v2420
      %v2549 = vcvt.s32.f32 %v2421
      %v2550 = vcvt.s32.f32 %v2422
      %v2551 = vcvt.s32.f32 %v2423
      %v2552 = vcvt.s32.f32 %v2424
      %v2553 = vcvt.s32.f32 %v2425
      %v2554 = vcvt.s32.f32 %v2426
      %v2555 = vcvt.s32.f32 %v2427
      %v2556 = vcvt.s32.f32 %v2428
      %v2557 = vcvt.s32.f32 %v2429
      %v2558 = vcvt.s32.f32 %v2430
      %v2559 = vcvt.s32.f32 %v2431
      %v2560 = vcvt.s32.f32 %v2432
      %v2561 = vcvt.s32.f32 %v2433
      %v2562 = vcvt.s32.f32 %v2434
      %v2563 = vcvt.s32.f32 %v2435
      %v2564 = vcvt.s32.f32 %v2436
      %v2565 = vcvt.s32.f32 %v2437
      %v2566 = vcvt.s32.f32 %v2438
      %v2567 = vcvt.s32.f32 %v2439
      %v2568 = vcvt.s32.f32 %v2440
      %v2569 = vcvt.s32.f32 %v2441
      %v2570 = vcvt.s32.f32 %v2442
      %v2571 = vcvt.s32.f32 %v2443
      %v2572 = vcvt.s32.f32 %v2444
      %v2573 = vcvt.s32.f32 %v2445
      %v2574 = vcvt.s32.f32 %v2446
      %v2575 = vcvt.s32.f32 %v2447
      %v2576 = vcvt.s32.f32 %v2448
      %v2577 = vcvt.s32.f32 %v2449
      %v2578 = vcvt.s32.f32 %v2450
      %v2579 = vcvt.s32.f32 %v2451
      %v2580 = vcvt.s32.f32 %v2452
      %v2581 = vcvt.s32.f32 %v2453
      %v2582 = vcvt.s32.f32 %v2454
      %v2583 = vcvt.s32.f32 %v2455
      %v2584 = vcvt.s32.f32 %v2456
      %v2585 = vcvt.s32.f32 %v2457
      %v2586 = vcvt.s32.f32 %v2458
      %v2587 = vcvt.s32.f32 %v2459
      %v2588 = vcvt.s32.f32 %v2460
      %v2589 = vcvt.s32.f32 %v2461
      %v2590 = vcvt.s32.f32 %v2462
      %v2591 = vcvt.s32.f32 %v2463
      %v2592 = vcvt.s32.f32 %v2464
      %v2593 = vcvt.s32.f32 %v2465
      %v2594 = vcvt.s32.f32 %v2466
      %v2595 = vcvt.s32.f32 %v2467
      %v2596 = vcvt.s32.f32 %v2468
      %v2597 = vcvt.s32.f32 %v2469
      %v2598 = vcvt.s32.f32 %v2470
      %v2599 = vcvt.s32.f32 %v2471
      %v2600 = vcvt.s32.f32 %v2472
      %v2601 = vcvt.s32.f32 %v2473
      %v2602 = vcvt.s32.f32 %v2474
      %v2603 = vcvt.s32.f32 %v2475
      %v2604 = vcvt.s32.f32 %v2476
      %v2605 = vcvt.s32.f32 %v2477
      %v2606 = vcvt.s32.f32 %v2478
      %v2607 = vcvt.s32.f32 %v2479
      %v2608 = vcvt.s32.f32 %v2480
      %v2737 = vlaneseq
      %v2738 = vand.u32 %v2737, 127
      %v2739 = vlaneseq
      %v2740 = vshrl.u32 %v2739, 7
      %v2741 = vsub.s32 %v2738, %v2740
      %v2742 = vrot.slane %v2481, %v2741
      %v2743 = vadd.s32 %v2738, 4294967288
      %v2744 = vlaneseq
      %v2745 = vshrl.u32 %v2744, 7
      %v2746 = vsub.s32 %v2743, %v2745
      %v2747 = vrot.slane %v2482, %v2746
      %vm2748 = vcmask 130112
      %v2749 = vsel %vm2748, %v2747, %v2742
      %v2750 = vlaneseq
      %v2751 = vshrl.u32 %v2750, 7
      %v2752 = vsub.s32 %v2738, %v2751
      %v2753 = vrot.slane %v2483, %v2752
      %v2754 = vlaneseq
      %v2755 = vshrl.u32 %v2754, 7
      %v2756 = vsub.s32 %v2743, %v2755
      %v2757 = vrot.slane %v2484, %v2756
      %v2758 = vsel %vm2748, %v2757, %v2753
      %v2759 = vlaneseq
      %v2760 = vshrl.u32 %v2759, 7
      %v2761 = vsub.s32 %v2738, %v2760
      %v2762 = vrot.slane %v2485, %v2761
      %v2763 = vlaneseq
      %v2764 = vshrl.u32 %v2763, 7
      %v2765 = vsub.s32 %v2743, %v2764
      %v2766 = vrot.slane %v2486, %v2765
      %v2767 = vsel %vm2748, %v2766, %v2762
      %v2768 = vlaneseq
      %v2769 = vshrl.u32 %v2768, 7
      %v2770 = vsub.s32 %v2738, %v2769
      %v2771 = vrot.slane %v2487, %v2770
      %v2772 = vlaneseq
      %v2773 = vshrl.u32 %v2772, 7
      %v2774 = vsub.s32 %v2743, %v2773
      %v2775 = vrot.slane %v2488, %v2774
      %v2776 = vsel %vm2748, %v2775, %v2771
      %v2777 = vlaneseq
      %v2778 = vshrl.u32 %v2777, 7
      %v2779 = vsub.s32 %v2738, %v2778
      %v2780 = vrot.slane %v2489, %v2779
      %v2781 = vlaneseq
      %v2782 = vshrl.u32 %v2781, 7
      %v2783 = vsub.s32 %v2743, %v2782
      %v2784 = vrot.slane %v2490, %v2783
      %v2785 = vsel %vm2748, %v2784, %v2780
      %v2786 = vlaneseq
      %v2787 = vshrl.u32 %v2786, 7
      %v2788 = vsub.s32 %v2738, %v2787
      %v2789 = vrot.slane %v2491, %v2788
      %v2790 = vlaneseq
      %v2791 = vshrl.u32 %v2790, 7
      %v2792 = vsub.s32 %v2743, %v2791
      %v2793 = vrot.slane %v2492, %v2792
      %v2794 = vsel %vm2748, %v2793, %v2789
      %v2795 = vlaneseq
      %v2796 = vshrl.u32 %v2795, 7
      %v2797 = vsub.s32 %v2738, %v2796
      %v2798 = vrot.slane %v2493, %v2797
      %v2799 = vlaneseq
      %v2800 = vshrl.u32 %v2799, 7
      %v2801 = vsub.s32 %v2743, %v2800
      %v2802 = vrot.slane %v2494, %v2801
      %v2803 = vsel %vm2748, %v2802, %v2798
      %v2804 = vlaneseq
      %v2805 = vshrl.u32 %v2804, 7
      %v2806 = vsub.s32 %v2738, %v2805
      %v2807 = vrot.slane %v2495, %v2806
      %v2808 = vlaneseq
      %v2809 = vshrl.u32 %v2808, 7
      %v2810 = vsub.s32 %v2743, %v2809
      %v2811 = vrot.slane %v2496, %v2810
      %v2812 = vsel %vm2748, %v2811, %v2807
      %v2813 = vlaneseq
      %v2814 = vshrl.u32 %v2813, 7
      %v2815 = vsub.s32 %v2738, %v2814
      %v2816 = vrot.slane %v2497, %v2815
      %v2817 = vlaneseq
      %v2818 = vshrl.u32 %v2817, 7
      %v2819 = vsub.s32 %v2743, %v2818
      %v2820 = vrot.slane %v2498, %v2819
      %v2821 = vsel %vm2748, %v2820, %v2816
      %v2822 = vlaneseq
      %v2823 = vshrl.u32 %v2822, 7
      %v2824 = vsub.s32 %v2738, %v2823
      %v2825 = vrot.slane %v2499, %v2824
      %v2826 = vlaneseq
      %v2827 = vshrl.u32 %v2826, 7
      %v2828 = vsub.s32 %v2743, %v2827
      %v2829 = vrot.slane %v2500, %v2828
      %v2830 = vsel %vm2748, %v2829, %v2825
      %v2831 = vlaneseq
      %v2832 = vshrl.u32 %v2831, 7
      %v2833 = vsub.s32 %v2738, %v2832
      %v2834 = vrot.slane %v2501, %v2833
      %v2835 = vlaneseq
      %v2836 = vshrl.u32 %v2835, 7
      %v2837 = vsub.s32 %v2743, %v2836
      %v2838 = vrot.slane %v2502, %v2837
      %v2839 = vsel %vm2748, %v2838, %v2834
      %v2840 = vlaneseq
      %v2841 = vshrl.u32 %v2840, 7
      %v2842 = vsub.s32 %v2738, %v2841
      %v2843 = vrot.slane %v2503, %v2842
      %v2844 = vlaneseq
      %v2845 = vshrl.u32 %v2844, 7
      %v2846 = vsub.s32 %v2743, %v2845
      %v2847 = vrot.slane %v2504, %v2846
      %v2848 = vsel %vm2748, %v2847, %v2843
      %v2849 = vlaneseq
      %v2850 = vshrl.u32 %v2849, 7
      %v2851 = vsub.s32 %v2738, %v2850
      %v2852 = vrot.slane %v2505, %v2851
      %v2853 = vlaneseq
      %v2854 = vshrl.u32 %v2853, 7
      %v2855 = vsub.s32 %v2743, %v2854
      %v2856 = vrot.slane %v2506, %v2855
      %v2857 = vsel %vm2748, %v2856, %v2852
      %v2858 = vlaneseq
      %v2859 = vshrl.u32 %v2858, 7
      %v2860 = vsub.s32 %v2738, %v2859
      %v2861 = vrot.slane %v2507, %v2860
      %v2862 = vlaneseq
      %v2863 = vshrl.u32 %v2862, 7
      %v2864 = vsub.s32 %v2743, %v2863
      %v2865 = vrot.slane %v2508, %v2864
      %v2866 = vsel %vm2748, %v2865, %v2861
      %v2867 = vlaneseq
      %v2868 = vshrl.u32 %v2867, 7
      %v2869 = vsub.s32 %v2738, %v2868
      %v2870 = vrot.slane %v2509, %v2869
      %v2871 = vlaneseq
      %v2872 = vshrl.u32 %v2871, 7
      %v2873 = vsub.s32 %v2743, %v2872
      %v2874 = vrot.slane %v2510, %v2873
      %v2875 = vsel %vm2748, %v2874, %v2870
      %v2876 = vlaneseq
      %v2877 = vshrl.u32 %v2876, 7
      %v2878 = vsub.s32 %v2738, %v2877
      %v2879 = vrot.slane %v2511, %v2878
      %v2880 = vlaneseq
      %v2881 = vshrl.u32 %v2880, 7
      %v2882 = vsub.s32 %v2743, %v2881
      %v2883 = vrot.slane %v2512, %v2882
      %v2884 = vsel %vm2748, %v2883, %v2879
      %v2885 = vlaneseq
      %v2886 = vshrl.u32 %v2885, 7
      %v2887 = vsub.s32 %v2738, %v2886
      %v2888 = vrot.slane %v2513, %v2887
      %v2889 = vlaneseq
      %v2890 = vshrl.u32 %v2889, 7
      %v2891 = vsub.s32 %v2743, %v2890
      %v2892 = vrot.slane %v2514, %v2891
      %v2893 = vsel %vm2748, %v2892, %v2888
      %v2894 = vlaneseq
      %v2895 = vshrl.u32 %v2894, 7
      %v2896 = vsub.s32 %v2738, %v2895
      %v2897 = vrot.slane %v2515, %v2896
      %v2898 = vlaneseq
      %v2899 = vshrl.u32 %v2898, 7
      %v2900 = vsub.s32 %v2743, %v2899
      %v2901 = vrot.slane %v2516, %v2900
      %v2902 = vsel %vm2748, %v2901, %v2897
      %v2903 = vlaneseq
      %v2904 = vshrl.u32 %v2903, 7
      %v2905 = vsub.s32 %v2738, %v2904
      %v2906 = vrot.slane %v2517, %v2905
      %v2907 = vlaneseq
      %v2908 = vshrl.u32 %v2907, 7
      %v2909 = vsub.s32 %v2743, %v2908
      %v2910 = vrot.slane %v2518, %v2909
      %v2911 = vsel %vm2748, %v2910, %v2906
      %v2912 = vlaneseq
      %v2913 = vshrl.u32 %v2912, 7
      %v2914 = vsub.s32 %v2738, %v2913
      %v2915 = vrot.slane %v2519, %v2914
      %v2916 = vlaneseq
      %v2917 = vshrl.u32 %v2916, 7
      %v2918 = vsub.s32 %v2743, %v2917
      %v2919 = vrot.slane %v2520, %v2918
      %v2920 = vsel %vm2748, %v2919, %v2915
      %v2921 = vlaneseq
      %v2922 = vshrl.u32 %v2921, 7
      %v2923 = vsub.s32 %v2738, %v2922
      %v2924 = vrot.slane %v2521, %v2923
      %v2925 = vlaneseq
      %v2926 = vshrl.u32 %v2925, 7
      %v2927 = vsub.s32 %v2743, %v2926
      %v2928 = vrot.slane %v2522, %v2927
      %v2929 = vsel %vm2748, %v2928, %v2924
      %v2930 = vlaneseq
      %v2931 = vshrl.u32 %v2930, 7
      %v2932 = vsub.s32 %v2738, %v2931
      %v2933 = vrot.slane %v2523, %v2932
      %v2934 = vlaneseq
      %v2935 = vshrl.u32 %v2934, 7
      %v2936 = vsub.s32 %v2743, %v2935
      %v2937 = vrot.slane %v2524, %v2936
      %v2938 = vsel %vm2748, %v2937, %v2933
      %v2939 = vlaneseq
      %v2940 = vshrl.u32 %v2939, 7
      %v2941 = vsub.s32 %v2738, %v2940
      %v2942 = vrot.slane %v2525, %v2941
      %v2943 = vlaneseq
      %v2944 = vshrl.u32 %v2943, 7
      %v2945 = vsub.s32 %v2743, %v2944
      %v2946 = vrot.slane %v2526, %v2945
      %v2947 = vsel %vm2748, %v2946, %v2942
      %v2948 = vlaneseq
      %v2949 = vshrl.u32 %v2948, 7
      %v2950 = vsub.s32 %v2738, %v2949
      %v2951 = vrot.slane %v2527, %v2950
      %v2952 = vlaneseq
      %v2953 = vshrl.u32 %v2952, 7
      %v2954 = vsub.s32 %v2743, %v2953
      %v2955 = vrot.slane %v2528, %v2954
      %v2956 = vsel %vm2748, %v2955, %v2951
      %v2957 = vlaneseq
      %v2958 = vshrl.u32 %v2957, 7
      %v2959 = vsub.s32 %v2738, %v2958
      %v2960 = vrot.slane %v2529, %v2959
      %v2961 = vlaneseq
      %v2962 = vshrl.u32 %v2961, 7
      %v2963 = vsub.s32 %v2743, %v2962
      %v2964 = vrot.slane %v2530, %v2963
      %v2965 = vsel %vm2748, %v2964, %v2960
      %v2966 = vlaneseq
      %v2967 = vshrl.u32 %v2966, 7
      %v2968 = vsub.s32 %v2738, %v2967
      %v2969 = vrot.slane %v2531, %v2968
      %v2970 = vlaneseq
      %v2971 = vshrl.u32 %v2970, 7
      %v2972 = vsub.s32 %v2743, %v2971
      %v2973 = vrot.slane %v2532, %v2972
      %v2974 = vsel %vm2748, %v2973, %v2969
      %v2975 = vlaneseq
      %v2976 = vshrl.u32 %v2975, 7
      %v2977 = vsub.s32 %v2738, %v2976
      %v2978 = vrot.slane %v2533, %v2977
      %v2979 = vlaneseq
      %v2980 = vshrl.u32 %v2979, 7
      %v2981 = vsub.s32 %v2743, %v2980
      %v2982 = vrot.slane %v2534, %v2981
      %v2983 = vsel %vm2748, %v2982, %v2978
      %v2984 = vlaneseq
      %v2985 = vshrl.u32 %v2984, 7
      %v2986 = vsub.s32 %v2738, %v2985
      %v2987 = vrot.slane %v2535, %v2986
      %v2988 = vlaneseq
      %v2989 = vshrl.u32 %v2988, 7
      %v2990 = vsub.s32 %v2743, %v2989
      %v2991 = vrot.slane %v2536, %v2990
      %v2992 = vsel %vm2748, %v2991, %v2987
      %v2993 = vlaneseq
      %v2994 = vshrl.u32 %v2993, 7
      %v2995 = vsub.s32 %v2738, %v2994
      %v2996 = vrot.slane %v2537, %v2995
      %v2997 = vlaneseq
      %v2998 = vshrl.u32 %v2997, 7
      %v2999 = vsub.s32 %v2743, %v2998
      %v3000 = vrot.slane %v2538, %v2999
      %v3001 = vsel %vm2748, %v3000, %v2996
      %v3002 = vlaneseq
      %v3003 = vshrl.u32 %v3002, 7
      %v3004 = vsub.s32 %v2738, %v3003
      %v3005 = vrot.slane %v2539, %v3004
      %v3006 = vlaneseq
      %v3007 = vshrl.u32 %v3006, 7
      %v3008 = vsub.s32 %v2743, %v3007
      %v3009 = vrot.slane %v2540, %v3008
      %v3010 = vsel %vm2748, %v3009, %v3005
      %v3011 = vlaneseq
      %v3012 = vshrl.u32 %v3011, 7
      %v3013 = vsub.s32 %v2738, %v3012
      %v3014 = vrot.slane %v2541, %v3013
      %v3015 = vlaneseq
      %v3016 = vshrl.u32 %v3015, 7
      %v3017 = vsub.s32 %v2743, %v3016
      %v3018 = vrot.slane %v2542, %v3017
      %v3019 = vsel %vm2748, %v3018, %v3014
      %v3020 = vlaneseq
      %v3021 = vshrl.u32 %v3020, 7
      %v3022 = vsub.s32 %v2738, %v3021
      %v3023 = vrot.slane %v2543, %v3022
      %v3024 = vlaneseq
      %v3025 = vshrl.u32 %v3024, 7
      %v3026 = vsub.s32 %v2743, %v3025
      %v3027 = vrot.slane %v2544, %v3026
      %v3028 = vsel %vm2748, %v3027, %v3023
      %v3029 = vlaneseq
      %v3030 = vshrl.u32 %v3029, 7
      %v3031 = vsub.s32 %v2738, %v3030
      %v3032 = vrot.slane %v2545, %v3031
      %v3033 = vlaneseq
      %v3034 = vshrl.u32 %v3033, 7
      %v3035 = vsub.s32 %v2743, %v3034
      %v3036 = vrot.slane %v2546, %v3035
      %v3037 = vsel %vm2748, %v3036, %v3032
      %v3038 = vlaneseq
      %v3039 = vshrl.u32 %v3038, 7
      %v3040 = vsub.s32 %v2738, %v3039
      %v3041 = vrot.slane %v2547, %v3040
      %v3042 = vlaneseq
      %v3043 = vshrl.u32 %v3042, 7
      %v3044 = vsub.s32 %v2743, %v3043
      %v3045 = vrot.slane %v2548, %v3044
      %v3046 = vsel %vm2748, %v3045, %v3041
      %v3047 = vlaneseq
      %v3048 = vshrl.u32 %v3047, 7
      %v3049 = vsub.s32 %v2738, %v3048
      %v3050 = vrot.slane %v2549, %v3049
      %v3051 = vlaneseq
      %v3052 = vshrl.u32 %v3051, 7
      %v3053 = vsub.s32 %v2743, %v3052
      %v3054 = vrot.slane %v2550, %v3053
      %v3055 = vsel %vm2748, %v3054, %v3050
      %v3056 = vlaneseq
      %v3057 = vshrl.u32 %v3056, 7
      %v3058 = vsub.s32 %v2738, %v3057
      %v3059 = vrot.slane %v2551, %v3058
      %v3060 = vlaneseq
      %v3061 = vshrl.u32 %v3060, 7
      %v3062 = vsub.s32 %v2743, %v3061
      %v3063 = vrot.slane %v2552, %v3062
      %v3064 = vsel %vm2748, %v3063, %v3059
      %v3065 = vlaneseq
      %v3066 = vshrl.u32 %v3065, 7
      %v3067 = vsub.s32 %v2738, %v3066
      %v3068 = vrot.slane %v2553, %v3067
      %v3069 = vlaneseq
      %v3070 = vshrl.u32 %v3069, 7
      %v3071 = vsub.s32 %v2743, %v3070
      %v3072 = vrot.slane %v2554, %v3071
      %v3073 = vsel %vm2748, %v3072, %v3068
      %v3074 = vlaneseq
      %v3075 = vshrl.u32 %v3074, 7
      %v3076 = vsub.s32 %v2738, %v3075
      %v3077 = vrot.slane %v2555, %v3076
      %v3078 = vlaneseq
      %v3079 = vshrl.u32 %v3078, 7
      %v3080 = vsub.s32 %v2743, %v3079
      %v3081 = vrot.slane %v2556, %v3080
      %v3082 = vsel %vm2748, %v3081, %v3077
      %v3083 = vlaneseq
      %v3084 = vshrl.u32 %v3083, 7
      %v3085 = vsub.s32 %v2738, %v3084
      %v3086 = vrot.slane %v2557, %v3085
      %v3087 = vlaneseq
      %v3088 = vshrl.u32 %v3087, 7
      %v3089 = vsub.s32 %v2743, %v3088
      %v3090 = vrot.slane %v2558, %v3089
      %v3091 = vsel %vm2748, %v3090, %v3086
      %v3092 = vlaneseq
      %v3093 = vshrl.u32 %v3092, 7
      %v3094 = vsub.s32 %v2738, %v3093
      %v3095 = vrot.slane %v2559, %v3094
      %v3096 = vlaneseq
      %v3097 = vshrl.u32 %v3096, 7
      %v3098 = vsub.s32 %v2743, %v3097
      %v3099 = vrot.slane %v2560, %v3098
      %v3100 = vsel %vm2748, %v3099, %v3095
      %v3101 = vlaneseq
      %v3102 = vshrl.u32 %v3101, 7
      %v3103 = vsub.s32 %v2738, %v3102
      %v3104 = vrot.slane %v2561, %v3103
      %v3105 = vlaneseq
      %v3106 = vshrl.u32 %v3105, 7
      %v3107 = vsub.s32 %v2743, %v3106
      %v3108 = vrot.slane %v2562, %v3107
      %v3109 = vsel %vm2748, %v3108, %v3104
      %v3110 = vlaneseq
      %v3111 = vshrl.u32 %v3110, 7
      %v3112 = vsub.s32 %v2738, %v3111
      %v3113 = vrot.slane %v2563, %v3112
      %v3114 = vlaneseq
      %v3115 = vshrl.u32 %v3114, 7
      %v3116 = vsub.s32 %v2743, %v3115
      %v3117 = vrot.slane %v2564, %v3116
      %v3118 = vsel %vm2748, %v3117, %v3113
      %v3119 = vlaneseq
      %v3120 = vshrl.u32 %v3119, 7
      %v3121 = vsub.s32 %v2738, %v3120
      %v3122 = vrot.slane %v2565, %v3121
      %v3123 = vlaneseq
      %v3124 = vshrl.u32 %v3123, 7
      %v3125 = vsub.s32 %v2743, %v3124
      %v3126 = vrot.slane %v2566, %v3125
      %v3127 = vsel %vm2748, %v3126, %v3122
      %v3128 = vlaneseq
      %v3129 = vshrl.u32 %v3128, 7
      %v3130 = vsub.s32 %v2738, %v3129
      %v3131 = vrot.slane %v2567, %v3130
      %v3132 = vlaneseq
      %v3133 = vshrl.u32 %v3132, 7
      %v3134 = vsub.s32 %v2743, %v3133
      %v3135 = vrot.slane %v2568, %v3134
      %v3136 = vsel %vm2748, %v3135, %v3131
      %v3137 = vlaneseq
      %v3138 = vshrl.u32 %v3137, 7
      %v3139 = vsub.s32 %v2738, %v3138
      %v3140 = vrot.slane %v2569, %v3139
      %v3141 = vlaneseq
      %v3142 = vshrl.u32 %v3141, 7
      %v3143 = vsub.s32 %v2743, %v3142
      %v3144 = vrot.slane %v2570, %v3143
      %v3145 = vsel %vm2748, %v3144, %v3140
      %v3146 = vlaneseq
      %v3147 = vshrl.u32 %v3146, 7
      %v3148 = vsub.s32 %v2738, %v3147
      %v3149 = vrot.slane %v2571, %v3148
      %v3150 = vlaneseq
      %v3151 = vshrl.u32 %v3150, 7
      %v3152 = vsub.s32 %v2743, %v3151
      %v3153 = vrot.slane %v2572, %v3152
      %v3154 = vsel %vm2748, %v3153, %v3149
      %v3155 = vlaneseq
      %v3156 = vshrl.u32 %v3155, 7
      %v3157 = vsub.s32 %v2738, %v3156
      %v3158 = vrot.slane %v2573, %v3157
      %v3159 = vlaneseq
      %v3160 = vshrl.u32 %v3159, 7
      %v3161 = vsub.s32 %v2743, %v3160
      %v3162 = vrot.slane %v2574, %v3161
      %v3163 = vsel %vm2748, %v3162, %v3158
      %v3164 = vlaneseq
      %v3165 = vshrl.u32 %v3164, 7
      %v3166 = vsub.s32 %v2738, %v3165
      %v3167 = vrot.slane %v2575, %v3166
      %v3168 = vlaneseq
      %v3169 = vshrl.u32 %v3168, 7
      %v3170 = vsub.s32 %v2743, %v3169
      %v3171 = vrot.slane %v2576, %v3170
      %v3172 = vsel %vm2748, %v3171, %v3167
      %v3173 = vlaneseq
      %v3174 = vshrl.u32 %v3173, 7
      %v3175 = vsub.s32 %v2738, %v3174
      %v3176 = vrot.slane %v2577, %v3175
      %v3177 = vlaneseq
      %v3178 = vshrl.u32 %v3177, 7
      %v3179 = vsub.s32 %v2743, %v3178
      %v3180 = vrot.slane %v2578, %v3179
      %v3181 = vsel %vm2748, %v3180, %v3176
      %v3182 = vlaneseq
      %v3183 = vshrl.u32 %v3182, 7
      %v3184 = vsub.s32 %v2738, %v3183
      %v3185 = vrot.slane %v2579, %v3184
      %v3186 = vlaneseq
      %v3187 = vshrl.u32 %v3186, 7
      %v3188 = vsub.s32 %v2743, %v3187
      %v3189 = vrot.slane %v2580, %v3188
      %v3190 = vsel %vm2748, %v3189, %v3185
      %v3191 = vlaneseq
      %v3192 = vshrl.u32 %v3191, 7
      %v3193 = vsub.s32 %v2738, %v3192
      %v3194 = vrot.slane %v2581, %v3193
      %v3195 = vlaneseq
      %v3196 = vshrl.u32 %v3195, 7
      %v3197 = vsub.s32 %v2743, %v3196
      %v3198 = vrot.slane %v2582, %v3197
      %v3199 = vsel %vm2748, %v3198, %v3194
      %v3200 = vlaneseq
      %v3201 = vshrl.u32 %v3200, 7
      %v3202 = vsub.s32 %v2738, %v3201
      %v3203 = vrot.slane %v2583, %v3202
      %v3204 = vlaneseq
      %v3205 = vshrl.u32 %v3204, 7
      %v3206 = vsub.s32 %v2743, %v3205
      %v3207 = vrot.slane %v2584, %v3206
      %v3208 = vsel %vm2748, %v3207, %v3203
      %v3209 = vlaneseq
      %v3210 = vshrl.u32 %v3209, 7
      %v3211 = vsub.s32 %v2738, %v3210
      %v3212 = vrot.slane %v2585, %v3211
      %v3213 = vlaneseq
      %v3214 = vshrl.u32 %v3213, 7
      %v3215 = vsub.s32 %v2743, %v3214
      %v3216 = vrot.slane %v2586, %v3215
      %v3217 = vsel %vm2748, %v3216, %v3212
      %v3218 = vlaneseq
      %v3219 = vshrl.u32 %v3218, 7
      %v3220 = vsub.s32 %v2738, %v3219
      %v3221 = vrot.slane %v2587, %v3220
      %v3222 = vlaneseq
      %v3223 = vshrl.u32 %v3222, 7
      %v3224 = vsub.s32 %v2743, %v3223
      %v3225 = vrot.slane %v2588, %v3224
      %v3226 = vsel %vm2748, %v3225, %v3221
      %v3227 = vlaneseq
      %v3228 = vshrl.u32 %v3227, 7
      %v3229 = vsub.s32 %v2738, %v3228
      %v3230 = vrot.slane %v2589, %v3229
      %v3231 = vlaneseq
      %v3232 = vshrl.u32 %v3231, 7
      %v3233 = vsub.s32 %v2743, %v3232
      %v3234 = vrot.slane %v2590, %v3233
      %v3235 = vsel %vm2748, %v3234, %v3230
      %v3236 = vlaneseq
      %v3237 = vshrl.u32 %v3236, 7
      %v3238 = vsub.s32 %v2738, %v3237
      %v3239 = vrot.slane %v2591, %v3238
      %v3240 = vlaneseq
      %v3241 = vshrl.u32 %v3240, 7
      %v3242 = vsub.s32 %v2743, %v3241
      %v3243 = vrot.slane %v2592, %v3242
      %v3244 = vsel %vm2748, %v3243, %v3239
      %v3245 = vlaneseq
      %v3246 = vshrl.u32 %v3245, 7
      %v3247 = vsub.s32 %v2738, %v3246
      %v3248 = vrot.slane %v2593, %v3247
      %v3249 = vlaneseq
      %v3250 = vshrl.u32 %v3249, 7
      %v3251 = vsub.s32 %v2743, %v3250
      %v3252 = vrot.slane %v2594, %v3251
      %v3253 = vsel %vm2748, %v3252, %v3248
      %v3254 = vlaneseq
      %v3255 = vshrl.u32 %v3254, 7
      %v3256 = vsub.s32 %v2738, %v3255
      %v3257 = vrot.slane %v2595, %v3256
      %v3258 = vlaneseq
      %v3259 = vshrl.u32 %v3258, 7
      %v3260 = vsub.s32 %v2743, %v3259
      %v3261 = vrot.slane %v2596, %v3260
      %v3262 = vsel %vm2748, %v3261, %v3257
      %v3263 = vlaneseq
      %v3264 = vshrl.u32 %v3263, 7
      %v3265 = vsub.s32 %v2738, %v3264
      %v3266 = vrot.slane %v2597, %v3265
      %v3267 = vlaneseq
      %v3268 = vshrl.u32 %v3267, 7
      %v3269 = vsub.s32 %v2743, %v3268
      %v3270 = vrot.slane %v2598, %v3269
      %v3271 = vsel %vm2748, %v3270, %v3266
      %v3272 = vlaneseq
      %v3273 = vshrl.u32 %v3272, 7
      %v3274 = vsub.s32 %v2738, %v3273
      %v3275 = vrot.slane %v2599, %v3274
      %v3276 = vlaneseq
      %v3277 = vshrl.u32 %v3276, 7
      %v3278 = vsub.s32 %v2743, %v3277
      %v3279 = vrot.slane %v2600, %v3278
      %v3280 = vsel %vm2748, %v3279, %v3275
      %v3281 = vlaneseq
      %v3282 = vshrl.u32 %v3281, 7
      %v3283 = vsub.s32 %v2738, %v3282
      %v3284 = vrot.slane %v2601, %v3283
      %v3285 = vlaneseq
      %v3286 = vshrl.u32 %v3285, 7
      %v3287 = vsub.s32 %v2743, %v3286
      %v3288 = vrot.slane %v2602, %v3287
      %v3289 = vsel %vm2748, %v3288, %v3284
      %v3290 = vlaneseq
      %v3291 = vshrl.u32 %v3290, 7
      %v3292 = vsub.s32 %v2738, %v3291
      %v3293 = vrot.slane %v2603, %v3292
      %v3294 = vlaneseq
      %v3295 = vshrl.u32 %v3294, 7
      %v3296 = vsub.s32 %v2743, %v3295
      %v3297 = vrot.slane %v2604, %v3296
      %v3298 = vsel %vm2748, %v3297, %v3293
      %v3299 = vlaneseq
      %v3300 = vshrl.u32 %v3299, 7
      %v3301 = vsub.s32 %v2738, %v3300
      %v3302 = vrot.slane %v2605, %v3301
      %v3303 = vlaneseq
      %v3304 = vshrl.u32 %v3303, 7
      %v3305 = vsub.s32 %v2743, %v3304
      %v3306 = vrot.slane %v2606, %v3305
      %v3307 = vsel %vm2748, %v3306, %v3302
      %v3308 = vlaneseq
      %v3309 = vshrl.u32 %v3308, 7
      %v3310 = vsub.s32 %v2738, %v3309
      %v3311 = vrot.slane %v2607, %v3310
      %v3312 = vlaneseq
      %v3313 = vshrl.u32 %v3312, 7
      %v3314 = vsub.s32 %v2743, %v3313
      %v3315 = vrot.slane %v2608, %v3314
      %v3316 = vsel %vm2748, %v3315, %v3311
      %vm3317 = vcmask 1041409
      %v3318 = vsel %vm3317, %v2758, %v2749
      %vm3319 = vcmask 1042434
      %v3320 = vsel %vm3319, %v2767, %v3318
      %vm3321 = vcmask 1043459
      %v3322 = vsel %vm3321, %v2776, %v3320
      %vm3323 = vcmask 1044484
      %v3324 = vsel %vm3323, %v2785, %v3322
      %vm3325 = vcmask 1045509
      %v3326 = vsel %vm3325, %v2794, %v3324
      %vm3327 = vcmask 1046534
      %v3328 = vsel %vm3327, %v2803, %v3326
      %vm3329 = vcmask 1047559
      %v3330 = vsel %vm3329, %v2812, %v3328
      %v3331 = vsel %vm3317, %v2830, %v2821
      %v3332 = vsel %vm3319, %v2839, %v3331
      %v3333 = vsel %vm3321, %v2848, %v3332
      %v3334 = vsel %vm3323, %v2857, %v3333
      %v3335 = vsel %vm3325, %v2866, %v3334
      %v3336 = vsel %vm3327, %v2875, %v3335
      %v3337 = vsel %vm3329, %v2884, %v3336
      %v3338 = vsel %vm3317, %v2902, %v2893
      %v3339 = vsel %vm3319, %v2911, %v3338
      %v3340 = vsel %vm3321, %v2920, %v3339
      %v3341 = vsel %vm3323, %v2929, %v3340
      %v3342 = vsel %vm3325, %v2938, %v3341
      %v3343 = vsel %vm3327, %v2947, %v3342
      %v3344 = vsel %vm3329, %v2956, %v3343
      %v3345 = vsel %vm3317, %v2974, %v2965
      %v3346 = vsel %vm3319, %v2983, %v3345
      %v3347 = vsel %vm3321, %v2992, %v3346
      %v3348 = vsel %vm3323, %v3001, %v3347
      %v3349 = vsel %vm3325, %v3010, %v3348
      %v3350 = vsel %vm3327, %v3019, %v3349
      %v3351 = vsel %vm3329, %v3028, %v3350
      %v3352 = vsel %vm3317, %v3046, %v3037
      %v3353 = vsel %vm3319, %v3055, %v3352
      %v3354 = vsel %vm3321, %v3064, %v3353
      %v3355 = vsel %vm3323, %v3073, %v3354
      %v3356 = vsel %vm3325, %v3082, %v3355
      %v3357 = vsel %vm3327, %v3091, %v3356
      %v3358 = vsel %vm3329, %v3100, %v3357
      %v3359 = vsel %vm3317, %v3118, %v3109
      %v3360 = vsel %vm3319, %v3127, %v3359
      %v3361 = vsel %vm3321, %v3136, %v3360
      %v3362 = vsel %vm3323, %v3145, %v3361
      %v3363 = vsel %vm3325, %v3154, %v3362
      %v3364 = vsel %vm3327, %v3163, %v3363
      %v3365 = vsel %vm3329, %v3172, %v3364
      %v3366 = vsel %vm3317, %v3190, %v3181
      %v3367 = vsel %vm3319, %v3199, %v3366
      %v3368 = vsel %vm3321, %v3208, %v3367
      %v3369 = vsel %vm3323, %v3217, %v3368
      %v3370 = vsel %vm3325, %v3226, %v3369
      %v3371 = vsel %vm3327, %v3235, %v3370
      %v3372 = vsel %vm3329, %v3244, %v3371
      %v3373 = vsel %vm3317, %v3262, %v3253
      %v3374 = vsel %vm3319, %v3271, %v3373
      %v3375 = vsel %vm3321, %v3280, %v3374
      %v3376 = vsel %vm3323, %v3289, %v3375
      %v3377 = vsel %vm3325, %v3298, %v3376
      %v3378 = vsel %vm3327, %v3307, %v3377
      %v3379 = vsel %vm3329, %v3316, %v3378
      %v3388 = vsel %vm128, %v3330, 0.0
      %3389 = vadd.xlane.f32.xlu0 %v3388
      %v3390 = vpop.xlane.xlu0 %3389
      %v3391 = vsel %vm128, %v3337, 0.0
      %3392 = vadd.xlane.f32.xlu0 %v3391
      %v3393 = vpop.xlane.xlu0 %3392
      %v3394 = vsel %vm128, %v3344, 0.0
      %3395 = vadd.xlane.f32.xlu0 %v3394
      %v3396 = vpop.xlane.xlu0 %3395
      %v3397 = vsel %vm128, %v3351, 0.0
      %3398 = vadd.xlane.f32.xlu0 %v3397
      %v3399 = vpop.xlane.xlu0 %3398
      %v3400 = vsel %vm128, %v3358, 0.0
      %3401 = vadd.xlane.f32.xlu0 %v3400
      %v3402 = vpop.xlane.xlu0 %3401
      %v3403 = vsel %vm128, %v3365, 0.0
      %3404 = vadd.xlane.f32.xlu0 %v3403
      %v3405 = vpop.xlane.xlu0 %3404
      %v3406 = vsel %vm128, %v3372, 0.0
      %3407 = vadd.xlane.f32.xlu0 %v3406
      %v3408 = vpop.xlane.xlu0 %3407
      %v3409 = vsel %vm128, %v3379, 0.0
      %3410 = vadd.xlane.f32.xlu0 %v3409
      %v3411 = vpop.xlane.xlu0 %3410
      %v3412 = vlaneseq
      %v3413 = vshrl.u32 %v3412, 7
      %v3414 = vsub.s32 0, %v3413
      %v3415 = vrot.slane %v153, %v3414
      %3417 = vbcast.lane.b32.xlu0 %v3415, 256
      %v3418 = vpop.permute.xlu0 %3417
      %s3420 = sor.u32 256, 8
      %3421 = vbcast.lane.b32.xlu0 %v3415, %s3420
      %v3422 = vpop.permute.xlu0 %3421
      %v3423 = vlaneseq
      %v3424 = vshrl.u32 %v3423, 7
      %v3425 = vsub.s32 1, %v3424
      %v3426 = vrot.slane %v153, %v3425
      %3428 = vbcast.lane.b32.xlu0 %v3426, 256
      %v3429 = vpop.permute.xlu0 %3428
      %s3431 = sor.u32 256, 8
      %3432 = vbcast.lane.b32.xlu0 %v3426, %s3431
      %v3433 = vpop.permute.xlu0 %3432
      %v3434 = vlaneseq
      %v3435 = vshrl.u32 %v3434, 7
      %v3436 = vsub.s32 2, %v3435
      %v3437 = vrot.slane %v153, %v3436
      %3439 = vbcast.lane.b32.xlu0 %v3437, 256
      %v3440 = vpop.permute.xlu0 %3439
      %s3442 = sor.u32 256, 8
      %3443 = vbcast.lane.b32.xlu0 %v3437, %s3442
      %v3444 = vpop.permute.xlu0 %3443
      %v3445 = vlaneseq
      %v3446 = vshrl.u32 %v3445, 7
      %v3447 = vsub.s32 3, %v3446
      %v3448 = vrot.slane %v153, %v3447
      %3450 = vbcast.lane.b32.xlu0 %v3448, 256
      %v3451 = vpop.permute.xlu0 %3450
      %s3453 = sor.u32 256, 8
      %3454 = vbcast.lane.b32.xlu0 %v3448, %s3453
      %v3455 = vpop.permute.xlu0 %3454
      %v3456 = vlaneseq
      %v3457 = vshrl.u32 %v3456, 7
      %v3458 = vsub.s32 4, %v3457
      %v3459 = vrot.slane %v153, %v3458
      %3461 = vbcast.lane.b32.xlu0 %v3459, 256
      %v3462 = vpop.permute.xlu0 %3461
      %s3464 = sor.u32 256, 8
      %3465 = vbcast.lane.b32.xlu0 %v3459, %s3464
      %v3466 = vpop.permute.xlu0 %3465
      %v3467 = vlaneseq
      %v3468 = vshrl.u32 %v3467, 7
      %v3469 = vsub.s32 5, %v3468
      %v3470 = vrot.slane %v153, %v3469
      %3472 = vbcast.lane.b32.xlu0 %v3470, 256
      %v3473 = vpop.permute.xlu0 %3472
      %s3475 = sor.u32 256, 8
      %3476 = vbcast.lane.b32.xlu0 %v3470, %s3475
      %v3477 = vpop.permute.xlu0 %3476
      %v3478 = vlaneseq
      %v3479 = vshrl.u32 %v3478, 7
      %v3480 = vsub.s32 6, %v3479
      %v3481 = vrot.slane %v153, %v3480
      %3483 = vbcast.lane.b32.xlu0 %v3481, 256
      %v3484 = vpop.permute.xlu0 %3483
      %s3486 = sor.u32 256, 8
      %3487 = vbcast.lane.b32.xlu0 %v3481, %s3486
      %v3488 = vpop.permute.xlu0 %3487
      %v3489 = vlaneseq
      %v3490 = vshrl.u32 %v3489, 7
      %v3491 = vsub.s32 7, %v3490
      %v3492 = vrot.slane %v153, %v3491
      %3494 = vbcast.lane.b32.xlu0 %v3492, 256
      %v3495 = vpop.permute.xlu0 %3494
      %s3497 = sor.u32 256, 8
      %3498 = vbcast.lane.b32.xlu0 %v3492, %s3497
      %v3499 = vpop.permute.xlu0 %3498
      %v3500 = vlaneseq
      %v3501 = vshrl.u32 %v3500, 7
      %v3502 = vsub.s32 0, %v3501
      %v3503 = vrot.slane %v154, %v3502
      %3505 = vbcast.lane.b32.xlu0 %v3503, 256
      %v3506 = vpop.permute.xlu0 %3505
      %s3508 = sor.u32 256, 8
      %3509 = vbcast.lane.b32.xlu0 %v3503, %s3508
      %v3510 = vpop.permute.xlu0 %3509
      %v3511 = vlaneseq
      %v3512 = vshrl.u32 %v3511, 7
      %v3513 = vsub.s32 1, %v3512
      %v3514 = vrot.slane %v154, %v3513
      %3516 = vbcast.lane.b32.xlu0 %v3514, 256
      %v3517 = vpop.permute.xlu0 %3516
      %s3519 = sor.u32 256, 8
      %3520 = vbcast.lane.b32.xlu0 %v3514, %s3519
      %v3521 = vpop.permute.xlu0 %3520
      %v3522 = vlaneseq
      %v3523 = vshrl.u32 %v3522, 7
      %v3524 = vsub.s32 2, %v3523
      %v3525 = vrot.slane %v154, %v3524
      %3527 = vbcast.lane.b32.xlu0 %v3525, 256
      %v3528 = vpop.permute.xlu0 %3527
      %s3530 = sor.u32 256, 8
      %3531 = vbcast.lane.b32.xlu0 %v3525, %s3530
      %v3532 = vpop.permute.xlu0 %3531
      %v3533 = vlaneseq
      %v3534 = vshrl.u32 %v3533, 7
      %v3535 = vsub.s32 3, %v3534
      %v3536 = vrot.slane %v154, %v3535
      %3538 = vbcast.lane.b32.xlu0 %v3536, 256
      %v3539 = vpop.permute.xlu0 %3538
      %s3541 = sor.u32 256, 8
      %3542 = vbcast.lane.b32.xlu0 %v3536, %s3541
      %v3543 = vpop.permute.xlu0 %3542
      %v3544 = vlaneseq
      %v3545 = vshrl.u32 %v3544, 7
      %v3546 = vsub.s32 4, %v3545
      %v3547 = vrot.slane %v154, %v3546
      %3549 = vbcast.lane.b32.xlu0 %v3547, 256
      %v3550 = vpop.permute.xlu0 %3549
      %s3552 = sor.u32 256, 8
      %3553 = vbcast.lane.b32.xlu0 %v3547, %s3552
      %v3554 = vpop.permute.xlu0 %3553
      %v3555 = vlaneseq
      %v3556 = vshrl.u32 %v3555, 7
      %v3557 = vsub.s32 5, %v3556
      %v3558 = vrot.slane %v154, %v3557
      %3560 = vbcast.lane.b32.xlu0 %v3558, 256
      %v3561 = vpop.permute.xlu0 %3560
      %s3563 = sor.u32 256, 8
      %3564 = vbcast.lane.b32.xlu0 %v3558, %s3563
      %v3565 = vpop.permute.xlu0 %3564
      %v3566 = vlaneseq
      %v3567 = vshrl.u32 %v3566, 7
      %v3568 = vsub.s32 6, %v3567
      %v3569 = vrot.slane %v154, %v3568
      %3571 = vbcast.lane.b32.xlu0 %v3569, 256
      %v3572 = vpop.permute.xlu0 %3571
      %s3574 = sor.u32 256, 8
      %3575 = vbcast.lane.b32.xlu0 %v3569, %s3574
      %v3576 = vpop.permute.xlu0 %3575
      %v3577 = vlaneseq
      %v3578 = vshrl.u32 %v3577, 7
      %v3579 = vsub.s32 7, %v3578
      %v3580 = vrot.slane %v154, %v3579
      %3582 = vbcast.lane.b32.xlu0 %v3580, 256
      %v3583 = vpop.permute.xlu0 %3582
      %s3585 = sor.u32 256, 8
      %3586 = vbcast.lane.b32.xlu0 %v3580, %s3585
      %v3587 = vpop.permute.xlu0 %3586
      %v3588 = vlaneseq
      %v3589 = vshrl.u32 %v3588, 7
      %v3590 = vsub.s32 0, %v3589
      %v3591 = vrot.slane %v155, %v3590
      %3593 = vbcast.lane.b32.xlu0 %v3591, 256
      %v3594 = vpop.permute.xlu0 %3593
      %s3596 = sor.u32 256, 8
      %3597 = vbcast.lane.b32.xlu0 %v3591, %s3596
      %v3598 = vpop.permute.xlu0 %3597
      %v3599 = vlaneseq
      %v3600 = vshrl.u32 %v3599, 7
      %v3601 = vsub.s32 1, %v3600
      %v3602 = vrot.slane %v155, %v3601
      %3604 = vbcast.lane.b32.xlu0 %v3602, 256
      %v3605 = vpop.permute.xlu0 %3604
      %s3607 = sor.u32 256, 8
      %3608 = vbcast.lane.b32.xlu0 %v3602, %s3607
      %v3609 = vpop.permute.xlu0 %3608
      %v3610 = vlaneseq
      %v3611 = vshrl.u32 %v3610, 7
      %v3612 = vsub.s32 2, %v3611
      %v3613 = vrot.slane %v155, %v3612
      %3615 = vbcast.lane.b32.xlu0 %v3613, 256
      %v3616 = vpop.permute.xlu0 %3615
      %s3618 = sor.u32 256, 8
      %3619 = vbcast.lane.b32.xlu0 %v3613, %s3618
      %v3620 = vpop.permute.xlu0 %3619
      %v3621 = vlaneseq
      %v3622 = vshrl.u32 %v3621, 7
      %v3623 = vsub.s32 3, %v3622
      %v3624 = vrot.slane %v155, %v3623
      %3626 = vbcast.lane.b32.xlu0 %v3624, 256
      %v3627 = vpop.permute.xlu0 %3626
      %s3629 = sor.u32 256, 8
      %3630 = vbcast.lane.b32.xlu0 %v3624, %s3629
      %v3631 = vpop.permute.xlu0 %3630
      %v3632 = vlaneseq
      %v3633 = vshrl.u32 %v3632, 7
      %v3634 = vsub.s32 4, %v3633
      %v3635 = vrot.slane %v155, %v3634
      %3637 = vbcast.lane.b32.xlu0 %v3635, 256
      %v3638 = vpop.permute.xlu0 %3637
      %s3640 = sor.u32 256, 8
      %3641 = vbcast.lane.b32.xlu0 %v3635, %s3640
      %v3642 = vpop.permute.xlu0 %3641
      %v3643 = vlaneseq
      %v3644 = vshrl.u32 %v3643, 7
      %v3645 = vsub.s32 5, %v3644
      %v3646 = vrot.slane %v155, %v3645
      %3648 = vbcast.lane.b32.xlu0 %v3646, 256
      %v3649 = vpop.permute.xlu0 %3648
      %s3651 = sor.u32 256, 8
      %3652 = vbcast.lane.b32.xlu0 %v3646, %s3651
      %v3653 = vpop.permute.xlu0 %3652
      %v3654 = vlaneseq
      %v3655 = vshrl.u32 %v3654, 7
      %v3656 = vsub.s32 6, %v3655
      %v3657 = vrot.slane %v155, %v3656
      %3659 = vbcast.lane.b32.xlu0 %v3657, 256
      %v3660 = vpop.permute.xlu0 %3659
      %s3662 = sor.u32 256, 8
      %3663 = vbcast.lane.b32.xlu0 %v3657, %s3662
      %v3664 = vpop.permute.xlu0 %3663
      %v3665 = vlaneseq
      %v3666 = vshrl.u32 %v3665, 7
      %v3667 = vsub.s32 7, %v3666
      %v3668 = vrot.slane %v155, %v3667
      %3670 = vbcast.lane.b32.xlu0 %v3668, 256
      %v3671 = vpop.permute.xlu0 %3670
      %s3673 = sor.u32 256, 8
      %3674 = vbcast.lane.b32.xlu0 %v3668, %s3673
      %v3675 = vpop.permute.xlu0 %3674
      %v3676 = vlaneseq
      %v3677 = vshrl.u32 %v3676, 7
      %v3678 = vsub.s32 0, %v3677
      %v3679 = vrot.slane %v156, %v3678
      %3681 = vbcast.lane.b32.xlu0 %v3679, 256
      %v3682 = vpop.permute.xlu0 %3681
      %s3684 = sor.u32 256, 8
      %3685 = vbcast.lane.b32.xlu0 %v3679, %s3684
      %v3686 = vpop.permute.xlu0 %3685
      %v3687 = vlaneseq
      %v3688 = vshrl.u32 %v3687, 7
      %v3689 = vsub.s32 1, %v3688
      %v3690 = vrot.slane %v156, %v3689
      %3692 = vbcast.lane.b32.xlu0 %v3690, 256
      %v3693 = vpop.permute.xlu0 %3692
      %s3695 = sor.u32 256, 8
      %3696 = vbcast.lane.b32.xlu0 %v3690, %s3695
      %v3697 = vpop.permute.xlu0 %3696
      %v3698 = vlaneseq
      %v3699 = vshrl.u32 %v3698, 7
      %v3700 = vsub.s32 2, %v3699
      %v3701 = vrot.slane %v156, %v3700
      %3703 = vbcast.lane.b32.xlu0 %v3701, 256
      %v3704 = vpop.permute.xlu0 %3703
      %s3706 = sor.u32 256, 8
      %3707 = vbcast.lane.b32.xlu0 %v3701, %s3706
      %v3708 = vpop.permute.xlu0 %3707
      %v3709 = vlaneseq
      %v3710 = vshrl.u32 %v3709, 7
      %v3711 = vsub.s32 3, %v3710
      %v3712 = vrot.slane %v156, %v3711
      %3714 = vbcast.lane.b32.xlu0 %v3712, 256
      %v3715 = vpop.permute.xlu0 %3714
      %s3717 = sor.u32 256, 8
      %3718 = vbcast.lane.b32.xlu0 %v3712, %s3717
      %v3719 = vpop.permute.xlu0 %3718
      %v3720 = vlaneseq
      %v3721 = vshrl.u32 %v3720, 7
      %v3722 = vsub.s32 4, %v3721
      %v3723 = vrot.slane %v156, %v3722
      %3725 = vbcast.lane.b32.xlu0 %v3723, 256
      %v3726 = vpop.permute.xlu0 %3725
      %s3728 = sor.u32 256, 8
      %3729 = vbcast.lane.b32.xlu0 %v3723, %s3728
      %v3730 = vpop.permute.xlu0 %3729
      %v3731 = vlaneseq
      %v3732 = vshrl.u32 %v3731, 7
      %v3733 = vsub.s32 5, %v3732
      %v3734 = vrot.slane %v156, %v3733
      %3736 = vbcast.lane.b32.xlu0 %v3734, 256
      %v3737 = vpop.permute.xlu0 %3736
      %s3739 = sor.u32 256, 8
      %3740 = vbcast.lane.b32.xlu0 %v3734, %s3739
      %v3741 = vpop.permute.xlu0 %3740
      %v3742 = vlaneseq
      %v3743 = vshrl.u32 %v3742, 7
      %v3744 = vsub.s32 6, %v3743
      %v3745 = vrot.slane %v156, %v3744
      %3747 = vbcast.lane.b32.xlu0 %v3745, 256
      %v3748 = vpop.permute.xlu0 %3747
      %s3750 = sor.u32 256, 8
      %3751 = vbcast.lane.b32.xlu0 %v3745, %s3750
      %v3752 = vpop.permute.xlu0 %3751
      %v3753 = vlaneseq
      %v3754 = vshrl.u32 %v3753, 7
      %v3755 = vsub.s32 7, %v3754
      %v3756 = vrot.slane %v156, %v3755
      %3758 = vbcast.lane.b32.xlu0 %v3756, 256
      %v3759 = vpop.permute.xlu0 %3758
      %s3761 = sor.u32 256, 8
      %3762 = vbcast.lane.b32.xlu0 %v3756, %s3761
      %v3763 = vpop.permute.xlu0 %3762
      %v3764 = vlaneseq
      %v3765 = vshrl.u32 %v3764, 7
      %v3766 = vsub.s32 0, %v3765
      %v3767 = vrot.slane %v157, %v3766
      %3769 = vbcast.lane.b32.xlu0 %v3767, 256
      %v3770 = vpop.permute.xlu0 %3769
      %s3772 = sor.u32 256, 8
      %3773 = vbcast.lane.b32.xlu0 %v3767, %s3772
      %v3774 = vpop.permute.xlu0 %3773
      %v3775 = vlaneseq
      %v3776 = vshrl.u32 %v3775, 7
      %v3777 = vsub.s32 1, %v3776
      %v3778 = vrot.slane %v157, %v3777
      %3780 = vbcast.lane.b32.xlu0 %v3778, 256
      %v3781 = vpop.permute.xlu0 %3780
      %s3783 = sor.u32 256, 8
      %3784 = vbcast.lane.b32.xlu0 %v3778, %s3783
      %v3785 = vpop.permute.xlu0 %3784
      %v3786 = vlaneseq
      %v3787 = vshrl.u32 %v3786, 7
      %v3788 = vsub.s32 2, %v3787
      %v3789 = vrot.slane %v157, %v3788
      %3791 = vbcast.lane.b32.xlu0 %v3789, 256
      %v3792 = vpop.permute.xlu0 %3791
      %s3794 = sor.u32 256, 8
      %3795 = vbcast.lane.b32.xlu0 %v3789, %s3794
      %v3796 = vpop.permute.xlu0 %3795
      %v3797 = vlaneseq
      %v3798 = vshrl.u32 %v3797, 7
      %v3799 = vsub.s32 3, %v3798
      %v3800 = vrot.slane %v157, %v3799
      %3802 = vbcast.lane.b32.xlu0 %v3800, 256
      %v3803 = vpop.permute.xlu0 %3802
      %s3805 = sor.u32 256, 8
      %3806 = vbcast.lane.b32.xlu0 %v3800, %s3805
      %v3807 = vpop.permute.xlu0 %3806
      %v3808 = vlaneseq
      %v3809 = vshrl.u32 %v3808, 7
      %v3810 = vsub.s32 4, %v3809
      %v3811 = vrot.slane %v157, %v3810
      %3813 = vbcast.lane.b32.xlu0 %v3811, 256
      %v3814 = vpop.permute.xlu0 %3813
      %s3816 = sor.u32 256, 8
      %3817 = vbcast.lane.b32.xlu0 %v3811, %s3816
      %v3818 = vpop.permute.xlu0 %3817
      %v3819 = vlaneseq
      %v3820 = vshrl.u32 %v3819, 7
      %v3821 = vsub.s32 5, %v3820
      %v3822 = vrot.slane %v157, %v3821
      %3824 = vbcast.lane.b32.xlu0 %v3822, 256
      %v3825 = vpop.permute.xlu0 %3824
      %s3827 = sor.u32 256, 8
      %3828 = vbcast.lane.b32.xlu0 %v3822, %s3827
      %v3829 = vpop.permute.xlu0 %3828
      %v3830 = vlaneseq
      %v3831 = vshrl.u32 %v3830, 7
      %v3832 = vsub.s32 6, %v3831
      %v3833 = vrot.slane %v157, %v3832
      %3835 = vbcast.lane.b32.xlu0 %v3833, 256
      %v3836 = vpop.permute.xlu0 %3835
      %s3838 = sor.u32 256, 8
      %3839 = vbcast.lane.b32.xlu0 %v3833, %s3838
      %v3840 = vpop.permute.xlu0 %3839
      %v3841 = vlaneseq
      %v3842 = vshrl.u32 %v3841, 7
      %v3843 = vsub.s32 7, %v3842
      %v3844 = vrot.slane %v157, %v3843
      %3846 = vbcast.lane.b32.xlu0 %v3844, 256
      %v3847 = vpop.permute.xlu0 %3846
      %s3849 = sor.u32 256, 8
      %3850 = vbcast.lane.b32.xlu0 %v3844, %s3849
      %v3851 = vpop.permute.xlu0 %3850
      %v3852 = vlaneseq
      %v3853 = vshrl.u32 %v3852, 7
      %v3854 = vsub.s32 0, %v3853
      %v3855 = vrot.slane %v158, %v3854
      %3857 = vbcast.lane.b32.xlu0 %v3855, 256
      %v3858 = vpop.permute.xlu0 %3857
      %s3860 = sor.u32 256, 8
      %3861 = vbcast.lane.b32.xlu0 %v3855, %s3860
      %v3862 = vpop.permute.xlu0 %3861
      %v3863 = vlaneseq
      %v3864 = vshrl.u32 %v3863, 7
      %v3865 = vsub.s32 1, %v3864
      %v3866 = vrot.slane %v158, %v3865
      %3868 = vbcast.lane.b32.xlu0 %v3866, 256
      %v3869 = vpop.permute.xlu0 %3868
      %s3871 = sor.u32 256, 8
      %3872 = vbcast.lane.b32.xlu0 %v3866, %s3871
      %v3873 = vpop.permute.xlu0 %3872
      %v3874 = vlaneseq
      %v3875 = vshrl.u32 %v3874, 7
      %v3876 = vsub.s32 2, %v3875
      %v3877 = vrot.slane %v158, %v3876
      %3879 = vbcast.lane.b32.xlu0 %v3877, 256
      %v3880 = vpop.permute.xlu0 %3879
      %s3882 = sor.u32 256, 8
      %3883 = vbcast.lane.b32.xlu0 %v3877, %s3882
      %v3884 = vpop.permute.xlu0 %3883
      %v3885 = vlaneseq
      %v3886 = vshrl.u32 %v3885, 7
      %v3887 = vsub.s32 3, %v3886
      %v3888 = vrot.slane %v158, %v3887
      %3890 = vbcast.lane.b32.xlu0 %v3888, 256
      %v3891 = vpop.permute.xlu0 %3890
      %s3893 = sor.u32 256, 8
      %3894 = vbcast.lane.b32.xlu0 %v3888, %s3893
      %v3895 = vpop.permute.xlu0 %3894
      %v3896 = vlaneseq
      %v3897 = vshrl.u32 %v3896, 7
      %v3898 = vsub.s32 4, %v3897
      %v3899 = vrot.slane %v158, %v3898
      %3901 = vbcast.lane.b32.xlu0 %v3899, 256
      %v3902 = vpop.permute.xlu0 %3901
      %s3904 = sor.u32 256, 8
      %3905 = vbcast.lane.b32.xlu0 %v3899, %s3904
      %v3906 = vpop.permute.xlu0 %3905
      %v3907 = vlaneseq
      %v3908 = vshrl.u32 %v3907, 7
      %v3909 = vsub.s32 5, %v3908
      %v3910 = vrot.slane %v158, %v3909
      %3912 = vbcast.lane.b32.xlu0 %v3910, 256
      %v3913 = vpop.permute.xlu0 %3912
      %s3915 = sor.u32 256, 8
      %3916 = vbcast.lane.b32.xlu0 %v3910, %s3915
      %v3917 = vpop.permute.xlu0 %3916
      %v3918 = vlaneseq
      %v3919 = vshrl.u32 %v3918, 7
      %v3920 = vsub.s32 6, %v3919
      %v3921 = vrot.slane %v158, %v3920
      %3923 = vbcast.lane.b32.xlu0 %v3921, 256
      %v3924 = vpop.permute.xlu0 %3923
      %s3926 = sor.u32 256, 8
      %3927 = vbcast.lane.b32.xlu0 %v3921, %s3926
      %v3928 = vpop.permute.xlu0 %3927
      %v3929 = vlaneseq
      %v3930 = vshrl.u32 %v3929, 7
      %v3931 = vsub.s32 7, %v3930
      %v3932 = vrot.slane %v158, %v3931
      %3934 = vbcast.lane.b32.xlu0 %v3932, 256
      %v3935 = vpop.permute.xlu0 %3934
      %s3937 = sor.u32 256, 8
      %3938 = vbcast.lane.b32.xlu0 %v3932, %s3937
      %v3939 = vpop.permute.xlu0 %3938
      %v3940 = vlaneseq
      %v3941 = vshrl.u32 %v3940, 7
      %v3942 = vsub.s32 0, %v3941
      %v3943 = vrot.slane %v159, %v3942
      %3945 = vbcast.lane.b32.xlu0 %v3943, 256
      %v3946 = vpop.permute.xlu0 %3945
      %s3948 = sor.u32 256, 8
      %3949 = vbcast.lane.b32.xlu0 %v3943, %s3948
      %v3950 = vpop.permute.xlu0 %3949
      %v3951 = vlaneseq
      %v3952 = vshrl.u32 %v3951, 7
      %v3953 = vsub.s32 1, %v3952
      %v3954 = vrot.slane %v159, %v3953
      %3956 = vbcast.lane.b32.xlu0 %v3954, 256
      %v3957 = vpop.permute.xlu0 %3956
      %s3959 = sor.u32 256, 8
      %3960 = vbcast.lane.b32.xlu0 %v3954, %s3959
      %v3961 = vpop.permute.xlu0 %3960
      %v3962 = vlaneseq
      %v3963 = vshrl.u32 %v3962, 7
      %v3964 = vsub.s32 2, %v3963
      %v3965 = vrot.slane %v159, %v3964
      %3967 = vbcast.lane.b32.xlu0 %v3965, 256
      %v3968 = vpop.permute.xlu0 %3967
      %s3970 = sor.u32 256, 8
      %3971 = vbcast.lane.b32.xlu0 %v3965, %s3970
      %v3972 = vpop.permute.xlu0 %3971
      %v3973 = vlaneseq
      %v3974 = vshrl.u32 %v3973, 7
      %v3975 = vsub.s32 3, %v3974
      %v3976 = vrot.slane %v159, %v3975
      %3978 = vbcast.lane.b32.xlu0 %v3976, 256
      %v3979 = vpop.permute.xlu0 %3978
      %s3981 = sor.u32 256, 8
      %3982 = vbcast.lane.b32.xlu0 %v3976, %s3981
      %v3983 = vpop.permute.xlu0 %3982
      %v3984 = vlaneseq
      %v3985 = vshrl.u32 %v3984, 7
      %v3986 = vsub.s32 4, %v3985
      %v3987 = vrot.slane %v159, %v3986
      %3989 = vbcast.lane.b32.xlu0 %v3987, 256
      %v3990 = vpop.permute.xlu0 %3989
      %s3992 = sor.u32 256, 8
      %3993 = vbcast.lane.b32.xlu0 %v3987, %s3992
      %v3994 = vpop.permute.xlu0 %3993
      %v3995 = vlaneseq
      %v3996 = vshrl.u32 %v3995, 7
      %v3997 = vsub.s32 5, %v3996
      %v3998 = vrot.slane %v159, %v3997
      %4000 = vbcast.lane.b32.xlu0 %v3998, 256
      %v4001 = vpop.permute.xlu0 %4000
      %s4003 = sor.u32 256, 8
      %4004 = vbcast.lane.b32.xlu0 %v3998, %s4003
      %v4005 = vpop.permute.xlu0 %4004
      %v4006 = vlaneseq
      %v4007 = vshrl.u32 %v4006, 7
      %v4008 = vsub.s32 6, %v4007
      %v4009 = vrot.slane %v159, %v4008
      %4011 = vbcast.lane.b32.xlu0 %v4009, 256
      %v4012 = vpop.permute.xlu0 %4011
      %s4014 = sor.u32 256, 8
      %4015 = vbcast.lane.b32.xlu0 %v4009, %s4014
      %v4016 = vpop.permute.xlu0 %4015
      %v4017 = vlaneseq
      %v4018 = vshrl.u32 %v4017, 7
      %v4019 = vsub.s32 7, %v4018
      %v4020 = vrot.slane %v159, %v4019
      %4022 = vbcast.lane.b32.xlu0 %v4020, 256
      %v4023 = vpop.permute.xlu0 %4022
      %s4025 = sor.u32 256, 8
      %4026 = vbcast.lane.b32.xlu0 %v4020, %s4025
      %v4027 = vpop.permute.xlu0 %4026
      %v4028 = vlaneseq
      %v4029 = vshrl.u32 %v4028, 7
      %v4030 = vsub.s32 0, %v4029
      %v4031 = vrot.slane %v160, %v4030
      %4033 = vbcast.lane.b32.xlu0 %v4031, 256
      %v4034 = vpop.permute.xlu0 %4033
      %s4036 = sor.u32 256, 8
      %4037 = vbcast.lane.b32.xlu0 %v4031, %s4036
      %v4038 = vpop.permute.xlu0 %4037
      %v4039 = vlaneseq
      %v4040 = vshrl.u32 %v4039, 7
      %v4041 = vsub.s32 1, %v4040
      %v4042 = vrot.slane %v160, %v4041
      %4044 = vbcast.lane.b32.xlu0 %v4042, 256
      %v4045 = vpop.permute.xlu0 %4044
      %s4047 = sor.u32 256, 8
      %4048 = vbcast.lane.b32.xlu0 %v4042, %s4047
      %v4049 = vpop.permute.xlu0 %4048
      %v4050 = vlaneseq
      %v4051 = vshrl.u32 %v4050, 7
      %v4052 = vsub.s32 2, %v4051
      %v4053 = vrot.slane %v160, %v4052
      %4055 = vbcast.lane.b32.xlu0 %v4053, 256
      %v4056 = vpop.permute.xlu0 %4055
      %s4058 = sor.u32 256, 8
      %4059 = vbcast.lane.b32.xlu0 %v4053, %s4058
      %v4060 = vpop.permute.xlu0 %4059
      %v4061 = vlaneseq
      %v4062 = vshrl.u32 %v4061, 7
      %v4063 = vsub.s32 3, %v4062
      %v4064 = vrot.slane %v160, %v4063
      %4066 = vbcast.lane.b32.xlu0 %v4064, 256
      %v4067 = vpop.permute.xlu0 %4066
      %s4069 = sor.u32 256, 8
      %4070 = vbcast.lane.b32.xlu0 %v4064, %s4069
      %v4071 = vpop.permute.xlu0 %4070
      %v4072 = vlaneseq
      %v4073 = vshrl.u32 %v4072, 7
      %v4074 = vsub.s32 4, %v4073
      %v4075 = vrot.slane %v160, %v4074
      %4077 = vbcast.lane.b32.xlu0 %v4075, 256
      %v4078 = vpop.permute.xlu0 %4077
      %s4080 = sor.u32 256, 8
      %4081 = vbcast.lane.b32.xlu0 %v4075, %s4080
      %v4082 = vpop.permute.xlu0 %4081
      %v4083 = vlaneseq
      %v4084 = vshrl.u32 %v4083, 7
      %v4085 = vsub.s32 5, %v4084
      %v4086 = vrot.slane %v160, %v4085
      %4088 = vbcast.lane.b32.xlu0 %v4086, 256
      %v4089 = vpop.permute.xlu0 %4088
      %s4091 = sor.u32 256, 8
      %4092 = vbcast.lane.b32.xlu0 %v4086, %s4091
      %v4093 = vpop.permute.xlu0 %4092
      %v4094 = vlaneseq
      %v4095 = vshrl.u32 %v4094, 7
      %v4096 = vsub.s32 6, %v4095
      %v4097 = vrot.slane %v160, %v4096
      %4099 = vbcast.lane.b32.xlu0 %v4097, 256
      %v4100 = vpop.permute.xlu0 %4099
      %s4102 = sor.u32 256, 8
      %4103 = vbcast.lane.b32.xlu0 %v4097, %s4102
      %v4104 = vpop.permute.xlu0 %4103
      %v4105 = vlaneseq
      %v4106 = vshrl.u32 %v4105, 7
      %v4107 = vsub.s32 7, %v4106
      %v4108 = vrot.slane %v160, %v4107
      %4110 = vbcast.lane.b32.xlu0 %v4108, 256
      %v4111 = vpop.permute.xlu0 %4110
      %s4113 = sor.u32 256, 8
      %4114 = vbcast.lane.b32.xlu0 %v4108, %s4113
      %v4115 = vpop.permute.xlu0 %4114
      %v4244 = vsel %vm2225, %v3418, 0.0
      %v4245 = vsel %vm2226, %v3422, 0.0
      %v4246 = vsel %vm2227, %v3429, 0.0
      %v4247 = vsel %vm2228, %v3433, 0.0
      %v4248 = vsel %vm2229, %v3440, 0.0
      %v4249 = vsel %vm2230, %v3444, 0.0
      %v4250 = vsel %vm2231, %v3451, 0.0
      %v4251 = vsel %vm2232, %v3455, 0.0
      %v4252 = vsel %vm2233, %v3462, 0.0
      %v4253 = vsel %vm2234, %v3466, 0.0
      %v4254 = vsel %vm2235, %v3473, 0.0
      %v4255 = vsel %vm2236, %v3477, 0.0
      %v4256 = vsel %vm2237, %v3484, 0.0
      %v4257 = vsel %vm2238, %v3488, 0.0
      %v4258 = vsel %vm2239, %v3495, 0.0
      %v4259 = vsel %vm2240, %v3499, 0.0
      %v4260 = vsel %vm2241, %v3506, 0.0
      %v4261 = vsel %vm2242, %v3510, 0.0
      %v4262 = vsel %vm2243, %v3517, 0.0
      %v4263 = vsel %vm2244, %v3521, 0.0
      %v4264 = vsel %vm2245, %v3528, 0.0
      %v4265 = vsel %vm2246, %v3532, 0.0
      %v4266 = vsel %vm2247, %v3539, 0.0
      %v4267 = vsel %vm2248, %v3543, 0.0
      %v4268 = vsel %vm2249, %v3550, 0.0
      %v4269 = vsel %vm2250, %v3554, 0.0
      %v4270 = vsel %vm2251, %v3561, 0.0
      %v4271 = vsel %vm2252, %v3565, 0.0
      %v4272 = vsel %vm2253, %v3572, 0.0
      %v4273 = vsel %vm2254, %v3576, 0.0
      %v4274 = vsel %vm2255, %v3583, 0.0
      %v4275 = vsel %vm2256, %v3587, 0.0
      %v4276 = vsel %vm2257, %v3594, 0.0
      %v4277 = vsel %vm2258, %v3598, 0.0
      %v4278 = vsel %vm2259, %v3605, 0.0
      %v4279 = vsel %vm2260, %v3609, 0.0
      %v4280 = vsel %vm2261, %v3616, 0.0
      %v4281 = vsel %vm2262, %v3620, 0.0
      %v4282 = vsel %vm2263, %v3627, 0.0
      %v4283 = vsel %vm2264, %v3631, 0.0
      %v4284 = vsel %vm2265, %v3638, 0.0
      %v4285 = vsel %vm2266, %v3642, 0.0
      %v4286 = vsel %vm2267, %v3649, 0.0
      %v4287 = vsel %vm2268, %v3653, 0.0
      %v4288 = vsel %vm2269, %v3660, 0.0
      %v4289 = vsel %vm2270, %v3664, 0.0
      %v4290 = vsel %vm2271, %v3671, 0.0
      %v4291 = vsel %vm2272, %v3675, 0.0
      %v4292 = vsel %vm2273, %v3682, 0.0
      %v4293 = vsel %vm2274, %v3686, 0.0
      %v4294 = vsel %vm2275, %v3693, 0.0
      %v4295 = vsel %vm2276, %v3697, 0.0
      %v4296 = vsel %vm2277, %v3704, 0.0
      %v4297 = vsel %vm2278, %v3708, 0.0
      %v4298 = vsel %vm2279, %v3715, 0.0
      %v4299 = vsel %vm2280, %v3719, 0.0
      %v4300 = vsel %vm2281, %v3726, 0.0
      %v4301 = vsel %vm2282, %v3730, 0.0
      %v4302 = vsel %vm2283, %v3737, 0.0
      %v4303 = vsel %vm2284, %v3741, 0.0
      %v4304 = vsel %vm2285, %v3748, 0.0
      %v4305 = vsel %vm2286, %v3752, 0.0
      %v4306 = vsel %vm2287, %v3759, 0.0
      %v4307 = vsel %vm2288, %v3763, 0.0
      %v4308 = vsel %vm2289, %v3770, 0.0
      %v4309 = vsel %vm2290, %v3774, 0.0
      %v4310 = vsel %vm2291, %v3781, 0.0
      %v4311 = vsel %vm2292, %v3785, 0.0
      %v4312 = vsel %vm2293, %v3792, 0.0
      %v4313 = vsel %vm2294, %v3796, 0.0
      %v4314 = vsel %vm2295, %v3803, 0.0
      %v4315 = vsel %vm2296, %v3807, 0.0
      %v4316 = vsel %vm2297, %v3814, 0.0
      %v4317 = vsel %vm2298, %v3818, 0.0
      %v4318 = vsel %vm2299, %v3825, 0.0
      %v4319 = vsel %vm2300, %v3829, 0.0
      %v4320 = vsel %vm2301, %v3836, 0.0
      %v4321 = vsel %vm2302, %v3840, 0.0
      %v4322 = vsel %vm2303, %v3847, 0.0
      %v4323 = vsel %vm2304, %v3851, 0.0
      %v4324 = vsel %vm2305, %v3858, 0.0
      %v4325 = vsel %vm2306, %v3862, 0.0
      %v4326 = vsel %vm2307, %v3869, 0.0
      %v4327 = vsel %vm2308, %v3873, 0.0
      %v4328 = vsel %vm2309, %v3880, 0.0
      %v4329 = vsel %vm2310, %v3884, 0.0
      %v4330 = vsel %vm2311, %v3891, 0.0
      %v4331 = vsel %vm2312, %v3895, 0.0
      %v4332 = vsel %vm2313, %v3902, 0.0
      %v4333 = vsel %vm2314, %v3906, 0.0
      %v4334 = vsel %vm2315, %v3913, 0.0
      %v4335 = vsel %vm2316, %v3917, 0.0
      %v4336 = vsel %vm2317, %v3924, 0.0
      %v4337 = vsel %vm2318, %v3928, 0.0
      %v4338 = vsel %vm2319, %v3935, 0.0
      %v4339 = vsel %vm2320, %v3939, 0.0
      %v4340 = vsel %vm2321, %v3946, 0.0
      %v4341 = vsel %vm2322, %v3950, 0.0
      %v4342 = vsel %vm2323, %v3957, 0.0
      %v4343 = vsel %vm2324, %v3961, 0.0
      %v4344 = vsel %vm2325, %v3968, 0.0
      %v4345 = vsel %vm2326, %v3972, 0.0
      %v4346 = vsel %vm2327, %v3979, 0.0
      %v4347 = vsel %vm2328, %v3983, 0.0
      %v4348 = vsel %vm2329, %v3990, 0.0
      %v4349 = vsel %vm2330, %v3994, 0.0
      %v4350 = vsel %vm2331, %v4001, 0.0
      %v4351 = vsel %vm2332, %v4005, 0.0
      %v4352 = vsel %vm2333, %v4012, 0.0
      %v4353 = vsel %vm2334, %v4016, 0.0
      %v4354 = vsel %vm2335, %v4023, 0.0
      %v4355 = vsel %vm2336, %v4027, 0.0
      %v4356 = vsel %vm2337, %v4034, 0.0
      %v4357 = vsel %vm2338, %v4038, 0.0
      %v4358 = vsel %vm2339, %v4045, 0.0
      %v4359 = vsel %vm2340, %v4049, 0.0
      %v4360 = vsel %vm2341, %v4056, 0.0
      %v4361 = vsel %vm2342, %v4060, 0.0
      %v4362 = vsel %vm2343, %v4067, 0.0
      %v4363 = vsel %vm2344, %v4071, 0.0
      %v4364 = vsel %vm2345, %v4078, 0.0
      %v4365 = vsel %vm2346, %v4082, 0.0
      %v4366 = vsel %vm2347, %v4089, 0.0
      %v4367 = vsel %vm2348, %v4093, 0.0
      %v4368 = vsel %vm2349, %v4100, 0.0
      %v4369 = vsel %vm2350, %v4104, 0.0
      %v4370 = vsel %vm2351, %v4111, 0.0
      %v4371 = vsel %vm2352, %v4115, 0.0
      %4500 = vset.pattern.permute.xlu0 0
      %4501 = vperm.xlu0 %4500, %v4244
      %v4502 = vpop.permute.xlu0 %4501
      %4503 = vset.pattern.permute.xlu0 0
      %4504 = vperm.xlu0 %4503, %v4245
      %v4505 = vpop.permute.xlu0 %4504
      %4506 = vset.pattern.permute.xlu0 0
      %4507 = vperm.xlu0 %4506, %v4246
      %v4508 = vpop.permute.xlu0 %4507
      %4509 = vset.pattern.permute.xlu0 0
      %4510 = vperm.xlu0 %4509, %v4247
      %v4511 = vpop.permute.xlu0 %4510
      %4512 = vset.pattern.permute.xlu0 0
      %4513 = vperm.xlu0 %4512, %v4248
      %v4514 = vpop.permute.xlu0 %4513
      %4515 = vset.pattern.permute.xlu0 0
      %4516 = vperm.xlu0 %4515, %v4249
      %v4517 = vpop.permute.xlu0 %4516
      %4518 = vset.pattern.permute.xlu0 0
      %4519 = vperm.xlu0 %4518, %v4250
      %v4520 = vpop.permute.xlu0 %4519
      %4521 = vset.pattern.permute.xlu0 0
      %4522 = vperm.xlu0 %4521, %v4251
      %v4523 = vpop.permute.xlu0 %4522
      %4524 = vset.pattern.permute.xlu0 0
      %4525 = vperm.xlu0 %4524, %v4252
      %v4526 = vpop.permute.xlu0 %4525
      %4527 = vset.pattern.permute.xlu0 0
      %4528 = vperm.xlu0 %4527, %v4253
      %v4529 = vpop.permute.xlu0 %4528
      %4530 = vset.pattern.permute.xlu0 0
      %4531 = vperm.xlu0 %4530, %v4254
      %v4532 = vpop.permute.xlu0 %4531
      %4533 = vset.pattern.permute.xlu0 0
      %4534 = vperm.xlu0 %4533, %v4255
      %v4535 = vpop.permute.xlu0 %4534
      %4536 = vset.pattern.permute.xlu0 0
      %4537 = vperm.xlu0 %4536, %v4256
      %v4538 = vpop.permute.xlu0 %4537
      %4539 = vset.pattern.permute.xlu0 0
      %4540 = vperm.xlu0 %4539, %v4257
      %v4541 = vpop.permute.xlu0 %4540
      %4542 = vset.pattern.permute.xlu0 0
      %4543 = vperm.xlu0 %4542, %v4258
      %v4544 = vpop.permute.xlu0 %4543
      %4545 = vset.pattern.permute.xlu0 0
      %4546 = vperm.xlu0 %4545, %v4259
      %v4547 = vpop.permute.xlu0 %4546
      %4548 = vset.pattern.permute.xlu0 0
      %4549 = vperm.xlu0 %4548, %v4260
      %v4550 = vpop.permute.xlu0 %4549
      %4551 = vset.pattern.permute.xlu0 0
      %4552 = vperm.xlu0 %4551, %v4261
      %v4553 = vpop.permute.xlu0 %4552
      %4554 = vset.pattern.permute.xlu0 0
      %4555 = vperm.xlu0 %4554, %v4262
      %v4556 = vpop.permute.xlu0 %4555
      %4557 = vset.pattern.permute.xlu0 0
      %4558 = vperm.xlu0 %4557, %v4263
      %v4559 = vpop.permute.xlu0 %4558
      %4560 = vset.pattern.permute.xlu0 0
      %4561 = vperm.xlu0 %4560, %v4264
      %v4562 = vpop.permute.xlu0 %4561
      %4563 = vset.pattern.permute.xlu0 0
      %4564 = vperm.xlu0 %4563, %v4265
      %v4565 = vpop.permute.xlu0 %4564
      %4566 = vset.pattern.permute.xlu0 0
      %4567 = vperm.xlu0 %4566, %v4266
      %v4568 = vpop.permute.xlu0 %4567
      %4569 = vset.pattern.permute.xlu0 0
      %4570 = vperm.xlu0 %4569, %v4267
      %v4571 = vpop.permute.xlu0 %4570
      %4572 = vset.pattern.permute.xlu0 0
      %4573 = vperm.xlu0 %4572, %v4268
      %v4574 = vpop.permute.xlu0 %4573
      %4575 = vset.pattern.permute.xlu0 0
      %4576 = vperm.xlu0 %4575, %v4269
      %v4577 = vpop.permute.xlu0 %4576
      %4578 = vset.pattern.permute.xlu0 0
      %4579 = vperm.xlu0 %4578, %v4270
      %v4580 = vpop.permute.xlu0 %4579
      %4581 = vset.pattern.permute.xlu0 0
      %4582 = vperm.xlu0 %4581, %v4271
      %v4583 = vpop.permute.xlu0 %4582
      %4584 = vset.pattern.permute.xlu0 0
      %4585 = vperm.xlu0 %4584, %v4272
      %v4586 = vpop.permute.xlu0 %4585
      %4587 = vset.pattern.permute.xlu0 0
      %4588 = vperm.xlu0 %4587, %v4273
      %v4589 = vpop.permute.xlu0 %4588
      %4590 = vset.pattern.permute.xlu0 0
      %4591 = vperm.xlu0 %4590, %v4274
      %v4592 = vpop.permute.xlu0 %4591
      %4593 = vset.pattern.permute.xlu0 0
      %4594 = vperm.xlu0 %4593, %v4275
      %v4595 = vpop.permute.xlu0 %4594
      %4596 = vset.pattern.permute.xlu0 0
      %4597 = vperm.xlu0 %4596, %v4276
      %v4598 = vpop.permute.xlu0 %4597
      %4599 = vset.pattern.permute.xlu0 0
      %4600 = vperm.xlu0 %4599, %v4277
      %v4601 = vpop.permute.xlu0 %4600
      %4602 = vset.pattern.permute.xlu0 0
      %4603 = vperm.xlu0 %4602, %v4278
      %v4604 = vpop.permute.xlu0 %4603
      %4605 = vset.pattern.permute.xlu0 0
      %4606 = vperm.xlu0 %4605, %v4279
      %v4607 = vpop.permute.xlu0 %4606
      %4608 = vset.pattern.permute.xlu0 0
      %4609 = vperm.xlu0 %4608, %v4280
      %v4610 = vpop.permute.xlu0 %4609
      %4611 = vset.pattern.permute.xlu0 0
      %4612 = vperm.xlu0 %4611, %v4281
      %v4613 = vpop.permute.xlu0 %4612
      %4614 = vset.pattern.permute.xlu0 0
      %4615 = vperm.xlu0 %4614, %v4282
      %v4616 = vpop.permute.xlu0 %4615
      %4617 = vset.pattern.permute.xlu0 0
      %4618 = vperm.xlu0 %4617, %v4283
      %v4619 = vpop.permute.xlu0 %4618
      %4620 = vset.pattern.permute.xlu0 0
      %4621 = vperm.xlu0 %4620, %v4284
      %v4622 = vpop.permute.xlu0 %4621
      %4623 = vset.pattern.permute.xlu0 0
      %4624 = vperm.xlu0 %4623, %v4285
      %v4625 = vpop.permute.xlu0 %4624
      %4626 = vset.pattern.permute.xlu0 0
      %4627 = vperm.xlu0 %4626, %v4286
      %v4628 = vpop.permute.xlu0 %4627
      %4629 = vset.pattern.permute.xlu0 0
      %4630 = vperm.xlu0 %4629, %v4287
      %v4631 = vpop.permute.xlu0 %4630
      %4632 = vset.pattern.permute.xlu0 0
      %4633 = vperm.xlu0 %4632, %v4288
      %v4634 = vpop.permute.xlu0 %4633
      %4635 = vset.pattern.permute.xlu0 0
      %4636 = vperm.xlu0 %4635, %v4289
      %v4637 = vpop.permute.xlu0 %4636
      %4638 = vset.pattern.permute.xlu0 0
      %4639 = vperm.xlu0 %4638, %v4290
      %v4640 = vpop.permute.xlu0 %4639
      %4641 = vset.pattern.permute.xlu0 0
      %4642 = vperm.xlu0 %4641, %v4291
      %v4643 = vpop.permute.xlu0 %4642
      %4644 = vset.pattern.permute.xlu0 0
      %4645 = vperm.xlu0 %4644, %v4292
      %v4646 = vpop.permute.xlu0 %4645
      %4647 = vset.pattern.permute.xlu0 0
      %4648 = vperm.xlu0 %4647, %v4293
      %v4649 = vpop.permute.xlu0 %4648
      %4650 = vset.pattern.permute.xlu0 0
      %4651 = vperm.xlu0 %4650, %v4294
      %v4652 = vpop.permute.xlu0 %4651
      %4653 = vset.pattern.permute.xlu0 0
      %4654 = vperm.xlu0 %4653, %v4295
      %v4655 = vpop.permute.xlu0 %4654
      %4656 = vset.pattern.permute.xlu0 0
      %4657 = vperm.xlu0 %4656, %v4296
      %v4658 = vpop.permute.xlu0 %4657
      %4659 = vset.pattern.permute.xlu0 0
      %4660 = vperm.xlu0 %4659, %v4297
      %v4661 = vpop.permute.xlu0 %4660
      %4662 = vset.pattern.permute.xlu0 0
      %4663 = vperm.xlu0 %4662, %v4298
      %v4664 = vpop.permute.xlu0 %4663
      %4665 = vset.pattern.permute.xlu0 0
      %4666 = vperm.xlu0 %4665, %v4299
      %v4667 = vpop.permute.xlu0 %4666
      %4668 = vset.pattern.permute.xlu0 0
      %4669 = vperm.xlu0 %4668, %v4300
      %v4670 = vpop.permute.xlu0 %4669
      %4671 = vset.pattern.permute.xlu0 0
      %4672 = vperm.xlu0 %4671, %v4301
      %v4673 = vpop.permute.xlu0 %4672
      %4674 = vset.pattern.permute.xlu0 0
      %4675 = vperm.xlu0 %4674, %v4302
      %v4676 = vpop.permute.xlu0 %4675
      %4677 = vset.pattern.permute.xlu0 0
      %4678 = vperm.xlu0 %4677, %v4303
      %v4679 = vpop.permute.xlu0 %4678
      %4680 = vset.pattern.permute.xlu0 0
      %4681 = vperm.xlu0 %4680, %v4304
      %v4682 = vpop.permute.xlu0 %4681
      %4683 = vset.pattern.permute.xlu0 0
      %4684 = vperm.xlu0 %4683, %v4305
      %v4685 = vpop.permute.xlu0 %4684
      %4686 = vset.pattern.permute.xlu0 0
      %4687 = vperm.xlu0 %4686, %v4306
      %v4688 = vpop.permute.xlu0 %4687
      %4689 = vset.pattern.permute.xlu0 0
      %4690 = vperm.xlu0 %4689, %v4307
      %v4691 = vpop.permute.xlu0 %4690
      %4692 = vset.pattern.permute.xlu0 0
      %4693 = vperm.xlu0 %4692, %v4308
      %v4694 = vpop.permute.xlu0 %4693
      %4695 = vset.pattern.permute.xlu0 0
      %4696 = vperm.xlu0 %4695, %v4309
      %v4697 = vpop.permute.xlu0 %4696
      %4698 = vset.pattern.permute.xlu0 0
      %4699 = vperm.xlu0 %4698, %v4310
      %v4700 = vpop.permute.xlu0 %4699
      %4701 = vset.pattern.permute.xlu0 0
      %4702 = vperm.xlu0 %4701, %v4311
      %v4703 = vpop.permute.xlu0 %4702
      %4704 = vset.pattern.permute.xlu0 0
      %4705 = vperm.xlu0 %4704, %v4312
      %v4706 = vpop.permute.xlu0 %4705
      %4707 = vset.pattern.permute.xlu0 0
      %4708 = vperm.xlu0 %4707, %v4313
      %v4709 = vpop.permute.xlu0 %4708
      %4710 = vset.pattern.permute.xlu0 0
      %4711 = vperm.xlu0 %4710, %v4314
      %v4712 = vpop.permute.xlu0 %4711
      %4713 = vset.pattern.permute.xlu0 0
      %4714 = vperm.xlu0 %4713, %v4315
      %v4715 = vpop.permute.xlu0 %4714
      %4716 = vset.pattern.permute.xlu0 0
      %4717 = vperm.xlu0 %4716, %v4316
      %v4718 = vpop.permute.xlu0 %4717
      %4719 = vset.pattern.permute.xlu0 0
      %4720 = vperm.xlu0 %4719, %v4317
      %v4721 = vpop.permute.xlu0 %4720
      %4722 = vset.pattern.permute.xlu0 0
      %4723 = vperm.xlu0 %4722, %v4318
      %v4724 = vpop.permute.xlu0 %4723
      %4725 = vset.pattern.permute.xlu0 0
      %4726 = vperm.xlu0 %4725, %v4319
      %v4727 = vpop.permute.xlu0 %4726
      %4728 = vset.pattern.permute.xlu0 0
      %4729 = vperm.xlu0 %4728, %v4320
      %v4730 = vpop.permute.xlu0 %4729
      %4731 = vset.pattern.permute.xlu0 0
      %4732 = vperm.xlu0 %4731, %v4321
      %v4733 = vpop.permute.xlu0 %4732
      %4734 = vset.pattern.permute.xlu0 0
      %4735 = vperm.xlu0 %4734, %v4322
      %v4736 = vpop.permute.xlu0 %4735
      %4737 = vset.pattern.permute.xlu0 0
      %4738 = vperm.xlu0 %4737, %v4323
      %v4739 = vpop.permute.xlu0 %4738
      %4740 = vset.pattern.permute.xlu0 0
      %4741 = vperm.xlu0 %4740, %v4324
      %v4742 = vpop.permute.xlu0 %4741
      %4743 = vset.pattern.permute.xlu0 0
      %4744 = vperm.xlu0 %4743, %v4325
      %v4745 = vpop.permute.xlu0 %4744
      %4746 = vset.pattern.permute.xlu0 0
      %4747 = vperm.xlu0 %4746, %v4326
      %v4748 = vpop.permute.xlu0 %4747
      %4749 = vset.pattern.permute.xlu0 0
      %4750 = vperm.xlu0 %4749, %v4327
      %v4751 = vpop.permute.xlu0 %4750
      %4752 = vset.pattern.permute.xlu0 0
      %4753 = vperm.xlu0 %4752, %v4328
      %v4754 = vpop.permute.xlu0 %4753
      %4755 = vset.pattern.permute.xlu0 0
      %4756 = vperm.xlu0 %4755, %v4329
      %v4757 = vpop.permute.xlu0 %4756
      %4758 = vset.pattern.permute.xlu0 0
      %4759 = vperm.xlu0 %4758, %v4330
      %v4760 = vpop.permute.xlu0 %4759
      %4761 = vset.pattern.permute.xlu0 0
      %4762 = vperm.xlu0 %4761, %v4331
      %v4763 = vpop.permute.xlu0 %4762
      %4764 = vset.pattern.permute.xlu0 0
      %4765 = vperm.xlu0 %4764, %v4332
      %v4766 = vpop.permute.xlu0 %4765
      %4767 = vset.pattern.permute.xlu0 0
      %4768 = vperm.xlu0 %4767, %v4333
      %v4769 = vpop.permute.xlu0 %4768
      %4770 = vset.pattern.permute.xlu0 0
      %4771 = vperm.xlu0 %4770, %v4334
      %v4772 = vpop.permute.xlu0 %4771
      %4773 = vset.pattern.permute.xlu0 0
      %4774 = vperm.xlu0 %4773, %v4335
      %v4775 = vpop.permute.xlu0 %4774
      %4776 = vset.pattern.permute.xlu0 0
      %4777 = vperm.xlu0 %4776, %v4336
      %v4778 = vpop.permute.xlu0 %4777
      %4779 = vset.pattern.permute.xlu0 0
      %4780 = vperm.xlu0 %4779, %v4337
      %v4781 = vpop.permute.xlu0 %4780
      %4782 = vset.pattern.permute.xlu0 0
      %4783 = vperm.xlu0 %4782, %v4338
      %v4784 = vpop.permute.xlu0 %4783
      %4785 = vset.pattern.permute.xlu0 0
      %4786 = vperm.xlu0 %4785, %v4339
      %v4787 = vpop.permute.xlu0 %4786
      %4788 = vset.pattern.permute.xlu0 0
      %4789 = vperm.xlu0 %4788, %v4340
      %v4790 = vpop.permute.xlu0 %4789
      %4791 = vset.pattern.permute.xlu0 0
      %4792 = vperm.xlu0 %4791, %v4341
      %v4793 = vpop.permute.xlu0 %4792
      %4794 = vset.pattern.permute.xlu0 0
      %4795 = vperm.xlu0 %4794, %v4342
      %v4796 = vpop.permute.xlu0 %4795
      %4797 = vset.pattern.permute.xlu0 0
      %4798 = vperm.xlu0 %4797, %v4343
      %v4799 = vpop.permute.xlu0 %4798
      %4800 = vset.pattern.permute.xlu0 0
      %4801 = vperm.xlu0 %4800, %v4344
      %v4802 = vpop.permute.xlu0 %4801
      %4803 = vset.pattern.permute.xlu0 0
      %4804 = vperm.xlu0 %4803, %v4345
      %v4805 = vpop.permute.xlu0 %4804
      %4806 = vset.pattern.permute.xlu0 0
      %4807 = vperm.xlu0 %4806, %v4346
      %v4808 = vpop.permute.xlu0 %4807
      %4809 = vset.pattern.permute.xlu0 0
      %4810 = vperm.xlu0 %4809, %v4347
      %v4811 = vpop.permute.xlu0 %4810
      %4812 = vset.pattern.permute.xlu0 0
      %4813 = vperm.xlu0 %4812, %v4348
      %v4814 = vpop.permute.xlu0 %4813
      %4815 = vset.pattern.permute.xlu0 0
      %4816 = vperm.xlu0 %4815, %v4349
      %v4817 = vpop.permute.xlu0 %4816
      %4818 = vset.pattern.permute.xlu0 0
      %4819 = vperm.xlu0 %4818, %v4350
      %v4820 = vpop.permute.xlu0 %4819
      %4821 = vset.pattern.permute.xlu0 0
      %4822 = vperm.xlu0 %4821, %v4351
      %v4823 = vpop.permute.xlu0 %4822
      %4824 = vset.pattern.permute.xlu0 0
      %4825 = vperm.xlu0 %4824, %v4352
      %v4826 = vpop.permute.xlu0 %4825
      %4827 = vset.pattern.permute.xlu0 0
      %4828 = vperm.xlu0 %4827, %v4353
      %v4829 = vpop.permute.xlu0 %4828
      %4830 = vset.pattern.permute.xlu0 0
      %4831 = vperm.xlu0 %4830, %v4354
      %v4832 = vpop.permute.xlu0 %4831
      %4833 = vset.pattern.permute.xlu0 0
      %4834 = vperm.xlu0 %4833, %v4355
      %v4835 = vpop.permute.xlu0 %4834
      %4836 = vset.pattern.permute.xlu0 0
      %4837 = vperm.xlu0 %4836, %v4356
      %v4838 = vpop.permute.xlu0 %4837
      %4839 = vset.pattern.permute.xlu0 0
      %4840 = vperm.xlu0 %4839, %v4357
      %v4841 = vpop.permute.xlu0 %4840
      %4842 = vset.pattern.permute.xlu0 0
      %4843 = vperm.xlu0 %4842, %v4358
      %v4844 = vpop.permute.xlu0 %4843
      %4845 = vset.pattern.permute.xlu0 0
      %4846 = vperm.xlu0 %4845, %v4359
      %v4847 = vpop.permute.xlu0 %4846
      %4848 = vset.pattern.permute.xlu0 0
      %4849 = vperm.xlu0 %4848, %v4360
      %v4850 = vpop.permute.xlu0 %4849
      %4851 = vset.pattern.permute.xlu0 0
      %4852 = vperm.xlu0 %4851, %v4361
      %v4853 = vpop.permute.xlu0 %4852
      %4854 = vset.pattern.permute.xlu0 0
      %4855 = vperm.xlu0 %4854, %v4362
      %v4856 = vpop.permute.xlu0 %4855
      %4857 = vset.pattern.permute.xlu0 0
      %4858 = vperm.xlu0 %4857, %v4363
      %v4859 = vpop.permute.xlu0 %4858
      %4860 = vset.pattern.permute.xlu0 0
      %4861 = vperm.xlu0 %4860, %v4364
      %v4862 = vpop.permute.xlu0 %4861
      %4863 = vset.pattern.permute.xlu0 0
      %4864 = vperm.xlu0 %4863, %v4365
      %v4865 = vpop.permute.xlu0 %4864
      %4866 = vset.pattern.permute.xlu0 0
      %4867 = vperm.xlu0 %4866, %v4366
      %v4868 = vpop.permute.xlu0 %4867
      %4869 = vset.pattern.permute.xlu0 0
      %4870 = vperm.xlu0 %4869, %v4367
      %v4871 = vpop.permute.xlu0 %4870
      %4872 = vset.pattern.permute.xlu0 0
      %4873 = vperm.xlu0 %4872, %v4368
      %v4874 = vpop.permute.xlu0 %4873
      %4875 = vset.pattern.permute.xlu0 0
      %4876 = vperm.xlu0 %4875, %v4369
      %v4877 = vpop.permute.xlu0 %4876
      %4878 = vset.pattern.permute.xlu0 0
      %4879 = vperm.xlu0 %4878, %v4370
      %v4880 = vpop.permute.xlu0 %4879
      %4881 = vset.pattern.permute.xlu0 0
      %4882 = vperm.xlu0 %4881, %v4371
      %v4883 = vpop.permute.xlu0 %4882
      %v4884 = vlaneseq
      %v4885 = vshrl.u32 %v4884, 7
      %v4886 = vsub.s32 %v2738, %v4885
      %v4887 = vrot.slane %v4502, %v4886
      %v4888 = vlaneseq
      %v4889 = vshrl.u32 %v4888, 7
      %v4890 = vsub.s32 %v2743, %v4889
      %v4891 = vrot.slane %v4505, %v4890
      %v4892 = vsel %vm2748, %v4891, %v4887
      %v4893 = vlaneseq
      %v4894 = vshrl.u32 %v4893, 7
      %v4895 = vsub.s32 %v2738, %v4894
      %v4896 = vrot.slane %v4508, %v4895
      %v4897 = vlaneseq
      %v4898 = vshrl.u32 %v4897, 7
      %v4899 = vsub.s32 %v2743, %v4898
      %v4900 = vrot.slane %v4511, %v4899
      %v4901 = vsel %vm2748, %v4900, %v4896
      %v4902 = vlaneseq
      %v4903 = vshrl.u32 %v4902, 7
      %v4904 = vsub.s32 %v2738, %v4903
      %v4905 = vrot.slane %v4514, %v4904
      %v4906 = vlaneseq
      %v4907 = vshrl.u32 %v4906, 7
      %v4908 = vsub.s32 %v2743, %v4907
      %v4909 = vrot.slane %v4517, %v4908
      %v4910 = vsel %vm2748, %v4909, %v4905
      %v4911 = vlaneseq
      %v4912 = vshrl.u32 %v4911, 7
      %v4913 = vsub.s32 %v2738, %v4912
      %v4914 = vrot.slane %v4520, %v4913
      %v4915 = vlaneseq
      %v4916 = vshrl.u32 %v4915, 7
      %v4917 = vsub.s32 %v2743, %v4916
      %v4918 = vrot.slane %v4523, %v4917
      %v4919 = vsel %vm2748, %v4918, %v4914
      %v4920 = vlaneseq
      %v4921 = vshrl.u32 %v4920, 7
      %v4922 = vsub.s32 %v2738, %v4921
      %v4923 = vrot.slane %v4526, %v4922
      %v4924 = vlaneseq
      %v4925 = vshrl.u32 %v4924, 7
      %v4926 = vsub.s32 %v2743, %v4925
      %v4927 = vrot.slane %v4529, %v4926
      %v4928 = vsel %vm2748, %v4927, %v4923
      %v4929 = vlaneseq
      %v4930 = vshrl.u32 %v4929, 7
      %v4931 = vsub.s32 %v2738, %v4930
      %v4932 = vrot.slane %v4532, %v4931
      %v4933 = vlaneseq
      %v4934 = vshrl.u32 %v4933, 7
      %v4935 = vsub.s32 %v2743, %v4934
      %v4936 = vrot.slane %v4535, %v4935
      %v4937 = vsel %vm2748, %v4936, %v4932
      %v4938 = vlaneseq
      %v4939 = vshrl.u32 %v4938, 7
      %v4940 = vsub.s32 %v2738, %v4939
      %v4941 = vrot.slane %v4538, %v4940
      %v4942 = vlaneseq
      %v4943 = vshrl.u32 %v4942, 7
      %v4944 = vsub.s32 %v2743, %v4943
      %v4945 = vrot.slane %v4541, %v4944
      %v4946 = vsel %vm2748, %v4945, %v4941
      %v4947 = vlaneseq
      %v4948 = vshrl.u32 %v4947, 7
      %v4949 = vsub.s32 %v2738, %v4948
      %v4950 = vrot.slane %v4544, %v4949
      %v4951 = vlaneseq
      %v4952 = vshrl.u32 %v4951, 7
      %v4953 = vsub.s32 %v2743, %v4952
      %v4954 = vrot.slane %v4547, %v4953
      %v4955 = vsel %vm2748, %v4954, %v4950
      %v4956 = vlaneseq
      %v4957 = vshrl.u32 %v4956, 7
      %v4958 = vsub.s32 %v2738, %v4957
      %v4959 = vrot.slane %v4550, %v4958
      %v4960 = vlaneseq
      %v4961 = vshrl.u32 %v4960, 7
      %v4962 = vsub.s32 %v2743, %v4961
      %v4963 = vrot.slane %v4553, %v4962
      %v4964 = vsel %vm2748, %v4963, %v4959
      %v4965 = vlaneseq
      %v4966 = vshrl.u32 %v4965, 7
      %v4967 = vsub.s32 %v2738, %v4966
      %v4968 = vrot.slane %v4556, %v4967
      %v4969 = vlaneseq
      %v4970 = vshrl.u32 %v4969, 7
      %v4971 = vsub.s32 %v2743, %v4970
      %v4972 = vrot.slane %v4559, %v4971
      %v4973 = vsel %vm2748, %v4972, %v4968
      %v4974 = vlaneseq
      %v4975 = vshrl.u32 %v4974, 7
      %v4976 = vsub.s32 %v2738, %v4975
      %v4977 = vrot.slane %v4562, %v4976
      %v4978 = vlaneseq
      %v4979 = vshrl.u32 %v4978, 7
      %v4980 = vsub.s32 %v2743, %v4979
      %v4981 = vrot.slane %v4565, %v4980
      %v4982 = vsel %vm2748, %v4981, %v4977
      %v4983 = vlaneseq
      %v4984 = vshrl.u32 %v4983, 7
      %v4985 = vsub.s32 %v2738, %v4984
      %v4986 = vrot.slane %v4568, %v4985
      %v4987 = vlaneseq
      %v4988 = vshrl.u32 %v4987, 7
      %v4989 = vsub.s32 %v2743, %v4988
      %v4990 = vrot.slane %v4571, %v4989
      %v4991 = vsel %vm2748, %v4990, %v4986
      %v4992 = vlaneseq
      %v4993 = vshrl.u32 %v4992, 7
      %v4994 = vsub.s32 %v2738, %v4993
      %v4995 = vrot.slane %v4574, %v4994
      %v4996 = vlaneseq
      %v4997 = vshrl.u32 %v4996, 7
      %v4998 = vsub.s32 %v2743, %v4997
      %v4999 = vrot.slane %v4577, %v4998
      %v5000 = vsel %vm2748, %v4999, %v4995
      %v5001 = vlaneseq
      %v5002 = vshrl.u32 %v5001, 7
      %v5003 = vsub.s32 %v2738, %v5002
      %v5004 = vrot.slane %v4580, %v5003
      %v5005 = vlaneseq
      %v5006 = vshrl.u32 %v5005, 7
      %v5007 = vsub.s32 %v2743, %v5006
      %v5008 = vrot.slane %v4583, %v5007
      %v5009 = vsel %vm2748, %v5008, %v5004
      %v5010 = vlaneseq
      %v5011 = vshrl.u32 %v5010, 7
      %v5012 = vsub.s32 %v2738, %v5011
      %v5013 = vrot.slane %v4586, %v5012
      %v5014 = vlaneseq
      %v5015 = vshrl.u32 %v5014, 7
      %v5016 = vsub.s32 %v2743, %v5015
      %v5017 = vrot.slane %v4589, %v5016
      %v5018 = vsel %vm2748, %v5017, %v5013
      %v5019 = vlaneseq
      %v5020 = vshrl.u32 %v5019, 7
      %v5021 = vsub.s32 %v2738, %v5020
      %v5022 = vrot.slane %v4592, %v5021
      %v5023 = vlaneseq
      %v5024 = vshrl.u32 %v5023, 7
      %v5025 = vsub.s32 %v2743, %v5024
      %v5026 = vrot.slane %v4595, %v5025
      %v5027 = vsel %vm2748, %v5026, %v5022
      %v5028 = vlaneseq
      %v5029 = vshrl.u32 %v5028, 7
      %v5030 = vsub.s32 %v2738, %v5029
      %v5031 = vrot.slane %v4598, %v5030
      %v5032 = vlaneseq
      %v5033 = vshrl.u32 %v5032, 7
      %v5034 = vsub.s32 %v2743, %v5033
      %v5035 = vrot.slane %v4601, %v5034
      %v5036 = vsel %vm2748, %v5035, %v5031
      %v5037 = vlaneseq
      %v5038 = vshrl.u32 %v5037, 7
      %v5039 = vsub.s32 %v2738, %v5038
      %v5040 = vrot.slane %v4604, %v5039
      %v5041 = vlaneseq
      %v5042 = vshrl.u32 %v5041, 7
      %v5043 = vsub.s32 %v2743, %v5042
      %v5044 = vrot.slane %v4607, %v5043
      %v5045 = vsel %vm2748, %v5044, %v5040
      %v5046 = vlaneseq
      %v5047 = vshrl.u32 %v5046, 7
      %v5048 = vsub.s32 %v2738, %v5047
      %v5049 = vrot.slane %v4610, %v5048
      %v5050 = vlaneseq
      %v5051 = vshrl.u32 %v5050, 7
      %v5052 = vsub.s32 %v2743, %v5051
      %v5053 = vrot.slane %v4613, %v5052
      %v5054 = vsel %vm2748, %v5053, %v5049
      %v5055 = vlaneseq
      %v5056 = vshrl.u32 %v5055, 7
      %v5057 = vsub.s32 %v2738, %v5056
      %v5058 = vrot.slane %v4616, %v5057
      %v5059 = vlaneseq
      %v5060 = vshrl.u32 %v5059, 7
      %v5061 = vsub.s32 %v2743, %v5060
      %v5062 = vrot.slane %v4619, %v5061
      %v5063 = vsel %vm2748, %v5062, %v5058
      %v5064 = vlaneseq
      %v5065 = vshrl.u32 %v5064, 7
      %v5066 = vsub.s32 %v2738, %v5065
      %v5067 = vrot.slane %v4622, %v5066
      %v5068 = vlaneseq
      %v5069 = vshrl.u32 %v5068, 7
      %v5070 = vsub.s32 %v2743, %v5069
      %v5071 = vrot.slane %v4625, %v5070
      %v5072 = vsel %vm2748, %v5071, %v5067
      %v5073 = vlaneseq
      %v5074 = vshrl.u32 %v5073, 7
      %v5075 = vsub.s32 %v2738, %v5074
      %v5076 = vrot.slane %v4628, %v5075
      %v5077 = vlaneseq
      %v5078 = vshrl.u32 %v5077, 7
      %v5079 = vsub.s32 %v2743, %v5078
      %v5080 = vrot.slane %v4631, %v5079
      %v5081 = vsel %vm2748, %v5080, %v5076
      %v5082 = vlaneseq
      %v5083 = vshrl.u32 %v5082, 7
      %v5084 = vsub.s32 %v2738, %v5083
      %v5085 = vrot.slane %v4634, %v5084
      %v5086 = vlaneseq
      %v5087 = vshrl.u32 %v5086, 7
      %v5088 = vsub.s32 %v2743, %v5087
      %v5089 = vrot.slane %v4637, %v5088
      %v5090 = vsel %vm2748, %v5089, %v5085
      %v5091 = vlaneseq
      %v5092 = vshrl.u32 %v5091, 7
      %v5093 = vsub.s32 %v2738, %v5092
      %v5094 = vrot.slane %v4640, %v5093
      %v5095 = vlaneseq
      %v5096 = vshrl.u32 %v5095, 7
      %v5097 = vsub.s32 %v2743, %v5096
      %v5098 = vrot.slane %v4643, %v5097
      %v5099 = vsel %vm2748, %v5098, %v5094
      %v5100 = vlaneseq
      %v5101 = vshrl.u32 %v5100, 7
      %v5102 = vsub.s32 %v2738, %v5101
      %v5103 = vrot.slane %v4646, %v5102
      %v5104 = vlaneseq
      %v5105 = vshrl.u32 %v5104, 7
      %v5106 = vsub.s32 %v2743, %v5105
      %v5107 = vrot.slane %v4649, %v5106
      %v5108 = vsel %vm2748, %v5107, %v5103
      %v5109 = vlaneseq
      %v5110 = vshrl.u32 %v5109, 7
      %v5111 = vsub.s32 %v2738, %v5110
      %v5112 = vrot.slane %v4652, %v5111
      %v5113 = vlaneseq
      %v5114 = vshrl.u32 %v5113, 7
      %v5115 = vsub.s32 %v2743, %v5114
      %v5116 = vrot.slane %v4655, %v5115
      %v5117 = vsel %vm2748, %v5116, %v5112
      %v5118 = vlaneseq
      %v5119 = vshrl.u32 %v5118, 7
      %v5120 = vsub.s32 %v2738, %v5119
      %v5121 = vrot.slane %v4658, %v5120
      %v5122 = vlaneseq
      %v5123 = vshrl.u32 %v5122, 7
      %v5124 = vsub.s32 %v2743, %v5123
      %v5125 = vrot.slane %v4661, %v5124
      %v5126 = vsel %vm2748, %v5125, %v5121
      %v5127 = vlaneseq
      %v5128 = vshrl.u32 %v5127, 7
      %v5129 = vsub.s32 %v2738, %v5128
      %v5130 = vrot.slane %v4664, %v5129
      %v5131 = vlaneseq
      %v5132 = vshrl.u32 %v5131, 7
      %v5133 = vsub.s32 %v2743, %v5132
      %v5134 = vrot.slane %v4667, %v5133
      %v5135 = vsel %vm2748, %v5134, %v5130
      %v5136 = vlaneseq
      %v5137 = vshrl.u32 %v5136, 7
      %v5138 = vsub.s32 %v2738, %v5137
      %v5139 = vrot.slane %v4670, %v5138
      %v5140 = vlaneseq
      %v5141 = vshrl.u32 %v5140, 7
      %v5142 = vsub.s32 %v2743, %v5141
      %v5143 = vrot.slane %v4673, %v5142
      %v5144 = vsel %vm2748, %v5143, %v5139
      %v5145 = vlaneseq
      %v5146 = vshrl.u32 %v5145, 7
      %v5147 = vsub.s32 %v2738, %v5146
      %v5148 = vrot.slane %v4676, %v5147
      %v5149 = vlaneseq
      %v5150 = vshrl.u32 %v5149, 7
      %v5151 = vsub.s32 %v2743, %v5150
      %v5152 = vrot.slane %v4679, %v5151
      %v5153 = vsel %vm2748, %v5152, %v5148
      %v5154 = vlaneseq
      %v5155 = vshrl.u32 %v5154, 7
      %v5156 = vsub.s32 %v2738, %v5155
      %v5157 = vrot.slane %v4682, %v5156
      %v5158 = vlaneseq
      %v5159 = vshrl.u32 %v5158, 7
      %v5160 = vsub.s32 %v2743, %v5159
      %v5161 = vrot.slane %v4685, %v5160
      %v5162 = vsel %vm2748, %v5161, %v5157
      %v5163 = vlaneseq
      %v5164 = vshrl.u32 %v5163, 7
      %v5165 = vsub.s32 %v2738, %v5164
      %v5166 = vrot.slane %v4688, %v5165
      %v5167 = vlaneseq
      %v5168 = vshrl.u32 %v5167, 7
      %v5169 = vsub.s32 %v2743, %v5168
      %v5170 = vrot.slane %v4691, %v5169
      %v5171 = vsel %vm2748, %v5170, %v5166
      %v5172 = vlaneseq
      %v5173 = vshrl.u32 %v5172, 7
      %v5174 = vsub.s32 %v2738, %v5173
      %v5175 = vrot.slane %v4694, %v5174
      %v5176 = vlaneseq
      %v5177 = vshrl.u32 %v5176, 7
      %v5178 = vsub.s32 %v2743, %v5177
      %v5179 = vrot.slane %v4697, %v5178
      %v5180 = vsel %vm2748, %v5179, %v5175
      %v5181 = vlaneseq
      %v5182 = vshrl.u32 %v5181, 7
      %v5183 = vsub.s32 %v2738, %v5182
      %v5184 = vrot.slane %v4700, %v5183
      %v5185 = vlaneseq
      %v5186 = vshrl.u32 %v5185, 7
      %v5187 = vsub.s32 %v2743, %v5186
      %v5188 = vrot.slane %v4703, %v5187
      %v5189 = vsel %vm2748, %v5188, %v5184
      %v5190 = vlaneseq
      %v5191 = vshrl.u32 %v5190, 7
      %v5192 = vsub.s32 %v2738, %v5191
      %v5193 = vrot.slane %v4706, %v5192
      %v5194 = vlaneseq
      %v5195 = vshrl.u32 %v5194, 7
      %v5196 = vsub.s32 %v2743, %v5195
      %v5197 = vrot.slane %v4709, %v5196
      %v5198 = vsel %vm2748, %v5197, %v5193
      %v5199 = vlaneseq
      %v5200 = vshrl.u32 %v5199, 7
      %v5201 = vsub.s32 %v2738, %v5200
      %v5202 = vrot.slane %v4712, %v5201
      %v5203 = vlaneseq
      %v5204 = vshrl.u32 %v5203, 7
      %v5205 = vsub.s32 %v2743, %v5204
      %v5206 = vrot.slane %v4715, %v5205
      %v5207 = vsel %vm2748, %v5206, %v5202
      %v5208 = vlaneseq
      %v5209 = vshrl.u32 %v5208, 7
      %v5210 = vsub.s32 %v2738, %v5209
      %v5211 = vrot.slane %v4718, %v5210
      %v5212 = vlaneseq
      %v5213 = vshrl.u32 %v5212, 7
      %v5214 = vsub.s32 %v2743, %v5213
      %v5215 = vrot.slane %v4721, %v5214
      %v5216 = vsel %vm2748, %v5215, %v5211
      %v5217 = vlaneseq
      %v5218 = vshrl.u32 %v5217, 7
      %v5219 = vsub.s32 %v2738, %v5218
      %v5220 = vrot.slane %v4724, %v5219
      %v5221 = vlaneseq
      %v5222 = vshrl.u32 %v5221, 7
      %v5223 = vsub.s32 %v2743, %v5222
      %v5224 = vrot.slane %v4727, %v5223
      %v5225 = vsel %vm2748, %v5224, %v5220
      %v5226 = vlaneseq
      %v5227 = vshrl.u32 %v5226, 7
      %v5228 = vsub.s32 %v2738, %v5227
      %v5229 = vrot.slane %v4730, %v5228
      %v5230 = vlaneseq
      %v5231 = vshrl.u32 %v5230, 7
      %v5232 = vsub.s32 %v2743, %v5231
      %v5233 = vrot.slane %v4733, %v5232
      %v5234 = vsel %vm2748, %v5233, %v5229
      %v5235 = vlaneseq
      %v5236 = vshrl.u32 %v5235, 7
      %v5237 = vsub.s32 %v2738, %v5236
      %v5238 = vrot.slane %v4736, %v5237
      %v5239 = vlaneseq
      %v5240 = vshrl.u32 %v5239, 7
      %v5241 = vsub.s32 %v2743, %v5240
      %v5242 = vrot.slane %v4739, %v5241
      %v5243 = vsel %vm2748, %v5242, %v5238
      %v5244 = vlaneseq
      %v5245 = vshrl.u32 %v5244, 7
      %v5246 = vsub.s32 %v2738, %v5245
      %v5247 = vrot.slane %v4742, %v5246
      %v5248 = vlaneseq
      %v5249 = vshrl.u32 %v5248, 7
      %v5250 = vsub.s32 %v2743, %v5249
      %v5251 = vrot.slane %v4745, %v5250
      %v5252 = vsel %vm2748, %v5251, %v5247
      %v5253 = vlaneseq
      %v5254 = vshrl.u32 %v5253, 7
      %v5255 = vsub.s32 %v2738, %v5254
      %v5256 = vrot.slane %v4748, %v5255
      %v5257 = vlaneseq
      %v5258 = vshrl.u32 %v5257, 7
      %v5259 = vsub.s32 %v2743, %v5258
      %v5260 = vrot.slane %v4751, %v5259
      %v5261 = vsel %vm2748, %v5260, %v5256
      %v5262 = vlaneseq
      %v5263 = vshrl.u32 %v5262, 7
      %v5264 = vsub.s32 %v2738, %v5263
      %v5265 = vrot.slane %v4754, %v5264
      %v5266 = vlaneseq
      %v5267 = vshrl.u32 %v5266, 7
      %v5268 = vsub.s32 %v2743, %v5267
      %v5269 = vrot.slane %v4757, %v5268
      %v5270 = vsel %vm2748, %v5269, %v5265
      %v5271 = vlaneseq
      %v5272 = vshrl.u32 %v5271, 7
      %v5273 = vsub.s32 %v2738, %v5272
      %v5274 = vrot.slane %v4760, %v5273
      %v5275 = vlaneseq
      %v5276 = vshrl.u32 %v5275, 7
      %v5277 = vsub.s32 %v2743, %v5276
      %v5278 = vrot.slane %v4763, %v5277
      %v5279 = vsel %vm2748, %v5278, %v5274
      %v5280 = vlaneseq
      %v5281 = vshrl.u32 %v5280, 7
      %v5282 = vsub.s32 %v2738, %v5281
      %v5283 = vrot.slane %v4766, %v5282
      %v5284 = vlaneseq
      %v5285 = vshrl.u32 %v5284, 7
      %v5286 = vsub.s32 %v2743, %v5285
      %v5287 = vrot.slane %v4769, %v5286
      %v5288 = vsel %vm2748, %v5287, %v5283
      %v5289 = vlaneseq
      %v5290 = vshrl.u32 %v5289, 7
      %v5291 = vsub.s32 %v2738, %v5290
      %v5292 = vrot.slane %v4772, %v5291
      %v5293 = vlaneseq
      %v5294 = vshrl.u32 %v5293, 7
      %v5295 = vsub.s32 %v2743, %v5294
      %v5296 = vrot.slane %v4775, %v5295
      %v5297 = vsel %vm2748, %v5296, %v5292
      %v5298 = vlaneseq
      %v5299 = vshrl.u32 %v5298, 7
      %v5300 = vsub.s32 %v2738, %v5299
      %v5301 = vrot.slane %v4778, %v5300
      %v5302 = vlaneseq
      %v5303 = vshrl.u32 %v5302, 7
      %v5304 = vsub.s32 %v2743, %v5303
      %v5305 = vrot.slane %v4781, %v5304
      %v5306 = vsel %vm2748, %v5305, %v5301
      %v5307 = vlaneseq
      %v5308 = vshrl.u32 %v5307, 7
      %v5309 = vsub.s32 %v2738, %v5308
      %v5310 = vrot.slane %v4784, %v5309
      %v5311 = vlaneseq
      %v5312 = vshrl.u32 %v5311, 7
      %v5313 = vsub.s32 %v2743, %v5312
      %v5314 = vrot.slane %v4787, %v5313
      %v5315 = vsel %vm2748, %v5314, %v5310
      %v5316 = vlaneseq
      %v5317 = vshrl.u32 %v5316, 7
      %v5318 = vsub.s32 %v2738, %v5317
      %v5319 = vrot.slane %v4790, %v5318
      %v5320 = vlaneseq
      %v5321 = vshrl.u32 %v5320, 7
      %v5322 = vsub.s32 %v2743, %v5321
      %v5323 = vrot.slane %v4793, %v5322
      %v5324 = vsel %vm2748, %v5323, %v5319
      %v5325 = vlaneseq
      %v5326 = vshrl.u32 %v5325, 7
      %v5327 = vsub.s32 %v2738, %v5326
      %v5328 = vrot.slane %v4796, %v5327
      %v5329 = vlaneseq
      %v5330 = vshrl.u32 %v5329, 7
      %v5331 = vsub.s32 %v2743, %v5330
      %v5332 = vrot.slane %v4799, %v5331
      %v5333 = vsel %vm2748, %v5332, %v5328
      %v5334 = vlaneseq
      %v5335 = vshrl.u32 %v5334, 7
      %v5336 = vsub.s32 %v2738, %v5335
      %v5337 = vrot.slane %v4802, %v5336
      %v5338 = vlaneseq
      %v5339 = vshrl.u32 %v5338, 7
      %v5340 = vsub.s32 %v2743, %v5339
      %v5341 = vrot.slane %v4805, %v5340
      %v5342 = vsel %vm2748, %v5341, %v5337
      %v5343 = vlaneseq
      %v5344 = vshrl.u32 %v5343, 7
      %v5345 = vsub.s32 %v2738, %v5344
      %v5346 = vrot.slane %v4808, %v5345
      %v5347 = vlaneseq
      %v5348 = vshrl.u32 %v5347, 7
      %v5349 = vsub.s32 %v2743, %v5348
      %v5350 = vrot.slane %v4811, %v5349
      %v5351 = vsel %vm2748, %v5350, %v5346
      %v5352 = vlaneseq
      %v5353 = vshrl.u32 %v5352, 7
      %v5354 = vsub.s32 %v2738, %v5353
      %v5355 = vrot.slane %v4814, %v5354
      %v5356 = vlaneseq
      %v5357 = vshrl.u32 %v5356, 7
      %v5358 = vsub.s32 %v2743, %v5357
      %v5359 = vrot.slane %v4817, %v5358
      %v5360 = vsel %vm2748, %v5359, %v5355
      %v5361 = vlaneseq
      %v5362 = vshrl.u32 %v5361, 7
      %v5363 = vsub.s32 %v2738, %v5362
      %v5364 = vrot.slane %v4820, %v5363
      %v5365 = vlaneseq
      %v5366 = vshrl.u32 %v5365, 7
      %v5367 = vsub.s32 %v2743, %v5366
      %v5368 = vrot.slane %v4823, %v5367
      %v5369 = vsel %vm2748, %v5368, %v5364
      %v5370 = vlaneseq
      %v5371 = vshrl.u32 %v5370, 7
      %v5372 = vsub.s32 %v2738, %v5371
      %v5373 = vrot.slane %v4826, %v5372
      %v5374 = vlaneseq
      %v5375 = vshrl.u32 %v5374, 7
      %v5376 = vsub.s32 %v2743, %v5375
      %v5377 = vrot.slane %v4829, %v5376
      %v5378 = vsel %vm2748, %v5377, %v5373
      %v5379 = vlaneseq
      %v5380 = vshrl.u32 %v5379, 7
      %v5381 = vsub.s32 %v2738, %v5380
      %v5382 = vrot.slane %v4832, %v5381
      %v5383 = vlaneseq
      %v5384 = vshrl.u32 %v5383, 7
      %v5385 = vsub.s32 %v2743, %v5384
      %v5386 = vrot.slane %v4835, %v5385
      %v5387 = vsel %vm2748, %v5386, %v5382
      %v5388 = vlaneseq
      %v5389 = vshrl.u32 %v5388, 7
      %v5390 = vsub.s32 %v2738, %v5389
      %v5391 = vrot.slane %v4838, %v5390
      %v5392 = vlaneseq
      %v5393 = vshrl.u32 %v5392, 7
      %v5394 = vsub.s32 %v2743, %v5393
      %v5395 = vrot.slane %v4841, %v5394
      %v5396 = vsel %vm2748, %v5395, %v5391
      %v5397 = vlaneseq
      %v5398 = vshrl.u32 %v5397, 7
      %v5399 = vsub.s32 %v2738, %v5398
      %v5400 = vrot.slane %v4844, %v5399
      %v5401 = vlaneseq
      %v5402 = vshrl.u32 %v5401, 7
      %v5403 = vsub.s32 %v2743, %v5402
      %v5404 = vrot.slane %v4847, %v5403
      %v5405 = vsel %vm2748, %v5404, %v5400
      %v5406 = vlaneseq
      %v5407 = vshrl.u32 %v5406, 7
      %v5408 = vsub.s32 %v2738, %v5407
      %v5409 = vrot.slane %v4850, %v5408
      %v5410 = vlaneseq
      %v5411 = vshrl.u32 %v5410, 7
      %v5412 = vsub.s32 %v2743, %v5411
      %v5413 = vrot.slane %v4853, %v5412
      %v5414 = vsel %vm2748, %v5413, %v5409
      %v5415 = vlaneseq
      %v5416 = vshrl.u32 %v5415, 7
      %v5417 = vsub.s32 %v2738, %v5416
      %v5418 = vrot.slane %v4856, %v5417
      %v5419 = vlaneseq
      %v5420 = vshrl.u32 %v5419, 7
      %v5421 = vsub.s32 %v2743, %v5420
      %v5422 = vrot.slane %v4859, %v5421
      %v5423 = vsel %vm2748, %v5422, %v5418
      %v5424 = vlaneseq
      %v5425 = vshrl.u32 %v5424, 7
      %v5426 = vsub.s32 %v2738, %v5425
      %v5427 = vrot.slane %v4862, %v5426
      %v5428 = vlaneseq
      %v5429 = vshrl.u32 %v5428, 7
      %v5430 = vsub.s32 %v2743, %v5429
      %v5431 = vrot.slane %v4865, %v5430
      %v5432 = vsel %vm2748, %v5431, %v5427
      %v5433 = vlaneseq
      %v5434 = vshrl.u32 %v5433, 7
      %v5435 = vsub.s32 %v2738, %v5434
      %v5436 = vrot.slane %v4868, %v5435
      %v5437 = vlaneseq
      %v5438 = vshrl.u32 %v5437, 7
      %v5439 = vsub.s32 %v2743, %v5438
      %v5440 = vrot.slane %v4871, %v5439
      %v5441 = vsel %vm2748, %v5440, %v5436
      %v5442 = vlaneseq
      %v5443 = vshrl.u32 %v5442, 7
      %v5444 = vsub.s32 %v2738, %v5443
      %v5445 = vrot.slane %v4874, %v5444
      %v5446 = vlaneseq
      %v5447 = vshrl.u32 %v5446, 7
      %v5448 = vsub.s32 %v2743, %v5447
      %v5449 = vrot.slane %v4877, %v5448
      %v5450 = vsel %vm2748, %v5449, %v5445
      %v5451 = vlaneseq
      %v5452 = vshrl.u32 %v5451, 7
      %v5453 = vsub.s32 %v2738, %v5452
      %v5454 = vrot.slane %v4880, %v5453
      %v5455 = vlaneseq
      %v5456 = vshrl.u32 %v5455, 7
      %v5457 = vsub.s32 %v2743, %v5456
      %v5458 = vrot.slane %v4883, %v5457
      %v5459 = vsel %vm2748, %v5458, %v5454
      %v5460 = vsel %vm3317, %v4901, %v4892
      %v5461 = vsel %vm3319, %v4910, %v5460
      %v5462 = vsel %vm3321, %v4919, %v5461
      %v5463 = vsel %vm3323, %v4928, %v5462
      %v5464 = vsel %vm3325, %v4937, %v5463
      %v5465 = vsel %vm3327, %v4946, %v5464
      %v5466 = vsel %vm3329, %v4955, %v5465
      %v5467 = vsel %vm3317, %v4973, %v4964
      %v5468 = vsel %vm3319, %v4982, %v5467
      %v5469 = vsel %vm3321, %v4991, %v5468
      %v5470 = vsel %vm3323, %v5000, %v5469
      %v5471 = vsel %vm3325, %v5009, %v5470
      %v5472 = vsel %vm3327, %v5018, %v5471
      %v5473 = vsel %vm3329, %v5027, %v5472
      %v5474 = vsel %vm3317, %v5045, %v5036
      %v5475 = vsel %vm3319, %v5054, %v5474
      %v5476 = vsel %vm3321, %v5063, %v5475
      %v5477 = vsel %vm3323, %v5072, %v5476
      %v5478 = vsel %vm3325, %v5081, %v5477
      %v5479 = vsel %vm3327, %v5090, %v5478
      %v5480 = vsel %vm3329, %v5099, %v5479
      %v5481 = vsel %vm3317, %v5117, %v5108
      %v5482 = vsel %vm3319, %v5126, %v5481
      %v5483 = vsel %vm3321, %v5135, %v5482
      %v5484 = vsel %vm3323, %v5144, %v5483
      %v5485 = vsel %vm3325, %v5153, %v5484
      %v5486 = vsel %vm3327, %v5162, %v5485
      %v5487 = vsel %vm3329, %v5171, %v5486
      %v5488 = vsel %vm3317, %v5189, %v5180
      %v5489 = vsel %vm3319, %v5198, %v5488
      %v5490 = vsel %vm3321, %v5207, %v5489
      %v5491 = vsel %vm3323, %v5216, %v5490
      %v5492 = vsel %vm3325, %v5225, %v5491
      %v5493 = vsel %vm3327, %v5234, %v5492
      %v5494 = vsel %vm3329, %v5243, %v5493
      %v5495 = vsel %vm3317, %v5261, %v5252
      %v5496 = vsel %vm3319, %v5270, %v5495
      %v5497 = vsel %vm3321, %v5279, %v5496
      %v5498 = vsel %vm3323, %v5288, %v5497
      %v5499 = vsel %vm3325, %v5297, %v5498
      %v5500 = vsel %vm3327, %v5306, %v5499
      %v5501 = vsel %vm3329, %v5315, %v5500
      %v5502 = vsel %vm3317, %v5333, %v5324
      %v5503 = vsel %vm3319, %v5342, %v5502
      %v5504 = vsel %vm3321, %v5351, %v5503
      %v5505 = vsel %vm3323, %v5360, %v5504
      %v5506 = vsel %vm3325, %v5369, %v5505
      %v5507 = vsel %vm3327, %v5378, %v5506
      %v5508 = vsel %vm3329, %v5387, %v5507
      %v5509 = vsel %vm3317, %v5405, %v5396
      %v5510 = vsel %vm3319, %v5414, %v5509
      %v5511 = vsel %vm3321, %v5423, %v5510
      %v5512 = vsel %vm3323, %v5432, %v5511
      %v5513 = vsel %vm3325, %v5441, %v5512
      %v5514 = vsel %vm3327, %v5450, %v5513
      %v5515 = vsel %vm3329, %v5459, %v5514
      %v5524 = vsel %vm128, %v5466, 0.0
      %5525 = vadd.xlane.f32.xlu0 %v5524
      %v5526 = vpop.xlane.xlu0 %5525
      %v5527 = vsel %vm128, %v5473, 0.0
      %5528 = vadd.xlane.f32.xlu0 %v5527
      %v5529 = vpop.xlane.xlu0 %5528
      %v5530 = vsel %vm128, %v5480, 0.0
      %5531 = vadd.xlane.f32.xlu0 %v5530
      %v5532 = vpop.xlane.xlu0 %5531
      %v5533 = vsel %vm128, %v5487, 0.0
      %5534 = vadd.xlane.f32.xlu0 %v5533
      %v5535 = vpop.xlane.xlu0 %5534
      %v5536 = vsel %vm128, %v5494, 0.0
      %5537 = vadd.xlane.f32.xlu0 %v5536
      %v5538 = vpop.xlane.xlu0 %5537
      %v5539 = vsel %vm128, %v5501, 0.0
      %5540 = vadd.xlane.f32.xlu0 %v5539
      %v5541 = vpop.xlane.xlu0 %5540
      %v5542 = vsel %vm128, %v5508, 0.0
      %5543 = vadd.xlane.f32.xlu0 %v5542
      %v5544 = vpop.xlane.xlu0 %5543
      %v5545 = vsel %vm128, %v5515, 0.0
      %5546 = vadd.xlane.f32.xlu0 %v5545
      %v5547 = vpop.xlane.xlu0 %5546
      %v5548 = vsub.f32 %v5526, 1.0
      %v5549 = vsub.f32 %v5529, 1.0
      %v5550 = vsub.f32 %v5532, 1.0
      %v5551 = vsub.f32 %v5535, 1.0
      %v5552 = vsub.f32 %v5538, 1.0
      %v5553 = vsub.f32 %v5541, 1.0
      %v5554 = vsub.f32 %v5544, 1.0
      %v5555 = vsub.f32 %v5547, 1.0
      %v5556 = vrcp.pop %v3390
      %v5557 = vmul.f32 %v5548, %v5556
      %v5558 = vrcp.pop %v3393
      %v5559 = vmul.f32 %v5549, %v5558
      %v5560 = vrcp.pop %v3396
      %v5561 = vmul.f32 %v5550, %v5560
      %v5562 = vrcp.pop %v3399
      %v5563 = vmul.f32 %v5551, %v5562
      %v5564 = vrcp.pop %v3402
      %v5565 = vmul.f32 %v5552, %v5564
      %v5566 = vrcp.pop %v3405
      %v5567 = vmul.f32 %v5553, %v5566
      %v5568 = vrcp.pop %v3408
      %v5569 = vmul.f32 %v5554, %v5568
      %v5570 = vrcp.pop %v3411
      %v5571 = vmul.f32 %v5555, %v5570
      %v5572 = vsub.f32 %v153, %v5557
      %v5573 = vsub.f32 %v154, %v5559
      %v5574 = vsub.f32 %v155, %v5561
      %v5575 = vsub.f32 %v156, %v5563
      %v5576 = vsub.f32 %v157, %v5565
      %v5577 = vsub.f32 %v158, %v5567
      %v5578 = vsub.f32 %v159, %v5569
      %v5579 = vsub.f32 %v160, %v5571
      %v5580 = vmax.f32 %v5572, 0.0
      %v5581 = vmax.f32 %v5573, 0.0
      %v5582 = vmax.f32 %v5574, 0.0
      %v5583 = vmax.f32 %v5575, 0.0
      %v5584 = vmax.f32 %v5576, 0.0
      %v5585 = vmax.f32 %v5577, 0.0
      %v5586 = vmax.f32 %v5578, 0.0
      %v5587 = vmax.f32 %v5579, 0.0
      %5588 = vst.msk [vmem:[%s118] sm:$0xff] %vm128, %v5580
      %5589 = vst.msk [vmem:[%s118 + $0x8] sm:$0xff] %vm128, %v5581
      %5590 = vst.msk [vmem:[%s118 + $0x10] sm:$0xff] %vm128, %v5582
      %5591 = vst.msk [vmem:[%s118 + $0x18] sm:$0xff] %vm128, %v5583
      %5592 = vst.msk [vmem:[%s118 + $0x20] sm:$0xff] %vm128, %v5584
      %5593 = vst.msk [vmem:[%s118 + $0x28] sm:$0xff] %vm128, %v5585
      %5594 = vst.msk [vmem:[%s118 + $0x30] sm:$0xff] %vm128, %v5586
      %5595 = vst.msk [vmem:[%s118 + $0x38] sm:$0xff] %vm128, %v5587
      %s5596 = smul.u32 8, %s12
      %p5597 = scmp.lt.s32.totalorder %s5596, 15
      %s5598 = scalar_select %p5597, %s5596, 15
      %s5599 = smul.addr %s5598, 8
      %s5600 = scalar_lea.vmem %s1, %s5599
      // Predicated region
      $region25: #{tpu_custom_call.1} parent=23 // pred_check
        %p5601 = pneg %p56
      $region26: #{tpu_custom_call.1} parent=23 // pred_check_branch
        %5603 = sbr.rel (%p5601) target = $region28
      $region27: #{tpu_custom_call.1} parent=23 // pred_region
        %s5604 = smul.u32 8, %s12
      $region28: #{tpu_custom_call.1} parent=23 // pred_fallthru
        _
    $region24: #{tpu_custom_call.1} parent=5 // pred_fallthru
      _
    %p5605 = scmp.le.s32.totalorder 2, %s7
    // Predicated region
    $region29: #{tpu_custom_call.1} parent=5 // pred_check
      %p5606 = pneg %p5605
    $region30: #{tpu_custom_call.1} parent=5 // pred_check_branch
      %5608 = sbr.rel (%p5606) target = $region32
    $region31: #{tpu_custom_call.1} parent=5 // pred_region
      %s5609 = ssub.s32 %s7, 2
      // Predicated region
      $region33: #{tpu_custom_call.1} parent=31 // pred_check
        %p5610 = pneg %p62
      $region34: #{tpu_custom_call.1} parent=31 // pred_check_branch
        %5612 = sbr.rel (%p5610) target = $region36
      $region35: #{tpu_custom_call.1} parent=31 // pred_region
        %s5613 = smul.u32 8, %s13
        %p5614 = scmp.lt.s32.totalorder %s5613, 15
        %s5615 = scalar_select %p5614, %s5613, 15
        %s5616 = smul.addr %s5615, 8
        %s5617 = scalar_lea.vmem %s1, %s5616
      $region36: #{tpu_custom_call.1} parent=31 // pred_fallthru
        _
    $region32: #{tpu_custom_call.1} parent=5 // pred_fallthru
      _
  $region6: #{tpu_custom_call.1} parent=0 // loop_footer
    %s11 = sadd.s32 1, %s7
  $region7: #{tpu_custom_call.1} parent=0 // loop_footer_branch
    %6 = sbr.rel target = $region3
  $region8: #{tpu_custom_call.1} parent=0 // loop_exit
    _

</llo_original>
